<compile_context>
chip_gen: v5e
topology: v5e:2x2
jax: 0.10.0
libtpu: 0.0.40
codegen_flags: <defaults>
</compile_context>

<pallas_src>
import functools
import math

import jax
import jax.numpy as jnp
from jax.experimental import pallas as pl
from jax.experimental.pallas import tpu as pltpu


# ----------------------------- in-kernel helpers -----------------------------

def _layernorm(x, g, b, eps):
    # x: (rows, D) f32; g, b: (1, D) f32
    mu = jnp.mean(x, axis=-1, keepdims=True)
    var = jnp.mean(jnp.square(x - mu), axis=-1, keepdims=True)
    return (x - mu) * jax.lax.rsqrt(var + eps) * g + b


def _mha(q, k, v, wo_bf, bo, num_heads, scale, bias):
    """Multi-head attention + output projection.

    q: (Sq, D) f32, k/v: (Sk, D) f32 with heads as contiguous 128-wide column
    chunks.  wo_bf: (D, D) bf16, bo: (1, D) f32.  bias: additive (Sq, Sk)
    mask (0 / -1e9) or None.  Per-head contexts are concatenated (lane-aligned)
    and projected with a single full-K matmul.
    """
    Sq, D = q.shape
    dh = D // num_heads
    q_bf = q.astype(jnp.bfloat16)
    k_bf = k.astype(jnp.bfloat16)
    v_bf = v.astype(jnp.bfloat16)
    ctx_heads = []
    for h in range(num_heads):
        sl = slice(h * dh, (h + 1) * dh)
        s = jax.lax.dot_general(q_bf[:, sl], k_bf[:, sl],
                                (((1,), (1,)), ((), ())),
                                preferred_element_type=jnp.float32) * scale
        if bias is not None:
            s = s + bias
        s = s - jnp.max(s, axis=-1, keepdims=True)
        p = jnp.exp(s)
        p = p / jnp.sum(p, axis=-1, keepdims=True)      # exact divide
        ctx_heads.append(jnp.dot(p.astype(jnp.bfloat16), v_bf[:, sl],
                                 preferred_element_type=jnp.float32))
    ctx = ctx_heads[0] if num_heads == 1 else jnp.concatenate(ctx_heads, axis=-1)
    return jnp.dot(ctx.astype(jnp.bfloat16), wo_bf,
                   preferred_element_type=jnp.float32) + bo


# --------------------------------- kernel -------------------------------------

def _layer_impl(dec_ref, enc_ref, weights, o_ref, y_sc, bias,
                num_heads, scale, eps):
    (wqkv, bqkv, wo1, bo1, g1, be1,
     wq, bq, wkv, bkv, wo2, bo2, g2, be2,
     w1, b1, w2, b2, g3, be3) = weights

    l = pl.program_id(1)

    # Initialize the per-batch activation carry at the first layer.
    @pl.when(l == 0)
    def _():
        y_sc[...] = dec_ref[...].astype(jnp.float32)

    y = y_sc[...]                                           # (S, D) f32
    D = y.shape[-1]

    # ---- masked self-attention + residual + LayerNorm ------------------------
    qkv = jnp.dot(y.astype(jnp.bfloat16), wqkv[...],
                  preferred_element_type=jnp.float32) + bqkv[...]        # (S,3D)
    proj = _mha(qkv[:, :D], qkv[:, D:2 * D], qkv[:, 2 * D:],
                wo1[...], bo1[...], num_heads, scale, bias)
    y = _layernorm(y + proj, g1[...], be1[...], eps)

    # ---- cross-attention over the encoder output (no mask) -------------------
    q = jnp.dot(y.astype(jnp.bfloat16), wq[...],
                preferred_element_type=jnp.float32) + bq[...]            # (S,D)
    kv = jnp.dot(enc_ref[...].astype(jnp.bfloat16), wkv[...],
                 preferred_element_type=jnp.float32) + bkv[...]          # (Se,2D)
    proj = _mha(q, kv[:, :D], kv[:, D:], wo2[...], bo2[...],
                num_heads, scale, None)
    y = _layernorm(y + proj, g2[...], be2[...], eps)

    # ---- feed-forward + residual + LayerNorm ----------------------------------
    h = jnp.dot(y.astype(jnp.bfloat16), w1[...],
                preferred_element_type=jnp.float32) + b1[...]            # (S,F)
    h = jnp.maximum(h, 0.0)                                              # ReLU
    f = jnp.dot(h.astype(jnp.bfloat16), w2[...],
                preferred_element_type=jnp.float32) + b2[...]            # (S,D)
    y = _layernorm(y + f, g3[...], be3[...], eps)

    y_sc[...] = y                                   # carry to next layer (l+1)
    o_ref[...] = y.astype(o_ref.dtype)              # flushed once per batch idx


def _layer_kernel_causal(dec_ref, enc_ref, *rest, num_heads, scale, eps):
    *weights, o_ref, y_sc = rest
    S = dec_ref.shape[0]
    row = jax.lax.broadcasted_iota(jnp.int32, (S, S), 0)
    col = jax.lax.broadcasted_iota(jnp.int32, (S, S), 1)
    bias = jnp.where(row >= col, 0.0, -1e9).astype(jnp.float32)
    _layer_impl(dec_ref, enc_ref, tuple(weights), o_ref, y_sc, bias,
                num_heads, scale, eps)


def _layer_kernel_masked(mask_ref, dec_ref, enc_ref, *rest,
                         num_heads, scale, eps):
    *weights, o_ref, y_sc = rest
    # mask: int8, nonzero = attend.
    bias = jnp.where(mask_ref[...] > 0, 0.0, -1e9).astype(jnp.float32)
    _layer_impl(dec_ref, enc_ref, tuple(weights), o_ref, y_sc, bias,
                num_heads, scale, eps)


# ----------------------------- pallas_call wrapper -----------------------------

def encoder_forward(params, decoder_input, encoder_output, decoder_mask,
                    num_heads, eps=1e-5):
    """decoder_mask: None -> standard causal mask (generated in-kernel),
    or an explicit (B, S, S) / (B, 1, S, S) array (nonzero = attend)."""
    B, S, D = decoder_input.shape
    Se = encoder_output.shape[1]
    L = params['w_qkv'].shape[0]
    F = params['w1'].shape[-1]
    assert D % num_heads == 0
    dh = D // num_heads
    # Lane-aligned head slices (avoids per-head relayout copies).
    assert dh % 128 == 0, "head_dim must be a multiple of 128"
    scale = 1.0 / math.sqrt(dh)

    def act_spec(seq):                               # per-batch activation tile
        return pl.BlockSpec((None, seq, D), lambda b, l: (b, 0, 0))

    def wspec(r, c):                                 # per-layer weight tile
        return pl.BlockSpec((None, r, c), lambda b, l: (l, 0, 0))

    weight_specs = [
        wspec(D, 3 * D), wspec(1, 3 * D), wspec(D, D), wspec(1, D),
        wspec(1, D), wspec(1, D),
        wspec(D, D), wspec(1, D), wspec(D, 2 * D), wspec(1, 2 * D),
        wspec(D, D), wspec(1, D), wspec(1, D), wspec(1, D),
        wspec(D, F), wspec(1, F), wspec(F, D), wspec(1, D),
        wspec(1, D), wspec(1, D),
    ]
    weight_args = [
        params['w_qkv'], params['b_qkv'], params['wo1'], params['bo1'],
        params['ln1_g'], params['ln1_b'],
        params['wq'], params['bq'], params['w_kv'], params['b_kv'],
        params['wo2'], params['bo2'], params['ln2_g'], params['ln2_b'],
        params['w1'], params['b1'], params['w2'], params['b2'],
        params['ln3_g'], params['ln3_b'],
    ]

    if decoder_mask is None:
        kern = functools.partial(_layer_kernel_causal,
                                 num_heads=num_heads, scale=scale, eps=eps)
        in_specs = [act_spec(S), act_spec(Se)] + weight_specs
        args = [decoder_input, encoder_output] + weight_args
    else:
        if decoder_mask.ndim == 4:                   # (B, 1, S, S) PyTorch-style
            decoder_mask = decoder_mask.reshape(decoder_mask.shape[0], S, S)
        mask_i8 = (decoder_mask != 0).astype(jnp.int8)
        kern = functools.partial(_layer_kernel_masked,
                                 num_heads=num_heads, scale=scale, eps=eps)
        in_specs = ([pl.BlockSpec((None, S, S), lambda b, l: (b, 0, 0)),
                     act_spec(S), act_spec(Se)] + weight_specs)
        args = [mask_i8, decoder_input, encoder_output] + weight_args

    return pl.pallas_call(
        kern,
        out_shape=jax.ShapeDtypeStruct((B, S, D), decoder_input.dtype),
        grid=(B, L),
        in_specs=in_specs,
        out_specs=pl.BlockSpec((None, S, D), lambda b, l: (b, 0, 0)),
        scratch_shapes=[pltpu.VMEM((S, D), jnp.float32)],   # layer-to-layer carry
        compiler_params=pltpu.CompilerParams(
            dimension_semantics=("parallel", "arbitrary"),
            vmem_limit_bytes=32 * 1024 * 1024),
    )(*args)


# ----------------------------- parameter creation ------------------------------

def init_stacked_params(key, num_layers, d_model, d_ff):
    """Per-layer weights stacked along a leading L axis; matmul weights stored
    in bf16 (f32 accumulation in-kernel), biases / LayerNorm params in f32."""
    L, D, F = num_layers, d_model, d_ff
    ks = jax.random.split(key, 7)
    w = lambda k, shape: (jax.random.normal(k, shape, jnp.float32) * 0.02
                          ).astype(jnp.bfloat16)
    zeros = lambda *s: jnp.zeros(s, jnp.float32)
    ones = lambda *s: jnp.ones(s, jnp.float32)
    return {
        # self-attention ([Wq | Wk | Wv] fused)
        'w_qkv': w(ks[0], (L, D, 3 * D)), 'b_qkv': zeros(L, 1, 3 * D),
        'wo1': w(ks[1], (L, D, D)), 'bo1': zeros(L, 1, D),
        'ln1_g': ones(L, 1, D), 'ln1_b': zeros(L, 1, D),
        # cross-attention ([Wk | Wv] fused)
        'wq': w(ks[2], (L, D, D)), 'bq': zeros(L, 1, D),
        'w_kv': w(ks[3], (L, D, 2 * D)), 'b_kv': zeros(L, 1, 2 * D),
        'wo2': w(ks[4], (L, D, D)), 'bo2': zeros(L, 1, D),
        'ln2_g': ones(L, 1, D), 'ln2_b': zeros(L, 1, D),
        # feed-forward
        'w1': w(ks[5], (L, D, F)), 'b1': zeros(L, 1, F),
        'w2': w(ks[6], (L, F, D)), 'b2': zeros(L, 1, D),
        'ln3_g': ones(L, 1, D), 'ln3_b': zeros(L, 1, D),
    }


# ------------------------------------ main -------------------------------------

if __name__ == "__main__":
    d_model = 256
    num_heads = 2          # head_dim = 128 -> lane-aligned head slices
    d_ff = 512
    dropout_prob = 0.1     # identity in eval mode
    num_decoders = 2

    batch, seq, enc_seq = 2, 32, 48

    root = jax.random.PRNGKey(0)
    k_in, k_enc, k_params = jax.random.split(root, 3)
    decoder_input = jax.random.normal(k_in, (batch, seq, d_model), jnp.float32)
    encoder_output = jax.random.normal(k_enc, (batch, enc_seq, d_model), jnp.float32)
    params = init_stacked_params(k_params, num_decoders, d_model, d_ff)

    fwd = jax.jit(encoder_forward, static_argnums=(4,))

    # Path 1: causal decoder mask generated in-kernel (no mask DMA) — default.
    out = jax.block_until_ready(
        fwd(params, decoder_input, encoder_output, None, num_heads))

    # Path 2: explicit (B, S, S) mask array (PyTorch forward API parity).
    causal = jnp.tril(jnp.ones((seq, seq), jnp.float32))
    decoder_mask = jnp.broadcast_to(causal, (batch, seq, seq))
    out_explicit = jax.block_until_ready(
        fwd(params, decoder_input, encoder_output, decoder_mask, num_heads))

    assert out.shape == (batch, seq, d_model)
    assert bool(jnp.all(jnp.isfinite(out)))
    assert bool(jnp.allclose(out, out_explicit, atol=1e-5, rtol=1e-5))
    print("KERNEL_OK")
</pallas_src>

<mosaic_0001>
module attributes {stable_mosaic.version = 11 : i64} {
  func.func @_layer_kernel_causal(%arg0: i32, %arg1: i32, %arg2: memref<1x32x256xf32, #tpu.memory_space<vmem>>, %arg3: memref<1x48x256xf32, #tpu.memory_space<vmem>>, %arg4: memref<1x256x768xbf16, #tpu.memory_space<vmem>>, %arg5: memref<1x1x768xf32, #tpu.memory_space<vmem>>, %arg6: memref<1x256x256xbf16, #tpu.memory_space<vmem>>, %arg7: memref<1x1x256xf32, #tpu.memory_space<vmem>>, %arg8: memref<1x1x256xf32, #tpu.memory_space<vmem>>, %arg9: memref<1x1x256xf32, #tpu.memory_space<vmem>>, %arg10: memref<1x256x256xbf16, #tpu.memory_space<vmem>>, %arg11: memref<1x1x256xf32, #tpu.memory_space<vmem>>, %arg12: memref<1x256x512xbf16, #tpu.memory_space<vmem>>, %arg13: memref<1x1x512xf32, #tpu.memory_space<vmem>>, %arg14: memref<1x256x256xbf16, #tpu.memory_space<vmem>>, %arg15: memref<1x1x256xf32, #tpu.memory_space<vmem>>, %arg16: memref<1x1x256xf32, #tpu.memory_space<vmem>>, %arg17: memref<1x1x256xf32, #tpu.memory_space<vmem>>, %arg18: memref<1x256x512xbf16, #tpu.memory_space<vmem>>, %arg19: memref<1x1x512xf32, #tpu.memory_space<vmem>>, %arg20: memref<1x512x256xbf16, #tpu.memory_space<vmem>>, %arg21: memref<1x1x256xf32, #tpu.memory_space<vmem>>, %arg22: memref<1x1x256xf32, #tpu.memory_space<vmem>>, %arg23: memref<1x1x256xf32, #tpu.memory_space<vmem>>, %arg24: memref<1x32x256xf32, #tpu.memory_space<vmem>>, %arg25: memref<32x256xf32, #tpu.memory_space<vmem>>) attributes {dimension_semantics = [#tpu.dimension_semantics<parallel>, #tpu.dimension_semantics<arbitrary>], iteration_bounds = array<i64: 2, 2>, scalar_prefetch = 0 : i64, scratch_operands = 1 : i64, tpu.core_type = #tpu.core_type<tc>, window_params = [{transform_indices = @transform_0, window_bounds = array<i64: 1, 32, 256>}, {transform_indices = @transform_1, window_bounds = array<i64: 1, 48, 256>}, {transform_indices = @transform_2, window_bounds = array<i64: 1, 256, 768>}, {transform_indices = @transform_3, window_bounds = array<i64: 1, 1, 768>}, {transform_indices = @transform_4, window_bounds = array<i64: 1, 256, 256>}, {transform_indices = @transform_5, window_bounds = array<i64: 1, 1, 256>}, {transform_indices = @transform_6, window_bounds = array<i64: 1, 1, 256>}, {transform_indices = @transform_7, window_bounds = array<i64: 1, 1, 256>}, {transform_indices = @transform_8, window_bounds = array<i64: 1, 256, 256>}, {transform_indices = @transform_9, window_bounds = array<i64: 1, 1, 256>}, {transform_indices = @transform_10, window_bounds = array<i64: 1, 256, 512>}, {transform_indices = @transform_11, window_bounds = array<i64: 1, 1, 512>}, {transform_indices = @transform_12, window_bounds = array<i64: 1, 256, 256>}, {transform_indices = @transform_13, window_bounds = array<i64: 1, 1, 256>}, {transform_indices = @transform_14, window_bounds = array<i64: 1, 1, 256>}, {transform_indices = @transform_15, window_bounds = array<i64: 1, 1, 256>}, {transform_indices = @transform_16, window_bounds = array<i64: 1, 256, 512>}, {transform_indices = @transform_17, window_bounds = array<i64: 1, 1, 512>}, {transform_indices = @transform_18, window_bounds = array<i64: 1, 512, 256>}, {transform_indices = @transform_19, window_bounds = array<i64: 1, 1, 256>}, {transform_indices = @transform_20, window_bounds = array<i64: 1, 1, 256>}, {transform_indices = @transform_21, window_bounds = array<i64: 1, 1, 256>}, {transform_indices = @transform_22, window_bounds = array<i64: 1, 32, 256>}]} {
    %0 = tpu.iota {dimensions = array<i32: 0>} : vector<32x32xi32>
    %1 = tpu.iota {dimensions = array<i32: 1>} : vector<32x32xi32>
    %2 = arith.cmpi sge, %0, %1 : vector<32x32xi32>
    %cst = arith.constant 0.000000e+00 : f32
    %cst_0 = arith.constant -1.000000e+09 : f32
    %3 = vector.broadcast %cst : f32 to vector<32x32xf32>
    %4 = vector.broadcast %cst_0 : f32 to vector<32x32xf32>
    %5 = arith.select %2, %3, %4 : vector<32x32xi1>, vector<32x32xf32>
    %c0_i32 = arith.constant 0 : i32
    %6 = arith.cmpi eq, %arg1, %c0_i32 : i32
    %7 = arith.extui %6 : i1 to i32
    %c0_i32_1 = arith.constant 0 : i32
    %8 = arith.cmpi ne, %7, %c0_i32_1 : i32
    scf.if %8 {
      %c0_114 = arith.constant 0 : index
      %c0_115 = arith.constant 0 : index
      %c0_116 = arith.constant 0 : index
      %238 = vector.load %arg2[%c0_114, %c0_115, %c0_116] : memref<1x32x256xf32, #tpu.memory_space<vmem>>, vector<1x32x256xf32>
      %239 = vector.shape_cast %238 : vector<1x32x256xf32> to vector<32x256xf32>
      %c0_117 = arith.constant 0 : index
      %c0_118 = arith.constant 0 : index
      %240 = vector.load %arg25[%c0_117, %c0_118] : memref<32x256xf32, #tpu.memory_space<vmem>>, vector<32x256xf32>
      tpu.vector_store %arg25[%c0_117, %c0_118], %239 {strides = array<i32>} : memref<32x256xf32, #tpu.memory_space<vmem>>, vector<32x256xf32>,
    } else {
    }
    %c0 = arith.constant 0 : index
    %c0_2 = arith.constant 0 : index
    %9 = vector.load %arg25[%c0, %c0_2] : memref<32x256xf32, #tpu.memory_space<vmem>>, vector<32x256xf32>
    %10 = arith.truncf %9 : vector<32x256xf32> to vector<32x256xbf16>
    %c0_3 = arith.constant 0 : index
    %c0_4 = arith.constant 0 : index
    %c0_5 = arith.constant 0 : index
    %11 = vector.load %arg4[%c0_3, %c0_4, %c0_5] : memref<1x256x768xbf16, #tpu.memory_space<vmem>>, vector<1x256x768xbf16>
    %12 = vector.shape_cast %11 : vector<1x256x768xbf16> to vector<256x768xbf16>
    %cst_6 = arith.constant dense<0.000000e+00> : vector<32x768xf32>
    %13 = tpu.matmul %10, %12, %cst_6 {dimension_numbers = #tpu.dot_dimension_numbers<[1], [0], [0], [1], [0, 0, 1, 1], [], []>} : vector<32x256xbf16>, vector<256x768xbf16>, vector<32x768xf32> -> vector<32x768xf32>
    %c0_7 = arith.constant 0 : index
    %c0_8 = arith.constant 0 : index
    %c0_9 = arith.constant 0 : index
    %14 = vector.load %arg5[%c0_7, %c0_8, %c0_9] : memref<1x1x768xf32, #tpu.memory_space<vmem>>, vector<1x1x768xf32>
    %15 = vector.shape_cast %14 : vector<1x1x768xf32> to vector<1x768xf32>
    %16 = vector.broadcast %15 : vector<1x768xf32> to vector<32x768xf32>
    %17 = arith.addf %13, %16 : vector<32x768xf32>
    %18 = vector.extract_strided_slice %17 {offsets = [0, 0], sizes = [32, 256], strides = [1, 1]} : vector<32x768xf32> to vector<32x256xf32>
    %19 = vector.extract_strided_slice %17 {offsets = [0, 256], sizes = [32, 256], strides = [1, 1]} : vector<32x768xf32> to vector<32x256xf32>
    %20 = vector.extract_strided_slice %17 {offsets = [0, 512], sizes = [32, 256], strides = [1, 1]} : vector<32x768xf32> to vector<32x256xf32>
    %c0_10 = arith.constant 0 : index
    %c0_11 = arith.constant 0 : index
    %c0_12 = arith.constant 0 : index
    %21 = vector.load %arg6[%c0_10, %c0_11, %c0_12] : memref<1x256x256xbf16, #tpu.memory_space<vmem>>, vector<1x256x256xbf16>
    %22 = vector.shape_cast %21 : vector<1x256x256xbf16> to vector<256x256xbf16>
    %c0_13 = arith.constant 0 : index
    %c0_14 = arith.constant 0 : index
    %c0_15 = arith.constant 0 : index
    %23 = vector.load %arg7[%c0_13, %c0_14, %c0_15] : memref<1x1x256xf32, #tpu.memory_space<vmem>>, vector<1x1x256xf32>
    %24 = vector.shape_cast %23 : vector<1x1x256xf32> to vector<1x256xf32>
    %25 = arith.truncf %18 : vector<32x256xf32> to vector<32x256xbf16>
    %26 = arith.truncf %19 : vector<32x256xf32> to vector<32x256xbf16>
    %27 = arith.truncf %20 : vector<32x256xf32> to vector<32x256xbf16>
    %28 = vector.extract_strided_slice %25 {offsets = [0, 0], sizes = [32, 128], strides = [1, 1]} : vector<32x256xbf16> to vector<32x128xbf16>
    %29 = vector.extract_strided_slice %26 {offsets = [0, 0], sizes = [32, 128], strides = [1, 1]} : vector<32x256xbf16> to vector<32x128xbf16>
    %cst_16 = arith.constant dense<0.000000e+00> : vector<32x32xf32>
    %30 = tpu.matmul %28, %29, %cst_16 {dimension_numbers = #tpu.dot_dimension_numbers<[1], [1], [0], [0], [0, 0, 1, 0], [], []>} : vector<32x128xbf16>, vector<32x128xbf16>, vector<32x32xf32> -> vector<32x32xf32>
    %cst_17 = arith.constant 0.0883883461 : f32
    %31 = vector.broadcast %cst_17 : f32 to vector<32x32xf32>
    %32 = arith.mulf %30, %31 : vector<32x32xf32>
    %33 = arith.addf %32, %5 : vector<32x32xf32>
    %cst_18 = arith.constant dense<0xFF800000> : vector<32xf32>
    %34 = vector.multi_reduction <maximumf>, %33, %cst_18 [1] : vector<32x32xf32> to vector<32xf32>
    %35 = vector.shape_cast %34 : vector<32xf32> to vector<32x1xf32>
    %36 = vector.broadcast %35 : vector<32x1xf32> to vector<32x32xf32>
    %37 = arith.subf %33, %36 : vector<32x32xf32>
    %38 = math.exp %37 : vector<32x32xf32>
    %cst_19 = arith.constant dense<0.000000e+00> : vector<32xf32>
    %39 = vector.multi_reduction <add>, %38, %cst_19 [1] : vector<32x32xf32> to vector<32xf32>
    %40 = vector.shape_cast %39 : vector<32xf32> to vector<32x1xf32>
    %41 = vector.broadcast %40 : vector<32x1xf32> to vector<32x32xf32>
    %42 = arith.divf %38, %41 : vector<32x32xf32>
    %43 = arith.truncf %42 : vector<32x32xf32> to vector<32x32xbf16>
    %44 = vector.extract_strided_slice %27 {offsets = [0, 0], sizes = [32, 128], strides = [1, 1]} : vector<32x256xbf16> to vector<32x128xbf16>
    %cst_20 = arith.constant dense<0.000000e+00> : vector<32x128xf32>
    %45 = tpu.matmul %43, %44, %cst_20 {dimension_numbers = #tpu.dot_dimension_numbers<[1], [0], [0], [1], [0, 0, 1, 1], [], []>} : vector<32x32xbf16>, vector<32x128xbf16>, vector<32x128xf32> -> vector<32x128xf32>
    %46 = vector.extract_strided_slice %25 {offsets = [0, 128], sizes = [32, 128], strides = [1, 1]} : vector<32x256xbf16> to vector<32x128xbf16>
    %47 = vector.extract_strided_slice %26 {offsets = [0, 128], sizes = [32, 128], strides = [1, 1]} : vector<32x256xbf16> to vector<32x128xbf16>
    %cst_21 = arith.constant dense<0.000000e+00> : vector<32x32xf32>
    %48 = tpu.matmul %46, %47, %cst_21 {dimension_numbers = #tpu.dot_dimension_numbers<[1], [1], [0], [0], [0, 0, 1, 0], [], []>} : vector<32x128xbf16>, vector<32x128xbf16>, vector<32x32xf32> -> vector<32x32xf32>
    %cst_22 = arith.constant 0.0883883461 : f32
    %49 = vector.broadcast %cst_22 : f32 to vector<32x32xf32>
    %50 = arith.mulf %48, %49 : vector<32x32xf32>
    %51 = arith.addf %50, %5 : vector<32x32xf32>
    %cst_23 = arith.constant dense<0xFF800000> : vector<32xf32>
    %52 = vector.multi_reduction <maximumf>, %51, %cst_23 [1] : vector<32x32xf32> to vector<32xf32>
    %53 = vector.shape_cast %52 : vector<32xf32> to vector<32x1xf32>
    %54 = vector.broadcast %53 : vector<32x1xf32> to vector<32x32xf32>
    %55 = arith.subf %51, %54 : vector<32x32xf32>
    %56 = math.exp %55 : vector<32x32xf32>
    %cst_24 = arith.constant dense<0.000000e+00> : vector<32xf32>
    %57 = vector.multi_reduction <add>, %56, %cst_24 [1] : vector<32x32xf32> to vector<32xf32>
    %58 = vector.shape_cast %57 : vector<32xf32> to vector<32x1xf32>
    %59 = vector.broadcast %58 : vector<32x1xf32> to vector<32x32xf32>
    %60 = arith.divf %56, %59 : vector<32x32xf32>
    %61 = arith.truncf %60 : vector<32x32xf32> to vector<32x32xbf16>
    %62 = vector.extract_strided_slice %27 {offsets = [0, 128], sizes = [32, 128], strides = [1, 1]} : vector<32x256xbf16> to vector<32x128xbf16>
    %cst_25 = arith.constant dense<0.000000e+00> : vector<32x128xf32>
    %63 = tpu.matmul %61, %62, %cst_25 {dimension_numbers = #tpu.dot_dimension_numbers<[1], [0], [0], [1], [0, 0, 1, 1], [], []>} : vector<32x32xbf16>, vector<32x128xbf16>, vector<32x128xf32> -> vector<32x128xf32>
    %64 = tpu.concatenate %45, %63 in 1 : vector<32x128xf32>, vector<32x128xf32> -> vector<32x256xf32>
    %65 = arith.truncf %64 : vector<32x256xf32> to vector<32x256xbf16>
    %cst_26 = arith.constant dense<0.000000e+00> : vector<32x256xf32>
    %66 = tpu.matmul %65, %22, %cst_26 {dimension_numbers = #tpu.dot_dimension_numbers<[1], [0], [0], [1], [0, 0, 1, 1], [], []>} : vector<32x256xbf16>, vector<256x256xbf16>, vector<32x256xf32> -> vector<32x256xf32>
    %67 = vector.broadcast %24 : vector<1x256xf32> to vector<32x256xf32>
    %68 = arith.addf %66, %67 : vector<32x256xf32>
    %69 = arith.addf %9, %68 : vector<32x256xf32>
    %c0_27 = arith.constant 0 : index
    %c0_28 = arith.constant 0 : index
    %c0_29 = arith.constant 0 : index
    %70 = vector.load %arg8[%c0_27, %c0_28, %c0_29] : memref<1x1x256xf32, #tpu.memory_space<vmem>>, vector<1x1x256xf32>
    %71 = vector.shape_cast %70 : vector<1x1x256xf32> to vector<1x256xf32>
    %c0_30 = arith.constant 0 : index
    %c0_31 = arith.constant 0 : index
    %c0_32 = arith.constant 0 : index
    %72 = vector.load %arg9[%c0_30, %c0_31, %c0_32] : memref<1x1x256xf32, #tpu.memory_space<vmem>>, vector<1x1x256xf32>
    %73 = vector.shape_cast %72 : vector<1x1x256xf32> to vector<1x256xf32>
    %cst_33 = arith.constant dense<0.000000e+00> : vector<32xf32>
    %74 = vector.multi_reduction <add>, %69, %cst_33 [1] : vector<32x256xf32> to vector<32xf32>
    %75 = vector.shape_cast %74 : vector<32xf32> to vector<32x1xf32>
    %cst_34 = arith.constant 2.560000e+02 : f32
    %76 = vector.broadcast %cst_34 : f32 to vector<32x1xf32>
    %77 = arith.divf %75, %76 : vector<32x1xf32>
    %78 = vector.broadcast %77 : vector<32x1xf32> to vector<32x256xf32>
    %79 = arith.subf %69, %78 : vector<32x256xf32>
    %80 = arith.mulf %79, %79 : vector<32x256xf32>
    %cst_35 = arith.constant dense<0.000000e+00> : vector<32xf32>
    %81 = vector.multi_reduction <add>, %80, %cst_35 [1] : vector<32x256xf32> to vector<32xf32>
    %82 = vector.shape_cast %81 : vector<32xf32> to vector<32x1xf32>
    %cst_36 = arith.constant 2.560000e+02 : f32
    %83 = vector.broadcast %cst_36 : f32 to vector<32x1xf32>
    %84 = arith.divf %82, %83 : vector<32x1xf32>
    %85 = vector.broadcast %77 : vector<32x1xf32> to vector<32x256xf32>
    %86 = arith.subf %69, %85 : vector<32x256xf32>
    %cst_37 = arith.constant 9.99999974E-6 : f32
    %87 = vector.broadcast %cst_37 : f32 to vector<32x1xf32>
    %88 = arith.addf %84, %87 : vector<32x1xf32>
    %89 = math.rsqrt %88 : vector<32x1xf32>
    %90 = vector.broadcast %89 : vector<32x1xf32> to vector<32x256xf32>
    %91 = arith.mulf %86, %90 : vector<32x256xf32>
    %92 = vector.broadcast %71 : vector<1x256xf32> to vector<32x256xf32>
    %93 = arith.mulf %91, %92 : vector<32x256xf32>
    %94 = vector.broadcast %73 : vector<1x256xf32> to vector<32x256xf32>
    %95 = arith.addf %93, %94 : vector<32x256xf32>
    %96 = arith.truncf %95 : vector<32x256xf32> to vector<32x256xbf16>
    %c0_38 = arith.constant 0 : index
    %c0_39 = arith.constant 0 : index
    %c0_40 = arith.constant 0 : index
    %97 = vector.load %arg10[%c0_38, %c0_39, %c0_40] : memref<1x256x256xbf16, #tpu.memory_space<vmem>>, vector<1x256x256xbf16>
    %98 = vector.shape_cast %97 : vector<1x256x256xbf16> to vector<256x256xbf16>
    %cst_41 = arith.constant dense<0.000000e+00> : vector<32x256xf32>
    %99 = tpu.matmul %96, %98, %cst_41 {dimension_numbers = #tpu.dot_dimension_numbers<[1], [0], [0], [1], [0, 0, 1, 1], [], []>} : vector<32x256xbf16>, vector<256x256xbf16>, vector<32x256xf32> -> vector<32x256xf32>
    %c0_42 = arith.constant 0 : index
    %c0_43 = arith.constant 0 : index
    %c0_44 = arith.constant 0 : index
    %100 = vector.load %arg11[%c0_42, %c0_43, %c0_44] : memref<1x1x256xf32, #tpu.memory_space<vmem>>, vector<1x1x256xf32>
    %101 = vector.shape_cast %100 : vector<1x1x256xf32> to vector<1x256xf32>
    %102 = vector.broadcast %101 : vector<1x256xf32> to vector<32x256xf32>
    %103 = arith.addf %99, %102 : vector<32x256xf32>
    %c0_45 = arith.constant 0 : index
    %c0_46 = arith.constant 0 : index
    %c0_47 = arith.constant 0 : index
    %104 = vector.load %arg3[%c0_45, %c0_46, %c0_47] : memref<1x48x256xf32, #tpu.memory_space<vmem>>, vector<1x48x256xf32>
    %105 = vector.shape_cast %104 : vector<1x48x256xf32> to vector<48x256xf32>
    %106 = arith.truncf %105 : vector<48x256xf32> to vector<48x256xbf16>
    %c0_48 = arith.constant 0 : index
    %c0_49 = arith.constant 0 : index
    %c0_50 = arith.constant 0 : index
    %107 = vector.load %arg12[%c0_48, %c0_49, %c0_50] : memref<1x256x512xbf16, #tpu.memory_space<vmem>>, vector<1x256x512xbf16>
    %108 = vector.shape_cast %107 : vector<1x256x512xbf16> to vector<256x512xbf16>
    %cst_51 = arith.constant dense<0.000000e+00> : vector<48x512xf32>
    %109 = tpu.matmul %106, %108, %cst_51 {dimension_numbers = #tpu.dot_dimension_numbers<[1], [0], [0], [1], [0, 0, 1, 1], [], []>} : vector<48x256xbf16>, vector<256x512xbf16>, vector<48x512xf32> -> vector<48x512xf32>
    %c0_52 = arith.constant 0 : index
    %c0_53 = arith.constant 0 : index
    %c0_54 = arith.constant 0 : index
    %110 = vector.load %arg13[%c0_52, %c0_53, %c0_54] : memref<1x1x512xf32, #tpu.memory_space<vmem>>, vector<1x1x512xf32>
    %111 = vector.shape_cast %110 : vector<1x1x512xf32> to vector<1x512xf32>
    %112 = vector.broadcast %111 : vector<1x512xf32> to vector<48x512xf32>
    %113 = arith.addf %109, %112 : vector<48x512xf32>
    %114 = vector.extract_strided_slice %113 {offsets = [0, 0], sizes = [48, 256], strides = [1, 1]} : vector<48x512xf32> to vector<48x256xf32>
    %115 = vector.extract_strided_slice %113 {offsets = [0, 256], sizes = [48, 256], strides = [1, 1]} : vector<48x512xf32> to vector<48x256xf32>
    %c0_55 = arith.constant 0 : index
    %c0_56 = arith.constant 0 : index
    %c0_57 = arith.constant 0 : index
    %116 = vector.load %arg14[%c0_55, %c0_56, %c0_57] : memref<1x256x256xbf16, #tpu.memory_space<vmem>>, vector<1x256x256xbf16>
    %117 = vector.shape_cast %116 : vector<1x256x256xbf16> to vector<256x256xbf16>
    %c0_58 = arith.constant 0 : index
    %c0_59 = arith.constant 0 : index
    %c0_60 = arith.constant 0 : index
    %118 = vector.load %arg15[%c0_58, %c0_59, %c0_60] : memref<1x1x256xf32, #tpu.memory_space<vmem>>, vector<1x1x256xf32>
    %119 = vector.shape_cast %118 : vector<1x1x256xf32> to vector<1x256xf32>
    %120 = arith.truncf %103 : vector<32x256xf32> to vector<32x256xbf16>
    %121 = arith.truncf %114 : vector<48x256xf32> to vector<48x256xbf16>
    %122 = arith.truncf %115 : vector<48x256xf32> to vector<48x256xbf16>
    %123 = vector.extract_strided_slice %120 {offsets = [0, 0], sizes = [32, 128], strides = [1, 1]} : vector<32x256xbf16> to vector<32x128xbf16>
    %124 = vector.extract_strided_slice %121 {offsets = [0, 0], sizes = [48, 128], strides = [1, 1]} : vector<48x256xbf16> to vector<48x128xbf16>
    %cst_61 = arith.constant dense<0.000000e+00> : vector<32x48xf32>
    %125 = tpu.matmul %123, %124, %cst_61 {dimension_numbers = #tpu.dot_dimension_numbers<[1], [1], [0], [0], [0, 0, 1, 0], [], []>} : vector<32x128xbf16>, vector<48x128xbf16>, vector<32x48xf32> -> vector<32x48xf32>
    %cst_62 = arith.constant 0.0883883461 : f32
    %126 = vector.broadcast %cst_62 : f32 to vector<32x48xf32>
    %127 = arith.mulf %125, %126 : vector<32x48xf32>
    %cst_63 = arith.constant dense<0xFF800000> : vector<32xf32>
    %128 = vector.multi_reduction <maximumf>, %127, %cst_63 [1] : vector<32x48xf32> to vector<32xf32>
    %129 = vector.shape_cast %128 : vector<32xf32> to vector<32x1xf32>
    %130 = vector.broadcast %129 : vector<32x1xf32> to vector<32x48xf32>
    %131 = arith.subf %127, %130 : vector<32x48xf32>
    %132 = math.exp %131 : vector<32x48xf32>
    %cst_64 = arith.constant dense<0.000000e+00> : vector<32xf32>
    %133 = vector.multi_reduction <add>, %132, %cst_64 [1] : vector<32x48xf32> to vector<32xf32>
    %134 = vector.shape_cast %133 : vector<32xf32> to vector<32x1xf32>
    %135 = vector.broadcast %134 : vector<32x1xf32> to vector<32x48xf32>
    %136 = arith.divf %132, %135 : vector<32x48xf32>
    %137 = arith.truncf %136 : vector<32x48xf32> to vector<32x48xbf16>
    %138 = vector.extract_strided_slice %122 {offsets = [0, 0], sizes = [48, 128], strides = [1, 1]} : vector<48x256xbf16> to vector<48x128xbf16>
    %cst_65 = arith.constant dense<0.000000e+00> : vector<32x128xf32>
    %139 = tpu.matmul %137, %138, %cst_65 {dimension_numbers = #tpu.dot_dimension_numbers<[1], [0], [0], [1], [0, 0, 1, 1], [], []>} : vector<32x48xbf16>, vector<48x128xbf16>, vector<32x128xf32> -> vector<32x128xf32>
    %140 = vector.extract_strided_slice %120 {offsets = [0, 128], sizes = [32, 128], strides = [1, 1]} : vector<32x256xbf16> to vector<32x128xbf16>
    %141 = vector.extract_strided_slice %121 {offsets = [0, 128], sizes = [48, 128], strides = [1, 1]} : vector<48x256xbf16> to vector<48x128xbf16>
    %cst_66 = arith.constant dense<0.000000e+00> : vector<32x48xf32>
    %142 = tpu.matmul %140, %141, %cst_66 {dimension_numbers = #tpu.dot_dimension_numbers<[1], [1], [0], [0], [0, 0, 1, 0], [], []>} : vector<32x128xbf16>, vector<48x128xbf16>, vector<32x48xf32> -> vector<32x48xf32>
    %cst_67 = arith.constant 0.0883883461 : f32
    %143 = vector.broadcast %cst_67 : f32 to vector<32x48xf32>
    %144 = arith.mulf %142, %143 : vector<32x48xf32>
    %cst_68 = arith.constant dense<0xFF800000> : vector<32xf32>
    %145 = vector.multi_reduction <maximumf>, %144, %cst_68 [1] : vector<32x48xf32> to vector<32xf32>
    %146 = vector.shape_cast %145 : vector<32xf32> to vector<32x1xf32>
    %147 = vector.broadcast %146 : vector<32x1xf32> to vector<32x48xf32>
    %148 = arith.subf %144, %147 : vector<32x48xf32>
    %149 = math.exp %148 : vector<32x48xf32>
    %cst_69 = arith.constant dense<0.000000e+00> : vector<32xf32>
    %150 = vector.multi_reduction <add>, %149, %cst_69 [1] : vector<32x48xf32> to vector<32xf32>
    %151 = vector.shape_cast %150 : vector<32xf32> to vector<32x1xf32>
    %152 = vector.broadcast %151 : vector<32x1xf32> to vector<32x48xf32>
    %153 = arith.divf %149, %152 : vector<32x48xf32>
    %154 = arith.truncf %153 : vector<32x48xf32> to vector<32x48xbf16>
    %155 = vector.extract_strided_slice %122 {offsets = [0, 128], sizes = [48, 128], strides = [1, 1]} : vector<48x256xbf16> to vector<48x128xbf16>
    %cst_70 = arith.constant dense<0.000000e+00> : vector<32x128xf32>
    %156 = tpu.matmul %154, %155, %cst_70 {dimension_numbers = #tpu.dot_dimension_numbers<[1], [0], [0], [1], [0, 0, 1, 1], [], []>} : vector<32x48xbf16>, vector<48x128xbf16>, vector<32x128xf32> -> vector<32x128xf32>
    %157 = tpu.concatenate %139, %156 in 1 : vector<32x128xf32>, vector<32x128xf32> -> vector<32x256xf32>
    %158 = arith.truncf %157 : vector<32x256xf32> to vector<32x256xbf16>
    %cst_71 = arith.constant dense<0.000000e+00> : vector<32x256xf32>
    %159 = tpu.matmul %158, %117, %cst_71 {dimension_numbers = #tpu.dot_dimension_numbers<[1], [0], [0], [1], [0, 0, 1, 1], [], []>} : vector<32x256xbf16>, vector<256x256xbf16>, vector<32x256xf32> -> vector<32x256xf32>
    %160 = vector.broadcast %119 : vector<1x256xf32> to vector<32x256xf32>
    %161 = arith.addf %159, %160 : vector<32x256xf32>
    %162 = arith.addf %95, %161 : vector<32x256xf32>
    %c0_72 = arith.constant 0 : index
    %c0_73 = arith.constant 0 : index
    %c0_74 = arith.constant 0 : index
    %163 = vector.load %arg16[%c0_72, %c0_73, %c0_74] : memref<1x1x256xf32, #tpu.memory_space<vmem>>, vector<1x1x256xf32>
    %164 = vector.shape_cast %163 : vector<1x1x256xf32> to vector<1x256xf32>
    %c0_75 = arith.constant 0 : index
    %c0_76 = arith.constant 0 : index
    %c0_77 = arith.constant 0 : index
    %165 = vector.load %arg17[%c0_75, %c0_76, %c0_77] : memref<1x1x256xf32, #tpu.memory_space<vmem>>, vector<1x1x256xf32>
    %166 = vector.shape_cast %165 : vector<1x1x256xf32> to vector<1x256xf32>
    %cst_78 = arith.constant dense<0.000000e+00> : vector<32xf32>
    %167 = vector.multi_reduction <add>, %162, %cst_78 [1] : vector<32x256xf32> to vector<32xf32>
    %168 = vector.shape_cast %167 : vector<32xf32> to vector<32x1xf32>
    %cst_79 = arith.constant 2.560000e+02 : f32
    %169 = vector.broadcast %cst_79 : f32 to vector<32x1xf32>
    %170 = arith.divf %168, %169 : vector<32x1xf32>
    %171 = vector.broadcast %170 : vector<32x1xf32> to vector<32x256xf32>
    %172 = arith.subf %162, %171 : vector<32x256xf32>
    %173 = arith.mulf %172, %172 : vector<32x256xf32>
    %cst_80 = arith.constant dense<0.000000e+00> : vector<32xf32>
    %174 = vector.multi_reduction <add>, %173, %cst_80 [1] : vector<32x256xf32> to vector<32xf32>
    %175 = vector.shape_cast %174 : vector<32xf32> to vector<32x1xf32>
    %cst_81 = arith.constant 2.560000e+02 : f32
    %176 = vector.broadcast %cst_81 : f32 to vector<32x1xf32>
    %177 = arith.divf %175, %176 : vector<32x1xf32>
    %178 = vector.broadcast %170 : vector<32x1xf32> to vector<32x256xf32>
    %179 = arith.subf %162, %178 : vector<32x256xf32>
    %cst_82 = arith.constant 9.99999974E-6 : f32
    %180 = vector.broadcast %cst_82 : f32 to vector<32x1xf32>
    %181 = arith.addf %177, %180 : vector<32x1xf32>
    %182 = math.rsqrt %181 : vector<32x1xf32>
    %183 = vector.broadcast %182 : vector<32x1xf32> to vector<32x256xf32>
    %184 = arith.mulf %179, %183 : vector<32x256xf32>
    %185 = vector.broadcast %164 : vector<1x256xf32> to vector<32x256xf32>
    %186 = arith.mulf %184, %185 : vector<32x256xf32>
    %187 = vector.broadcast %166 : vector<1x256xf32> to vector<32x256xf32>
    %188 = arith.addf %186, %187 : vector<32x256xf32>
    %189 = arith.truncf %188 : vector<32x256xf32> to vector<32x256xbf16>
    %c0_83 = arith.constant 0 : index
    %c0_84 = arith.constant 0 : index
    %c0_85 = arith.constant 0 : index
    %190 = vector.load %arg18[%c0_83, %c0_84, %c0_85] : memref<1x256x512xbf16, #tpu.memory_space<vmem>>, vector<1x256x512xbf16>
    %191 = vector.shape_cast %190 : vector<1x256x512xbf16> to vector<256x512xbf16>
    %cst_86 = arith.constant dense<0.000000e+00> : vector<32x512xf32>
    %192 = tpu.matmul %189, %191, %cst_86 {dimension_numbers = #tpu.dot_dimension_numbers<[1], [0], [0], [1], [0, 0, 1, 1], [], []>} : vector<32x256xbf16>, vector<256x512xbf16>, vector<32x512xf32> -> vector<32x512xf32>
    %c0_87 = arith.constant 0 : index
    %c0_88 = arith.constant 0 : index
    %c0_89 = arith.constant 0 : index
    %193 = vector.load %arg19[%c0_87, %c0_88, %c0_89] : memref<1x1x512xf32, #tpu.memory_space<vmem>>, vector<1x1x512xf32>
    %194 = vector.shape_cast %193 : vector<1x1x512xf32> to vector<1x512xf32>
    %195 = vector.broadcast %194 : vector<1x512xf32> to vector<32x512xf32>
    %196 = arith.addf %192, %195 : vector<32x512xf32>
    %cst_90 = arith.constant 0.000000e+00 : f32
    %197 = vector.broadcast %cst_90 : f32 to vector<32x512xf32>
    %198 = arith.maximumf %196, %197 : vector<32x512xf32>
    %199 = arith.truncf %198 : vector<32x512xf32> to vector<32x512xbf16>
    %c0_91 = arith.constant 0 : index
    %c0_92 = arith.constant 0 : index
    %c0_93 = arith.constant 0 : index
    %200 = vector.load %arg20[%c0_91, %c0_92, %c0_93] : memref<1x512x256xbf16, #tpu.memory_space<vmem>>, vector<1x512x256xbf16>
    %201 = vector.shape_cast %200 : vector<1x512x256xbf16> to vector<512x256xbf16>
    %cst_94 = arith.constant dense<0.000000e+00> : vector<32x256xf32>
    %202 = tpu.matmul %199, %201, %cst_94 {dimension_numbers = #tpu.dot_dimension_numbers<[1], [0], [0], [1], [0, 0, 1, 1], [], []>} : vector<32x512xbf16>, vector<512x256xbf16>, vector<32x256xf32> -> vector<32x256xf32>
    %c0_95 = arith.constant 0 : index
    %c0_96 = arith.constant 0 : index
    %c0_97 = arith.constant 0 : index
    %203 = vector.load %arg21[%c0_95, %c0_96, %c0_97] : memref<1x1x256xf32, #tpu.memory_space<vmem>>, vector<1x1x256xf32>
    %204 = vector.shape_cast %203 : vector<1x1x256xf32> to vector<1x256xf32>
    %205 = vector.broadcast %204 : vector<1x256xf32> to vector<32x256xf32>
    %206 = arith.addf %202, %205 : vector<32x256xf32>
    %207 = arith.addf %188, %206 : vector<32x256xf32>
    %c0_98 = arith.constant 0 : index
    %c0_99 = arith.constant 0 : index
    %c0_100 = arith.constant 0 : index
    %208 = vector.load %arg22[%c0_98, %c0_99, %c0_100] : memref<1x1x256xf32, #tpu.memory_space<vmem>>, vector<1x1x256xf32>
    %209 = vector.shape_cast %208 : vector<1x1x256xf32> to vector<1x256xf32>
    %c0_101 = arith.constant 0 : index
    %c0_102 = arith.constant 0 : index
    %c0_103 = arith.constant 0 : index
    %210 = vector.load %arg23[%c0_101, %c0_102, %c0_103] : memref<1x1x256xf32, #tpu.memory_space<vmem>>, vector<1x1x256xf32>
    %211 = vector.shape_cast %210 : vector<1x1x256xf32> to vector<1x256xf32>
    %cst_104 = arith.constant dense<0.000000e+00> : vector<32xf32>
    %212 = vector.multi_reduction <add>, %207, %cst_104 [1] : vector<32x256xf32> to vector<32xf32>
    %213 = vector.shape_cast %212 : vector<32xf32> to vector<32x1xf32>
    %cst_105 = arith.constant 2.560000e+02 : f32
    %214 = vector.broadcast %cst_105 : f32 to vector<32x1xf32>
    %215 = arith.divf %213, %214 : vector<32x1xf32>
    %216 = vector.broadcast %215 : vector<32x1xf32> to vector<32x256xf32>
    %217 = arith.subf %207, %216 : vector<32x256xf32>
    %218 = arith.mulf %217, %217 : vector<32x256xf32>
    %cst_106 = arith.constant dense<0.000000e+00> : vector<32xf32>
    %219 = vector.multi_reduction <add>, %218, %cst_106 [1] : vector<32x256xf32> to vector<32xf32>
    %220 = vector.shape_cast %219 : vector<32xf32> to vector<32x1xf32>
    %cst_107 = arith.constant 2.560000e+02 : f32
    %221 = vector.broadcast %cst_107 : f32 to vector<32x1xf32>
    %222 = arith.divf %220, %221 : vector<32x1xf32>
    %223 = vector.broadcast %215 : vector<32x1xf32> to vector<32x256xf32>
    %224 = arith.subf %207, %223 : vector<32x256xf32>
    %cst_108 = arith.constant 9.99999974E-6 : f32
    %225 = vector.broadcast %cst_108 : f32 to vector<32x1xf32>
    %226 = arith.addf %222, %225 : vector<32x1xf32>
    %227 = math.rsqrt %226 : vector<32x1xf32>
    %228 = vector.broadcast %227 : vector<32x1xf32> to vector<32x256xf32>
    %229 = arith.mulf %224, %228 : vector<32x256xf32>
    %230 = vector.broadcast %209 : vector<1x256xf32> to vector<32x256xf32>
    %231 = arith.mulf %229, %230 : vector<32x256xf32>
    %232 = vector.broadcast %211 : vector<1x256xf32> to vector<32x256xf32>
    %233 = arith.addf %231, %232 : vector<32x256xf32>
    %c0_109 = arith.constant 0 : index
    %c0_110 = arith.constant 0 : index
    %234 = vector.load %arg25[%c0_109, %c0_110] : memref<32x256xf32, #tpu.memory_space<vmem>>, vector<32x256xf32>
    tpu.vector_store %arg25[%c0_109, %c0_110], %233 {strides = array<i32>} : memref<32x256xf32, #tpu.memory_space<vmem>>, vector<32x256xf32>,
    %c0_111 = arith.constant 0 : index
    %c0_112 = arith.constant 0 : index
    %c0_113 = arith.constant 0 : index
    %235 = vector.load %arg24[%c0_111, %c0_112, %c0_113] : memref<1x32x256xf32, #tpu.memory_space<vmem>>, vector<1x32x256xf32>
    %236 = vector.shape_cast %235 : vector<1x32x256xf32> to vector<32x256xf32>
    %237 = vector.shape_cast %233 : vector<32x256xf32> to vector<1x32x256xf32>
    tpu.vector_store %arg24[%c0_111, %c0_112, %c0_113], %237 {strides = array<i32>} : memref<1x32x256xf32, #tpu.memory_space<vmem>>, vector<1x32x256xf32>,
    return
  }
  func.func @transform_0(%arg0: i32, %arg1: i32) -> (i32, i32, i32) {
    %c0_i32 = arith.constant 0 : i32
    %c0_i32_0 = arith.constant 0 : i32
    %c0_i32_1 = arith.constant 0 : i32
    return %arg0, %c0_i32, %c0_i32_0 : i32, i32, i32
  }
  func.func @transform_1(%arg0: i32, %arg1: i32) -> (i32, i32, i32) {
    %c0_i32 = arith.constant 0 : i32
    %c0_i32_0 = arith.constant 0 : i32
    %c0_i32_1 = arith.constant 0 : i32
    return %arg0, %c0_i32, %c0_i32_0 : i32, i32, i32
  }
  func.func @transform_2(%arg0: i32, %arg1: i32) -> (i32, i32, i32) {
    %c0_i32 = arith.constant 0 : i32
    %c0_i32_0 = arith.constant 0 : i32
    %c0_i32_1 = arith.constant 0 : i32
    return %arg1, %c0_i32, %c0_i32_0 : i32, i32, i32
  }
  func.func @transform_3(%arg0: i32, %arg1: i32) -> (i32, i32, i32) {
    %c0_i32 = arith.constant 0 : i32
    %c0_i32_0 = arith.constant 0 : i32
    %c0_i32_1 = arith.constant 0 : i32
    return %arg1, %c0_i32, %c0_i32_0 : i32, i32, i32
  }
  func.func @transform_4(%arg0: i32, %arg1: i32) -> (i32, i32, i32) {
    %c0_i32 = arith.constant 0 : i32
    %c0_i32_0 = arith.constant 0 : i32
    %c0_i32_1 = arith.constant 0 : i32
    return %arg1, %c0_i32, %c0_i32_0 : i32, i32, i32
  }
  func.func @transform_5(%arg0: i32, %arg1: i32) -> (i32, i32, i32) {
    %c0_i32 = arith.constant 0 : i32
    %c0_i32_0 = arith.constant 0 : i32
    %c0_i32_1 = arith.constant 0 : i32
    return %arg1, %c0_i32, %c0_i32_0 : i32, i32, i32
  }
  func.func @transform_6(%arg0: i32, %arg1: i32) -> (i32, i32, i32) {
    %c0_i32 = arith.constant 0 : i32
    %c0_i32_0 = arith.constant 0 : i32
    %c0_i32_1 = arith.constant 0 : i32
    return %arg1, %c0_i32, %c0_i32_0 : i32, i32, i32
  }
  func.func @transform_7(%arg0: i32, %arg1: i32) -> (i32, i32, i32) {
    %c0_i32 = arith.constant 0 : i32
    %c0_i32_0 = arith.constant 0 : i32
    %c0_i32_1 = arith.constant 0 : i32
    return %arg1, %c0_i32, %c0_i32_0 : i32, i32, i32
  }
  func.func @transform_8(%arg0: i32, %arg1: i32) -> (i32, i32, i32) {
    %c0_i32 = arith.constant 0 : i32
    %c0_i32_0 = arith.constant 0 : i32
    %c0_i32_1 = arith.constant 0 : i32
    return %arg1, %c0_i32, %c0_i32_0 : i32, i32, i32
  }
  func.func @transform_9(%arg0: i32, %arg1: i32) -> (i32, i32, i32) {
    %c0_i32 = arith.constant 0 : i32
    %c0_i32_0 = arith.constant 0 : i32
    %c0_i32_1 = arith.constant 0 : i32
    return %arg1, %c0_i32, %c0_i32_0 : i32, i32, i32
  }
  func.func @transform_10(%arg0: i32, %arg1: i32) -> (i32, i32, i32) {
    %c0_i32 = arith.constant 0 : i32
    %c0_i32_0 = arith.constant 0 : i32
    %c0_i32_1 = arith.constant 0 : i32
    return %arg1, %c0_i32, %c0_i32_0 : i32, i32, i32
  }
  func.func @transform_11(%arg0: i32, %arg1: i32) -> (i32, i32, i32) {
    %c0_i32 = arith.constant 0 : i32
    %c0_i32_0 = arith.constant 0 : i32
    %c0_i32_1 = arith.constant 0 : i32
    return %arg1, %c0_i32, %c0_i32_0 : i32, i32, i32
  }
  func.func @transform_12(%arg0: i32, %arg1: i32) -> (i32, i32, i32) {
    %c0_i32 = arith.constant 0 : i32
    %c0_i32_0 = arith.constant 0 : i32
    %c0_i32_1 = arith.constant 0 : i32
    return %arg1, %c0_i32, %c0_i32_0 : i32, i32, i32
  }
  func.func @transform_13(%arg0: i32, %arg1: i32) -> (i32, i32, i32) {
    %c0_i32 = arith.constant 0 : i32
    %c0_i32_0 = arith.constant 0 : i32
    %c0_i32_1 = arith.constant 0 : i32
    return %arg1, %c0_i32, %c0_i32_0 : i32, i32, i32
  }
  func.func @transform_14(%arg0: i32, %arg1: i32) -> (i32, i32, i32) {
    %c0_i32 = arith.constant 0 : i32
    %c0_i32_0 = arith.constant 0 : i32
    %c0_i32_1 = arith.constant 0 : i32
    return %arg1, %c0_i32, %c0_i32_0 : i32, i32, i32
  }
  func.func @transform_15(%arg0: i32, %arg1: i32) -> (i32, i32, i32) {
    %c0_i32 = arith.constant 0 : i32
    %c0_i32_0 = arith.constant 0 : i32
    %c0_i32_1 = arith.constant 0 : i32
    return %arg1, %c0_i32, %c0_i32_0 : i32, i32, i32
  }
  func.func @transform_16(%arg0: i32, %arg1: i32) -> (i32, i32, i32) {
    %c0_i32 = arith.constant 0 : i32
    %c0_i32_0 = arith.constant 0 : i32
    %c0_i32_1 = arith.constant 0 : i32
    return %arg1, %c0_i32, %c0_i32_0 : i32, i32, i32
  }
  func.func @transform_17(%arg0: i32, %arg1: i32) -> (i32, i32, i32) {
    %c0_i32 = arith.constant 0 : i32
    %c0_i32_0 = arith.constant 0 : i32
    %c0_i32_1 = arith.constant 0 : i32
    return %arg1, %c0_i32, %c0_i32_0 : i32, i32, i32
  }
  func.func @transform_18(%arg0: i32, %arg1: i32) -> (i32, i32, i32) {
    %c0_i32 = arith.constant 0 : i32
    %c0_i32_0 = arith.constant 0 : i32
    %c0_i32_1 = arith.constant 0 : i32
    return %arg1, %c0_i32, %c0_i32_0 : i32, i32, i32
  }
  func.func @transform_19(%arg0: i32, %arg1: i32) -> (i32, i32, i32) {
    %c0_i32 = arith.constant 0 : i32
    %c0_i32_0 = arith.constant 0 : i32
    %c0_i32_1 = arith.constant 0 : i32
    return %arg1, %c0_i32, %c0_i32_0 : i32, i32, i32
  }
  func.func @transform_20(%arg0: i32, %arg1: i32) -> (i32, i32, i32) {
    %c0_i32 = arith.constant 0 : i32
    %c0_i32_0 = arith.constant 0 : i32
    %c0_i32_1 = arith.constant 0 : i32
    return %arg1, %c0_i32, %c0_i32_0 : i32, i32, i32
  }
  func.func @transform_21(%arg0: i32, %arg1: i32) -> (i32, i32, i32) {
    %c0_i32 = arith.constant 0 : i32
    %c0_i32_0 = arith.constant 0 : i32
    %c0_i32_1 = arith.constant 0 : i32
    return %arg1, %c0_i32, %c0_i32_0 : i32, i32, i32
  }
  func.func @transform_22(%arg0: i32, %arg1: i32) -> (i32, i32, i32) {
    %c0_i32 = arith.constant 0 : i32
    %c0_i32_0 = arith.constant 0 : i32
    %c0_i32_1 = arith.constant 0 : i32
    return %arg0, %c0_i32, %c0_i32_0 : i32, i32, i32
  }
}

</mosaic_0001>

<llo_original>
// kernel: encoder_forward.1
$region0: #{encoder_forward.1}
  #allocation0 [shape = 'u32[]', space=smem, size = 0x4, offset = 0x4, fixed_abs, tag = 'smem constant byte address 0x4 - core index']
  #allocation1 [shape = 'u32[72,128]{1,0:T(1,128)}', space=vmem, size = 0x9000, scoped, tag = 'internal scratch']
  #allocation2 [shape = 'f32[32,256]{1,0:T(8,128)}', space=vmem, size = 0x8000, scoped, tag = 'scratch operand']
  %s0 = inlined_call_operand.hbm [shape: f32[2,32,256], index: 0, kind: input, shape index: {}]
  %s1 = inlined_call_operand.hbm [shape: f32[2,48,256], index: 1, kind: input, shape index: {}]
  %s2 = inlined_call_operand.hbm [shape: bf16[2,256,768], index: 2, kind: input, shape index: {}]
  %s3 = inlined_call_operand.hbm [shape: f32[2,1,768], index: 3, kind: input, shape index: {}]
  %s4 = inlined_call_operand.hbm [shape: bf16[2,256,256], index: 4, kind: input, shape index: {}]
  %s5 = inlined_call_operand.hbm [shape: f32[2,1,256], index: 5, kind: input, shape index: {}]
  %s6 = inlined_call_operand.vmem [shape: f32[2,1,256], index: 6, kind: input, shape index: {}]
  %s7 = inlined_call_operand.hbm [shape: f32[2,1,256], index: 7, kind: input, shape index: {}]
  %s8 = inlined_call_operand.hbm [shape: bf16[2,256,256], index: 8, kind: input, shape index: {}]
  %s9 = inlined_call_operand.hbm [shape: f32[2,1,256], index: 9, kind: input, shape index: {}]
  %s10 = inlined_call_operand.hbm [shape: bf16[2,256,512], index: 10, kind: input, shape index: {}]
  %s11 = inlined_call_operand.hbm [shape: f32[2,1,512], index: 11, kind: input, shape index: {}]
  %s12 = inlined_call_operand.hbm [shape: bf16[2,256,256], index: 12, kind: input, shape index: {}]
  %s13 = inlined_call_operand.hbm [shape: f32[2,1,256], index: 13, kind: input, shape index: {}]
  %s14 = inlined_call_operand.vmem [shape: f32[2,1,256], index: 14, kind: input, shape index: {}]
  %s15 = inlined_call_operand.hbm [shape: f32[2,1,256], index: 15, kind: input, shape index: {}]
  %s16 = inlined_call_operand.hbm [shape: bf16[2,256,512], index: 16, kind: input, shape index: {}]
  %s17 = inlined_call_operand.hbm [shape: f32[2,1,512], index: 17, kind: input, shape index: {}]
  %s18 = inlined_call_operand.hbm [shape: bf16[2,512,256], index: 18, kind: input, shape index: {}]
  %s19 = inlined_call_operand.hbm [shape: f32[2,1,256], index: 19, kind: input, shape index: {}]
  %s20 = inlined_call_operand.hbm [shape: f32[2,1,256], index: 20, kind: input, shape index: {}]
  %s21 = inlined_call_operand.hbm [shape: f32[2,1,256], index: 21, kind: input, shape index: {}]
  %s22 = inlined_call_operand.hbm [shape: f32[2,32,256], index: 22, kind: output, shape index: {}]
  %s23 = sld [smem:[#allocation0]]
  $region205: #{encoder_forward.1} parent=0
    _
  %s25 = ssub.s32 1, %s23
  %s26 = scalar_select 0, %s25, %s23
  $region1: #{encoder_forward.1} parent=0
    #allocation3 [shape = 'u8[65536]{0}', space=vmem, size = 0x10000, scoped, tag = 'input window, operand 0']
    #allocation4 [shape = 's32[2]{0}', space=sflag, size = 0x8, scoped, tag = 'scoped memory for encoder_forward.1']
    #allocation5 [shape = 's32[2]{0}', space=sflag, size = 0x8, scoped, tag = 'scoped memory for encoder_forward.1']
    #allocation6 [shape = 'u8[98304]{0}', space=vmem, size = 0x18000, scoped, tag = 'input window, operand 1']
    #allocation7 [shape = 's32[2]{0}', space=sflag, size = 0x8, scoped, tag = 'scoped memory for encoder_forward.1']
    #allocation8 [shape = 'u8[786432]{0}', space=vmem, size = 0xc0000, scoped, tag = 'input window, operand 2']
    #allocation9 [shape = 'u8[6144]{0}', space=vmem, size = 0x1800, scoped, tag = 'input window, operand 3']
    #allocation10 [shape = 's32[2]{0}', space=sflag, size = 0x8, scoped, tag = 'scoped memory for encoder_forward.1']
    #allocation11 [shape = 'u8[262144]{0}', space=vmem, size = 0x40000, scoped, tag = 'input window, operand 4']
    #allocation12 [shape = 'u8[2048]{0}', space=vmem, size = 0x800, scoped, tag = 'input window, operand 5']
    #allocation13 [shape = 's32[2]{0}', space=sflag, size = 0x8, scoped, tag = 'scoped memory for encoder_forward.1']
    #allocation14 [shape = 'u8[2048]{0}', space=vmem, size = 0x800, scoped, tag = 'input window, operand 7']
    #allocation15 [shape = 'u8[262144]{0}', space=vmem, size = 0x40000, scoped, tag = 'input window, operand 8']
    #allocation16 [shape = 's32[2]{0}', space=sflag, size = 0x8, scoped, tag = 'scoped memory for encoder_forward.1']
    #allocation17 [shape = 'u8[2048]{0}', space=vmem, size = 0x800, scoped, tag = 'input window, operand 9']
    #allocation18 [shape = 'u8[524288]{0}', space=vmem, size = 0x80000, scoped, tag = 'input window, operand 10']
    #allocation19 [shape = 's32[2]{0}', space=sflag, size = 0x8, scoped, tag = 'scoped memory for encoder_forward.1']
    #allocation20 [shape = 'u8[4096]{0}', space=vmem, size = 0x1000, scoped, tag = 'input window, operand 11']
    #allocation21 [shape = 'u8[262144]{0}', space=vmem, size = 0x40000, scoped, tag = 'input window, operand 12']
    #allocation22 [shape = 's32[2]{0}', space=sflag, size = 0x8, scoped, tag = 'scoped memory for encoder_forward.1']
    #allocation23 [shape = 'u8[2048]{0}', space=vmem, size = 0x800, scoped, tag = 'input window, operand 13']
    #allocation24 [shape = 'u8[2048]{0}', space=vmem, size = 0x800, scoped, tag = 'input window, operand 15']
    #allocation25 [shape = 's32[2]{0}', space=sflag, size = 0x8, scoped, tag = 'scoped memory for encoder_forward.1']
    #allocation26 [shape = 'u8[524288]{0}', space=vmem, size = 0x80000, scoped, tag = 'input window, operand 16']
    #allocation27 [shape = 'u8[4096]{0}', space=vmem, size = 0x1000, scoped, tag = 'input window, operand 17']
    #allocation28 [shape = 's32[2]{0}', space=sflag, size = 0x8, scoped, tag = 'scoped memory for encoder_forward.1']
    #allocation29 [shape = 'u8[524288]{0}', space=vmem, size = 0x80000, scoped, tag = 'input window, operand 18']
    #allocation30 [shape = 'u8[2048]{0}', space=vmem, size = 0x800, scoped, tag = 'input window, operand 19']
    #allocation31 [shape = 's32[2]{0}', space=sflag, size = 0x8, scoped, tag = 'scoped memory for encoder_forward.1']
    #allocation32 [shape = 'u8[2048]{0}', space=vmem, size = 0x800, scoped, tag = 'input window, operand 20']
    #allocation33 [shape = 'u8[2048]{0}', space=vmem, size = 0x800, scoped, tag = 'input window, operand 21']
    #allocation34 [shape = 's32[2]{0}', space=sflag, size = 0x8, scoped, tag = 'scoped memory for encoder_forward.1']
    #allocation35 [shape = 'u8[65536]{0}', space=vmem, size = 0x10000, scoped, tag = 'output window, operand 0']
    %27 = vsyncpa [#allocation4], 0
    %s28 = scalar_lea.sflag [#allocation4], 1
    %29 = vsyncpa %s28, 0
    %30 = vsyncpa [#allocation7], 0
    %s31 = scalar_lea.sflag [#allocation7], 1
    %32 = vsyncpa %s31, 0
    %33 = vsyncpa [#allocation10], 0
    %s34 = scalar_lea.sflag [#allocation10], 1
    %35 = vsyncpa %s34, 0
    %36 = vsyncpa [#allocation13], 0
    %s37 = scalar_lea.sflag [#allocation13], 1
    %38 = vsyncpa %s37, 0
    %39 = vsyncpa [#allocation16], 0
    %s40 = scalar_lea.sflag [#allocation16], 1
    %41 = vsyncpa %s40, 0
    %42 = vsyncpa [#allocation19], 0
    %s43 = scalar_lea.sflag [#allocation19], 1
    %44 = vsyncpa %s43, 0
    %45 = vsyncpa [#allocation22], 0
    %s46 = scalar_lea.sflag [#allocation22], 1
    %47 = vsyncpa %s46, 0
    %48 = vsyncpa [#allocation25], 0
    %s49 = scalar_lea.sflag [#allocation25], 1
    %50 = vsyncpa %s49, 0
    %51 = vsyncpa [#allocation28], 0
    %s52 = scalar_lea.sflag [#allocation28], 1
    %53 = vsyncpa %s52, 0
    %54 = vsyncpa [#allocation31], 0
    %s55 = scalar_lea.sflag [#allocation31], 1
    %56 = vsyncpa %s55, 0
    %57 = vsyncpa [#allocation34], 0
    %s58 = scalar_lea.sflag [#allocation34], 1
    %59 = vsyncpa %s58, 0
    %60 = vsyncpa [#allocation5], 0
    %s61 = scalar_lea.sflag [#allocation5], 1
    %62 = vsyncpa %s61, 0
    loop: start=0, step=1, limit=6
    $region2: #{encoder_forward.1} parent=1 // loop_pre_header
      _
    $region3: #{encoder_forward.1} parent=1 // loop_header
      %s64 = sphi 0, %s68
      %p65 = scmp.ge.s32.totalorder %s64, 6
      %s71 = sphi 0, %s83
      %s72 = sphi 0, %s79
      %s73 = sphi 0, %s71
      %s74 = sphi 0, %s72
      %s75 = sphi 0, %s73
      %s76 = sphi 0, %s74
      %s86 = sphi 0, %s88
      %s89 = sphi 0, %s86
      %s90 = sphi 0, %s89
      %s106 = sphi 0, %s90
      %s112 = sphi 0, %s114
      %s115 = sphi 0, %s112
      %s116 = sphi 0, %s115
      %s132 = sphi 0, %s116
      %s138 = sphi 0, %s140
      %s141 = sphi 0, %s138
      %s142 = sphi 0, %s141
      %s158 = sphi 0, %s142
      %s164 = sphi 0, %s166
      %s167 = sphi 0, %s164
      %s168 = sphi 0, %s167
      %s184 = sphi 0, %s168
      %s190 = sphi 0, %s192
      %s193 = sphi 0, %s190
      %s194 = sphi 0, %s193
      %s210 = sphi 0, %s194
      %s216 = sphi 0, %s218
      %s219 = sphi 0, %s216
      %s220 = sphi 0, %s219
      %s236 = sphi 0, %s220
      %s242 = sphi 0, %s244
      %s245 = sphi 0, %s242
      %s246 = sphi 0, %s245
      %s262 = sphi 0, %s246
      %s268 = sphi 0, %s270
      %s271 = sphi 0, %s268
      %s272 = sphi 0, %s271
      %s288 = sphi 0, %s272
      %s294 = sphi 0, %s296
      %s297 = sphi 0, %s294
      %s298 = sphi 0, %s297
      %s314 = sphi 0, %s298
      %s320 = sphi 0, %s322
      %s323 = sphi 0, %s320
      %s324 = sphi 0, %s323
      %s340 = sphi 0, %s324
      %s346 = sphi 0, %s348
      %s349 = sphi 0, %s346
      %s350 = sphi 0, %s349
      %s366 = sphi 0, %s350
      %s372 = sphi 0, %s374
      %s375 = sphi 0, %s372
      %s376 = sphi 0, %s375
      %s392 = sphi 0, %s376
      %s398 = sphi 0, %s400
      %s401 = sphi 0, %s398
      %s402 = sphi 0, %s401
      %s418 = sphi 0, %s402
      %s424 = sphi 0, %s426
      %s427 = sphi 0, %s424
      %s428 = sphi 0, %s427
      %s444 = sphi 0, %s428
      %s450 = sphi 0, %s452
      %s453 = sphi 0, %s450
      %s454 = sphi 0, %s453
      %s470 = sphi 0, %s454
      %s476 = sphi 0, %s478
      %s479 = sphi 0, %s476
      %s480 = sphi 0, %s479
      %s496 = sphi 0, %s480
      %s502 = sphi 0, %s504
      %s505 = sphi 0, %s502
      %s506 = sphi 0, %s505
      %s522 = sphi 0, %s506
      %s528 = sphi 0, %s530
      %s531 = sphi 0, %s528
      %s532 = sphi 0, %s531
      %s548 = sphi 0, %s532
      %s554 = sphi 0, %s556
      %s557 = sphi 0, %s554
      %s558 = sphi 0, %s557
      %s574 = sphi 0, %s558
      %s580 = sphi 0, %s582
      %s583 = sphi 0, %s580
      %s584 = sphi 0, %s583
      %s600 = sphi 0, %s584
      %s606 = sphi 0, %s608
      %s609 = sphi 0, %s606
      %s610 = sphi 0, %s609
      %s626 = sphi 0, %s610
      %s632 = sphi 0, %s634
      %s635 = sphi 0, %s632
      %s636 = sphi 0, %s635
      %s652 = sphi 0, %s636
      %s658 = sphi 0, %s660
      %s661 = sphi 0, %s658
      %s662 = sphi 0, %s661
      %s678 = sphi 0, %s662
    $region4: #{encoder_forward.1} parent=1 // loop_header_branch
      %67 = sbr.rel (%p65) target = $region8
    $region5: #{encoder_forward.1} parent=1 // loop_body
      %s69 = ssub.s32 %s64, 1
      %s70 = ssub.s32 %s64, 2
      %s77 = sadd.s32 1, %s72
      %p78 = scmp.ge.s32.totalorder %s77, 2
      %s79 = scalar_select %p78, 0, %s77
      %s80 = sadd.s32 1, %s71
      %s81 = scalar_select %p78, %s80, %s71
      %p82 = scmp.ge.s32.totalorder %s81, 2
      %s83 = scalar_select %p82, 0, %s81
      %s84 = ssub.s32 %s71, %s83
      %p85 = scmp.eq.s32.totalorder %s84, 0
      %s87 = sadd.s32 %s86, 1
      %s88 = scalar_select %p85, %s86, %s87
      %p91 = pneg %p85
      %p92 = scmp.eq.s32.totalorder %s64, 3
      %p93 = por %p91, %p92
      %p94 = scmp.ne.s32.totalorder %s86, %s89
      %p95 = scmp.eq.s32.totalorder %s64, 0
      %p96 = por %p94, %p95
      %p97 = scmp.ne.s32.totalorder %s86, %s89
      %p98 = scmp.eq.s32.totalorder %s69, 3
      %p99 = por %p97, %p98
      %p100 = scmp.ne.s32.totalorder %s89, %s90
      %p101 = scmp.eq.s32.totalorder %s69, 0
      %p102 = por %p100, %p101
      %p103 = scmp.ne.s32.totalorder %s89, %s90
      %p104 = scmp.eq.s32.totalorder %s70, 3
      %p105 = por %p103, %p104
      %p107 = scmp.ne.s32.totalorder %s90, %s106
      %p108 = scmp.eq.s32.totalorder %s70, 0
      %p109 = por %p107, %p108
      %s110 = ssub.s32 %s71, %s83
      %p111 = scmp.eq.s32.totalorder %s110, 0
      %s113 = sadd.s32 %s112, 1
      %s114 = scalar_select %p111, %s112, %s113
      %p117 = pneg %p111
      %p118 = scmp.eq.s32.totalorder %s64, 3
      %p119 = por %p117, %p118
      %p120 = scmp.ne.s32.totalorder %s112, %s115
      %p121 = scmp.eq.s32.totalorder %s64, 0
      %p122 = por %p120, %p121
      %p123 = scmp.ne.s32.totalorder %s112, %s115
      %p124 = scmp.eq.s32.totalorder %s69, 3
      %p125 = por %p123, %p124
      %p126 = scmp.ne.s32.totalorder %s115, %s116
      %p127 = scmp.eq.s32.totalorder %s69, 0
      %p128 = por %p126, %p127
      %p129 = scmp.ne.s32.totalorder %s115, %s116
      %p130 = scmp.eq.s32.totalorder %s70, 3
      %p131 = por %p129, %p130
      %p133 = scmp.ne.s32.totalorder %s116, %s132
      %p134 = scmp.eq.s32.totalorder %s70, 0
      %p135 = por %p133, %p134
      %s136 = ssub.s32 %s72, %s79
      %p137 = scmp.eq.s32.totalorder %s136, 0
      %s139 = sadd.s32 %s138, 1
      %s140 = scalar_select %p137, %s138, %s139
      %p143 = pneg %p137
      %p144 = scmp.eq.s32.totalorder %s64, 3
      %p145 = por %p143, %p144
      %p146 = scmp.ne.s32.totalorder %s138, %s141
      %p147 = scmp.eq.s32.totalorder %s64, 0
      %p148 = por %p146, %p147
      %p149 = scmp.ne.s32.totalorder %s138, %s141
      %p150 = scmp.eq.s32.totalorder %s69, 3
      %p151 = por %p149, %p150
      %p152 = scmp.ne.s32.totalorder %s141, %s142
      %p153 = scmp.eq.s32.totalorder %s69, 0
      %p154 = por %p152, %p153
      %p155 = scmp.ne.s32.totalorder %s141, %s142
      %p156 = scmp.eq.s32.totalorder %s70, 3
      %p157 = por %p155, %p156
      %p159 = scmp.ne.s32.totalorder %s142, %s158
      %p160 = scmp.eq.s32.totalorder %s70, 0
      %p161 = por %p159, %p160
      %s162 = ssub.s32 %s72, %s79
      %p163 = scmp.eq.s32.totalorder %s162, 0
      %s165 = sadd.s32 %s164, 1
      %s166 = scalar_select %p163, %s164, %s165
      %p169 = pneg %p163
      %p170 = scmp.eq.s32.totalorder %s64, 3
      %p171 = por %p169, %p170
      %p172 = scmp.ne.s32.totalorder %s164, %s167
      %p173 = scmp.eq.s32.totalorder %s64, 0
      %p174 = por %p172, %p173
      %p175 = scmp.ne.s32.totalorder %s164, %s167
      %p176 = scmp.eq.s32.totalorder %s69, 3
      %p177 = por %p175, %p176
      %p178 = scmp.ne.s32.totalorder %s167, %s168
      %p179 = scmp.eq.s32.totalorder %s69, 0
      %p180 = por %p178, %p179
      %p181 = scmp.ne.s32.totalorder %s167, %s168
      %p182 = scmp.eq.s32.totalorder %s70, 3
      %p183 = por %p181, %p182
      %p185 = scmp.ne.s32.totalorder %s168, %s184
      %p186 = scmp.eq.s32.totalorder %s70, 0
      %p187 = por %p185, %p186
      %s188 = ssub.s32 %s72, %s79
      %p189 = scmp.eq.s32.totalorder %s188, 0
      %s191 = sadd.s32 %s190, 1
      %s192 = scalar_select %p189, %s190, %s191
      %p195 = pneg %p189
      %p196 = scmp.eq.s32.totalorder %s64, 3
      %p197 = por %p195, %p196
      %p198 = scmp.ne.s32.totalorder %s190, %s193
      %p199 = scmp.eq.s32.totalorder %s64, 0
      %p200 = por %p198, %p199
      %p201 = scmp.ne.s32.totalorder %s190, %s193
      %p202 = scmp.eq.s32.totalorder %s69, 3
      %p203 = por %p201, %p202
      %p204 = scmp.ne.s32.totalorder %s193, %s194
      %p205 = scmp.eq.s32.totalorder %s69, 0
      %p206 = por %p204, %p205
      %p207 = scmp.ne.s32.totalorder %s193, %s194
      %p208 = scmp.eq.s32.totalorder %s70, 3
      %p209 = por %p207, %p208
      %p211 = scmp.ne.s32.totalorder %s194, %s210
      %p212 = scmp.eq.s32.totalorder %s70, 0
      %p213 = por %p211, %p212
      %s214 = ssub.s32 %s72, %s79
      %p215 = scmp.eq.s32.totalorder %s214, 0
      %s217 = sadd.s32 %s216, 1
      %s218 = scalar_select %p215, %s216, %s217
      %p221 = pneg %p215
      %p222 = scmp.eq.s32.totalorder %s64, 3
      %p223 = por %p221, %p222
      %p224 = scmp.ne.s32.totalorder %s216, %s219
      %p225 = scmp.eq.s32.totalorder %s64, 0
      %p226 = por %p224, %p225
      %p227 = scmp.ne.s32.totalorder %s216, %s219
      %p228 = scmp.eq.s32.totalorder %s69, 3
      %p229 = por %p227, %p228
      %p230 = scmp.ne.s32.totalorder %s219, %s220
      %p231 = scmp.eq.s32.totalorder %s69, 0
      %p232 = por %p230, %p231
      %p233 = scmp.ne.s32.totalorder %s219, %s220
      %p234 = scmp.eq.s32.totalorder %s70, 3
      %p235 = por %p233, %p234
      %p237 = scmp.ne.s32.totalorder %s220, %s236
      %p238 = scmp.eq.s32.totalorder %s70, 0
      %p239 = por %p237, %p238
      %s240 = ssub.s32 %s72, %s79
      %p241 = scmp.eq.s32.totalorder %s240, 0
      %s243 = sadd.s32 %s242, 1
      %s244 = scalar_select %p241, %s242, %s243
      %p247 = pneg %p241
      %p248 = scmp.eq.s32.totalorder %s64, 3
      %p249 = por %p247, %p248
      %p250 = scmp.ne.s32.totalorder %s242, %s245
      %p251 = scmp.eq.s32.totalorder %s64, 0
      %p252 = por %p250, %p251
      %p253 = scmp.ne.s32.totalorder %s242, %s245
      %p254 = scmp.eq.s32.totalorder %s69, 3
      %p255 = por %p253, %p254
      %p256 = scmp.ne.s32.totalorder %s245, %s246
      %p257 = scmp.eq.s32.totalorder %s69, 0
      %p258 = por %p256, %p257
      %p259 = scmp.ne.s32.totalorder %s245, %s246
      %p260 = scmp.eq.s32.totalorder %s70, 3
      %p261 = por %p259, %p260
      %p263 = scmp.ne.s32.totalorder %s246, %s262
      %p264 = scmp.eq.s32.totalorder %s70, 0
      %p265 = por %p263, %p264
      %s266 = ssub.s32 %s72, %s79
      %p267 = scmp.eq.s32.totalorder %s266, 0
      %s269 = sadd.s32 %s268, 1
      %s270 = scalar_select %p267, %s268, %s269
      %p273 = pneg %p267
      %p274 = scmp.eq.s32.totalorder %s64, 3
      %p275 = por %p273, %p274
      %p276 = scmp.ne.s32.totalorder %s268, %s271
      %p277 = scmp.eq.s32.totalorder %s64, 0
      %p278 = por %p276, %p277
      %p279 = scmp.ne.s32.totalorder %s268, %s271
      %p280 = scmp.eq.s32.totalorder %s69, 3
      %p281 = por %p279, %p280
      %p282 = scmp.ne.s32.totalorder %s271, %s272
      %p283 = scmp.eq.s32.totalorder %s69, 0
      %p284 = por %p282, %p283
      %p285 = scmp.ne.s32.totalorder %s271, %s272
      %p286 = scmp.eq.s32.totalorder %s70, 3
      %p287 = por %p285, %p286
      %p289 = scmp.ne.s32.totalorder %s272, %s288
      %p290 = scmp.eq.s32.totalorder %s70, 0
      %p291 = por %p289, %p290
      %s292 = ssub.s32 %s72, %s79
      %p293 = scmp.eq.s32.totalorder %s292, 0
      %s295 = sadd.s32 %s294, 1
      %s296 = scalar_select %p293, %s294, %s295
      %p299 = pneg %p293
      %p300 = scmp.eq.s32.totalorder %s64, 3
      %p301 = por %p299, %p300
      %p302 = scmp.ne.s32.totalorder %s294, %s297
      %p303 = scmp.eq.s32.totalorder %s64, 0
      %p304 = por %p302, %p303
      %p305 = scmp.ne.s32.totalorder %s294, %s297
      %p306 = scmp.eq.s32.totalorder %s69, 3
      %p307 = por %p305, %p306
      %p308 = scmp.ne.s32.totalorder %s297, %s298
      %p309 = scmp.eq.s32.totalorder %s69, 0
      %p310 = por %p308, %p309
      %p311 = scmp.ne.s32.totalorder %s297, %s298
      %p312 = scmp.eq.s32.totalorder %s70, 3
      %p313 = por %p311, %p312
      %p315 = scmp.ne.s32.totalorder %s298, %s314
      %p316 = scmp.eq.s32.totalorder %s70, 0
      %p317 = por %p315, %p316
      %s318 = ssub.s32 %s72, %s79
      %p319 = scmp.eq.s32.totalorder %s318, 0
      %s321 = sadd.s32 %s320, 1
      %s322 = scalar_select %p319, %s320, %s321
      %p325 = pneg %p319
      %p326 = scmp.eq.s32.totalorder %s64, 3
      %p327 = por %p325, %p326
      %p328 = scmp.ne.s32.totalorder %s320, %s323
      %p329 = scmp.eq.s32.totalorder %s64, 0
      %p330 = por %p328, %p329
      %p331 = scmp.ne.s32.totalorder %s320, %s323
      %p332 = scmp.eq.s32.totalorder %s69, 3
      %p333 = por %p331, %p332
      %p334 = scmp.ne.s32.totalorder %s323, %s324
      %p335 = scmp.eq.s32.totalorder %s69, 0
      %p336 = por %p334, %p335
      %p337 = scmp.ne.s32.totalorder %s323, %s324
      %p338 = scmp.eq.s32.totalorder %s70, 3
      %p339 = por %p337, %p338
      %p341 = scmp.ne.s32.totalorder %s324, %s340
      %p342 = scmp.eq.s32.totalorder %s70, 0
      %p343 = por %p341, %p342
      %s344 = ssub.s32 %s72, %s79
      %p345 = scmp.eq.s32.totalorder %s344, 0
      %s347 = sadd.s32 %s346, 1
      %s348 = scalar_select %p345, %s346, %s347
      %p351 = pneg %p345
      %p352 = scmp.eq.s32.totalorder %s64, 3
      %p353 = por %p351, %p352
      %p354 = scmp.ne.s32.totalorder %s346, %s349
      %p355 = scmp.eq.s32.totalorder %s64, 0
      %p356 = por %p354, %p355
      %p357 = scmp.ne.s32.totalorder %s346, %s349
      %p358 = scmp.eq.s32.totalorder %s69, 3
      %p359 = por %p357, %p358
      %p360 = scmp.ne.s32.totalorder %s349, %s350
      %p361 = scmp.eq.s32.totalorder %s69, 0
      %p362 = por %p360, %p361
      %p363 = scmp.ne.s32.totalorder %s349, %s350
      %p364 = scmp.eq.s32.totalorder %s70, 3
      %p365 = por %p363, %p364
      %p367 = scmp.ne.s32.totalorder %s350, %s366
      %p368 = scmp.eq.s32.totalorder %s70, 0
      %p369 = por %p367, %p368
      %s370 = ssub.s32 %s72, %s79
      %p371 = scmp.eq.s32.totalorder %s370, 0
      %s373 = sadd.s32 %s372, 1
      %s374 = scalar_select %p371, %s372, %s373
      %p377 = pneg %p371
      %p378 = scmp.eq.s32.totalorder %s64, 3
      %p379 = por %p377, %p378
      %p380 = scmp.ne.s32.totalorder %s372, %s375
      %p381 = scmp.eq.s32.totalorder %s64, 0
      %p382 = por %p380, %p381
      %p383 = scmp.ne.s32.totalorder %s372, %s375
      %p384 = scmp.eq.s32.totalorder %s69, 3
      %p385 = por %p383, %p384
      %p386 = scmp.ne.s32.totalorder %s375, %s376
      %p387 = scmp.eq.s32.totalorder %s69, 0
      %p388 = por %p386, %p387
      %p389 = scmp.ne.s32.totalorder %s375, %s376
      %p390 = scmp.eq.s32.totalorder %s70, 3
      %p391 = por %p389, %p390
      %p393 = scmp.ne.s32.totalorder %s376, %s392
      %p394 = scmp.eq.s32.totalorder %s70, 0
      %p395 = por %p393, %p394
      %s396 = ssub.s32 %s72, %s79
      %p397 = scmp.eq.s32.totalorder %s396, 0
      %s399 = sadd.s32 %s398, 1
      %s400 = scalar_select %p397, %s398, %s399
      %p403 = pneg %p397
      %p404 = scmp.eq.s32.totalorder %s64, 3
      %p405 = por %p403, %p404
      %p406 = scmp.ne.s32.totalorder %s398, %s401
      %p407 = scmp.eq.s32.totalorder %s64, 0
      %p408 = por %p406, %p407
      %p409 = scmp.ne.s32.totalorder %s398, %s401
      %p410 = scmp.eq.s32.totalorder %s69, 3
      %p411 = por %p409, %p410
      %p412 = scmp.ne.s32.totalorder %s401, %s402
      %p413 = scmp.eq.s32.totalorder %s69, 0
      %p414 = por %p412, %p413
      %p415 = scmp.ne.s32.totalorder %s401, %s402
      %p416 = scmp.eq.s32.totalorder %s70, 3
      %p417 = por %p415, %p416
      %p419 = scmp.ne.s32.totalorder %s402, %s418
      %p420 = scmp.eq.s32.totalorder %s70, 0
      %p421 = por %p419, %p420
      %s422 = ssub.s32 %s72, %s79
      %p423 = scmp.eq.s32.totalorder %s422, 0
      %s425 = sadd.s32 %s424, 1
      %s426 = scalar_select %p423, %s424, %s425
      %p429 = pneg %p423
      %p430 = scmp.eq.s32.totalorder %s64, 3
      %p431 = por %p429, %p430
      %p432 = scmp.ne.s32.totalorder %s424, %s427
      %p433 = scmp.eq.s32.totalorder %s64, 0
      %p434 = por %p432, %p433
      %p435 = scmp.ne.s32.totalorder %s424, %s427
      %p436 = scmp.eq.s32.totalorder %s69, 3
      %p437 = por %p435, %p436
      %p438 = scmp.ne.s32.totalorder %s427, %s428
      %p439 = scmp.eq.s32.totalorder %s69, 0
      %p440 = por %p438, %p439
      %p441 = scmp.ne.s32.totalorder %s427, %s428
      %p442 = scmp.eq.s32.totalorder %s70, 3
      %p443 = por %p441, %p442
      %p445 = scmp.ne.s32.totalorder %s428, %s444
      %p446 = scmp.eq.s32.totalorder %s70, 0
      %p447 = por %p445, %p446
      %s448 = ssub.s32 %s72, %s79
      %p449 = scmp.eq.s32.totalorder %s448, 0
      %s451 = sadd.s32 %s450, 1
      %s452 = scalar_select %p449, %s450, %s451
      %p455 = pneg %p449
      %p456 = scmp.eq.s32.totalorder %s64, 3
      %p457 = por %p455, %p456
      %p458 = scmp.ne.s32.totalorder %s450, %s453
      %p459 = scmp.eq.s32.totalorder %s64, 0
      %p460 = por %p458, %p459
      %p461 = scmp.ne.s32.totalorder %s450, %s453
      %p462 = scmp.eq.s32.totalorder %s69, 3
      %p463 = por %p461, %p462
      %p464 = scmp.ne.s32.totalorder %s453, %s454
      %p465 = scmp.eq.s32.totalorder %s69, 0
      %p466 = por %p464, %p465
      %p467 = scmp.ne.s32.totalorder %s453, %s454
      %p468 = scmp.eq.s32.totalorder %s70, 3
      %p469 = por %p467, %p468
      %p471 = scmp.ne.s32.totalorder %s454, %s470
      %p472 = scmp.eq.s32.totalorder %s70, 0
      %p473 = por %p471, %p472
      %s474 = ssub.s32 %s72, %s79
      %p475 = scmp.eq.s32.totalorder %s474, 0
      %s477 = sadd.s32 %s476, 1
      %s478 = scalar_select %p475, %s476, %s477
      %p481 = pneg %p475
      %p482 = scmp.eq.s32.totalorder %s64, 3
      %p483 = por %p481, %p482
      %p484 = scmp.ne.s32.totalorder %s476, %s479
      %p485 = scmp.eq.s32.totalorder %s64, 0
      %p486 = por %p484, %p485
      %p487 = scmp.ne.s32.totalorder %s476, %s479
      %p488 = scmp.eq.s32.totalorder %s69, 3
      %p489 = por %p487, %p488
      %p490 = scmp.ne.s32.totalorder %s479, %s480
      %p491 = scmp.eq.s32.totalorder %s69, 0
      %p492 = por %p490, %p491
      %p493 = scmp.ne.s32.totalorder %s479, %s480
      %p494 = scmp.eq.s32.totalorder %s70, 3
      %p495 = por %p493, %p494
      %p497 = scmp.ne.s32.totalorder %s480, %s496
      %p498 = scmp.eq.s32.totalorder %s70, 0
      %p499 = por %p497, %p498
      %s500 = ssub.s32 %s72, %s79
      %p501 = scmp.eq.s32.totalorder %s500, 0
      %s503 = sadd.s32 %s502, 1
      %s504 = scalar_select %p501, %s502, %s503
      %p507 = pneg %p501
      %p508 = scmp.eq.s32.totalorder %s64, 3
      %p509 = por %p507, %p508
      %p510 = scmp.ne.s32.totalorder %s502, %s505
      %p511 = scmp.eq.s32.totalorder %s64, 0
      %p512 = por %p510, %p511
      %p513 = scmp.ne.s32.totalorder %s502, %s505
      %p514 = scmp.eq.s32.totalorder %s69, 3
      %p515 = por %p513, %p514
      %p516 = scmp.ne.s32.totalorder %s505, %s506
      %p517 = scmp.eq.s32.totalorder %s69, 0
      %p518 = por %p516, %p517
      %p519 = scmp.ne.s32.totalorder %s505, %s506
      %p520 = scmp.eq.s32.totalorder %s70, 3
      %p521 = por %p519, %p520
      %p523 = scmp.ne.s32.totalorder %s506, %s522
      %p524 = scmp.eq.s32.totalorder %s70, 0
      %p525 = por %p523, %p524
      %s526 = ssub.s32 %s72, %s79
      %p527 = scmp.eq.s32.totalorder %s526, 0
      %s529 = sadd.s32 %s528, 1
      %s530 = scalar_select %p527, %s528, %s529
      %p533 = pneg %p527
      %p534 = scmp.eq.s32.totalorder %s64, 3
      %p535 = por %p533, %p534
      %p536 = scmp.ne.s32.totalorder %s528, %s531
      %p537 = scmp.eq.s32.totalorder %s64, 0
      %p538 = por %p536, %p537
      %p539 = scmp.ne.s32.totalorder %s528, %s531
      %p540 = scmp.eq.s32.totalorder %s69, 3
      %p541 = por %p539, %p540
      %p542 = scmp.ne.s32.totalorder %s531, %s532
      %p543 = scmp.eq.s32.totalorder %s69, 0
      %p544 = por %p542, %p543
      %p545 = scmp.ne.s32.totalorder %s531, %s532
      %p546 = scmp.eq.s32.totalorder %s70, 3
      %p547 = por %p545, %p546
      %p549 = scmp.ne.s32.totalorder %s532, %s548
      %p550 = scmp.eq.s32.totalorder %s70, 0
      %p551 = por %p549, %p550
      %s552 = ssub.s32 %s72, %s79
      %p553 = scmp.eq.s32.totalorder %s552, 0
      %s555 = sadd.s32 %s554, 1
      %s556 = scalar_select %p553, %s554, %s555
      %p559 = pneg %p553
      %p560 = scmp.eq.s32.totalorder %s64, 3
      %p561 = por %p559, %p560
      %p562 = scmp.ne.s32.totalorder %s554, %s557
      %p563 = scmp.eq.s32.totalorder %s64, 0
      %p564 = por %p562, %p563
      %p565 = scmp.ne.s32.totalorder %s554, %s557
      %p566 = scmp.eq.s32.totalorder %s69, 3
      %p567 = por %p565, %p566
      %p568 = scmp.ne.s32.totalorder %s557, %s558
      %p569 = scmp.eq.s32.totalorder %s69, 0
      %p570 = por %p568, %p569
      %p571 = scmp.ne.s32.totalorder %s557, %s558
      %p572 = scmp.eq.s32.totalorder %s70, 3
      %p573 = por %p571, %p572
      %p575 = scmp.ne.s32.totalorder %s558, %s574
      %p576 = scmp.eq.s32.totalorder %s70, 0
      %p577 = por %p575, %p576
      %s578 = ssub.s32 %s72, %s79
      %p579 = scmp.eq.s32.totalorder %s578, 0
      %s581 = sadd.s32 %s580, 1
      %s582 = scalar_select %p579, %s580, %s581
      %p585 = pneg %p579
      %p586 = scmp.eq.s32.totalorder %s64, 3
      %p587 = por %p585, %p586
      %p588 = scmp.ne.s32.totalorder %s580, %s583
      %p589 = scmp.eq.s32.totalorder %s64, 0
      %p590 = por %p588, %p589
      %p591 = scmp.ne.s32.totalorder %s580, %s583
      %p592 = scmp.eq.s32.totalorder %s69, 3
      %p593 = por %p591, %p592
      %p594 = scmp.ne.s32.totalorder %s583, %s584
      %p595 = scmp.eq.s32.totalorder %s69, 0
      %p596 = por %p594, %p595
      %p597 = scmp.ne.s32.totalorder %s583, %s584
      %p598 = scmp.eq.s32.totalorder %s70, 3
      %p599 = por %p597, %p598
      %p601 = scmp.ne.s32.totalorder %s584, %s600
      %p602 = scmp.eq.s32.totalorder %s70, 0
      %p603 = por %p601, %p602
      %s604 = ssub.s32 %s72, %s79
      %p605 = scmp.eq.s32.totalorder %s604, 0
      %s607 = sadd.s32 %s606, 1
      %s608 = scalar_select %p605, %s606, %s607
      %p611 = pneg %p605
      %p612 = scmp.eq.s32.totalorder %s64, 3
      %p613 = por %p611, %p612
      %p614 = scmp.ne.s32.totalorder %s606, %s609
      %p615 = scmp.eq.s32.totalorder %s64, 0
      %p616 = por %p614, %p615
      %p617 = scmp.ne.s32.totalorder %s606, %s609
      %p618 = scmp.eq.s32.totalorder %s69, 3
      %p619 = por %p617, %p618
      %p620 = scmp.ne.s32.totalorder %s609, %s610
      %p621 = scmp.eq.s32.totalorder %s69, 0
      %p622 = por %p620, %p621
      %p623 = scmp.ne.s32.totalorder %s609, %s610
      %p624 = scmp.eq.s32.totalorder %s70, 3
      %p625 = por %p623, %p624
      %p627 = scmp.ne.s32.totalorder %s610, %s626
      %p628 = scmp.eq.s32.totalorder %s70, 0
      %p629 = por %p627, %p628
      %s630 = ssub.s32 %s72, %s79
      %p631 = scmp.eq.s32.totalorder %s630, 0
      %s633 = sadd.s32 %s632, 1
      %s634 = scalar_select %p631, %s632, %s633
      %p637 = pneg %p631
      %p638 = scmp.eq.s32.totalorder %s64, 3
      %p639 = por %p637, %p638
      %p640 = scmp.ne.s32.totalorder %s632, %s635
      %p641 = scmp.eq.s32.totalorder %s64, 0
      %p642 = por %p640, %p641
      %p643 = scmp.ne.s32.totalorder %s632, %s635
      %p644 = scmp.eq.s32.totalorder %s69, 3
      %p645 = por %p643, %p644
      %p646 = scmp.ne.s32.totalorder %s635, %s636
      %p647 = scmp.eq.s32.totalorder %s69, 0
      %p648 = por %p646, %p647
      %p649 = scmp.ne.s32.totalorder %s635, %s636
      %p650 = scmp.eq.s32.totalorder %s70, 3
      %p651 = por %p649, %p650
      %p653 = scmp.ne.s32.totalorder %s636, %s652
      %p654 = scmp.eq.s32.totalorder %s70, 0
      %p655 = por %p653, %p654
      %s656 = ssub.s32 %s71, %s83
      %p657 = scmp.eq.s32.totalorder %s656, 0
      %s659 = sadd.s32 %s658, 1
      %s660 = scalar_select %p657, %s658, %s659
      %p663 = pneg %p657
      %p664 = scmp.eq.s32.totalorder %s64, 3
      %p665 = por %p663, %p664
      %p666 = scmp.ne.s32.totalorder %s658, %s661
      %p667 = scmp.eq.s32.totalorder %s64, 0
      %p668 = por %p666, %p667
      %p669 = scmp.ne.s32.totalorder %s658, %s661
      %p670 = scmp.eq.s32.totalorder %s69, 3
      %p671 = por %p669, %p670
      %p672 = scmp.ne.s32.totalorder %s661, %s662
      %p673 = scmp.eq.s32.totalorder %s69, 0
      %p674 = por %p672, %p673
      %p675 = scmp.ne.s32.totalorder %s661, %s662
      %p676 = scmp.eq.s32.totalorder %s70, 3
      %p677 = por %p675, %p676
      %p679 = scmp.ne.s32.totalorder %s662, %s678
      %p680 = scmp.eq.s32.totalorder %s70, 0
      %p681 = por %p679, %p680
      %p682 = scmp.le.s32.totalorder 1, %s64
      %p683 = scmp.lt.s32.totalorder %s64, 5
      %p684 = pnand %p682, %p683
      %p685 = pneg %p684
      // Predicated region
      $region9: #{encoder_forward.1} parent=5 // pred_check
        _
      $region10: #{encoder_forward.1} parent=5 // pred_check_branch
        %687 = sbr.rel (%p684) target = $region12
      $region11: #{encoder_forward.1} parent=5 // pred_region
        %s688 = ssub.s32 %s64, 1
      $region12: #{encoder_forward.1} parent=5 // pred_fallthru
        _
      %p689 = scmp.lt.s32.totalorder %s64, 4
      // Predicated region
      $region13: #{encoder_forward.1} parent=5 // pred_check
        %p690 = pneg %p689
      $region14: #{encoder_forward.1} parent=5 // pred_check_branch
        %692 = sbr.rel (%p690) target = $region16
      $region15: #{encoder_forward.1} parent=5 // pred_region
        // Predicated region
        $region17: #{encoder_forward.1} parent=15 // pred_check
          %p693 = pneg %p96
        $region18: #{encoder_forward.1} parent=15 // pred_check_branch
          %695 = sbr.rel (%p693) target = $region20
        $region19: #{encoder_forward.1} parent=15 // pred_region
          %s696 = sand.u32 %s86, 1
          %s697 = scalar_lea.sflag [#allocation4], %s696
          %s698 = sand.u32 %s86, 1
          %s699 = smul.addr %s698, 64
          %s700 = scalar_lea.vmem [#allocation3], %s699
          %702 = vsyncadd %s697, 0
          %s703 = smul.addr %s71, 8
          %s704 = smul.addr %s703, 8
          %s705 = scalar_lea.hbm %s0, %s704
          %s706 = sshll.u32 %s705, 4
          %s707 = int_to_ptr.hbm [resolvable:$true] %s706
          %s708 = sshll.u32 %s700, 4
          %s709 = int_to_ptr.vmem [resolvable:$true] %s708
          %714 = dma.hbm_to_vmem [thread:$0]  %s707, 1024, %s709, %s697, 256, 256, 16
        $region20: #{encoder_forward.1} parent=15 // pred_fallthru
          _
        // Predicated region
        $region21: #{encoder_forward.1} parent=15 // pred_check
          %p715 = pneg %p122
        $region22: #{encoder_forward.1} parent=15 // pred_check_branch
          %717 = sbr.rel (%p715) target = $region24
        $region23: #{encoder_forward.1} parent=15 // pred_region
          %s718 = sand.u32 %s64, 1
          %s719 = scalar_lea.sflag [#allocation7], %s718
          %s720 = sand.u32 %s112, 1
          %s721 = smul.addr %s720, 96
          %s722 = scalar_lea.vmem [#allocation6], %s721
          %724 = vsyncadd %s719, 0
          %s725 = smul.addr %s71, 12
          %s726 = smul.addr %s725, 8
          %s727 = scalar_lea.hbm %s1, %s726
          %s728 = sshll.u32 %s727, 4
          %s729 = int_to_ptr.hbm [resolvable:$true] %s728
          %s730 = sshll.u32 %s722, 4
          %s731 = int_to_ptr.vmem [resolvable:$true] %s730
          %736 = dma.hbm_to_vmem [thread:$0]  %s729, 1536, %s731, %s719, 256, 256, 16
        $region24: #{encoder_forward.1} parent=15 // pred_fallthru
          _
        // Predicated region
        $region25: #{encoder_forward.1} parent=15 // pred_check
          %p737 = pneg %p148
        $region26: #{encoder_forward.1} parent=15 // pred_check_branch
          %739 = sbr.rel (%p737) target = $region28
        $region27: #{encoder_forward.1} parent=15 // pred_region
          %s740 = sand.u32 %s64, 1
          %s741 = scalar_lea.sflag [#allocation7], %s740
          %s742 = sand.u32 %s138, 1
          %s743 = smul.addr %s742, 768
          %s744 = scalar_lea.vmem [#allocation8], %s743
          %746 = vsyncadd %s741, 0
          %s747 = smul.addr %s72, 192
          %s748 = smul.addr %s747, 4
          %s749 = scalar_lea.hbm %s2, %s748
          %s750 = sshll.u32 %s749, 4
          %s751 = int_to_ptr.hbm [resolvable:$true] %s750
          %s752 = sshll.u32 %s744, 4
          %s753 = int_to_ptr.vmem [resolvable:$true] %s752
          %758 = dma.hbm_to_vmem [thread:$0]  %s751, 12288, %s753, %s741, 384, 384, 24
        $region28: #{encoder_forward.1} parent=15 // pred_fallthru
          _
        // Predicated region
        $region29: #{encoder_forward.1} parent=15 // pred_check
          %p759 = pneg %p174
        $region30: #{encoder_forward.1} parent=15 // pred_check_branch
          %761 = sbr.rel (%p759) target = $region32
        $region31: #{encoder_forward.1} parent=15 // pred_region
          %s762 = sand.u32 %s64, 1
          %s763 = scalar_lea.sflag [#allocation10], %s762
          %s764 = sand.u32 %s164, 1
          %s765 = smul.addr %s764, 6
          %s766 = scalar_lea.vmem [#allocation9], %s765
          %768 = vsyncadd %s763, 0
          %s769 = smul.addr %s72, 6
          %s770 = scalar_lea.hbm %s3, %s769
          %s772 = sshll.u32 %s770, 4
          %s773 = int_to_ptr.hbm [resolvable:$true] %s772
          %s774 = sshll.u32 %s766, 4
          %s775 = int_to_ptr.vmem [resolvable:$true] %s774
          %777 = dma.hbm_to_vmem [thread:$0]  %s773, 96, %s775, %s763
        $region32: #{encoder_forward.1} parent=15 // pred_fallthru
          _
        // Predicated region
        $region33: #{encoder_forward.1} parent=15 // pred_check
          %p778 = pneg %p200
        $region34: #{encoder_forward.1} parent=15 // pred_check_branch
          %780 = sbr.rel (%p778) target = $region36
        $region35: #{encoder_forward.1} parent=15 // pred_region
          %s781 = sand.u32 %s64, 1
          %s782 = scalar_lea.sflag [#allocation10], %s781
          %s783 = sand.u32 %s190, 1
          %s784 = smul.addr %s783, 256
          %s785 = scalar_lea.vmem [#allocation11], %s784
          %787 = vsyncadd %s782, 0
          %s788 = smul.addr %s72, 64
          %s789 = smul.addr %s788, 4
          %s790 = scalar_lea.hbm %s4, %s789
          %s791 = sshll.u32 %s790, 4
          %s792 = int_to_ptr.hbm [resolvable:$true] %s791
          %s793 = sshll.u32 %s785, 4
          %s794 = int_to_ptr.vmem [resolvable:$true] %s793
          %799 = dma.hbm_to_vmem [thread:$0]  %s792, 4096, %s794, %s782, 128, 128, 8
        $region36: #{encoder_forward.1} parent=15 // pred_fallthru
          _
        // Predicated region
        $region37: #{encoder_forward.1} parent=15 // pred_check
          %p800 = pneg %p226
        $region38: #{encoder_forward.1} parent=15 // pred_check_branch
          %802 = sbr.rel (%p800) target = $region40
        $region39: #{encoder_forward.1} parent=15 // pred_region
          %s803 = sand.u32 %s64, 1
          %s804 = scalar_lea.sflag [#allocation13], %s803
          %s805 = sand.u32 %s216, 1
          %s806 = smul.addr %s805, 2
          %s807 = scalar_lea.vmem [#allocation12], %s806
          %809 = vsyncadd %s804, 0
          %s810 = smul.addr %s72, 2
          %s811 = scalar_lea.hbm %s5, %s810
          %s813 = sshll.u32 %s811, 4
          %s814 = int_to_ptr.hbm [resolvable:$true] %s813
          %s815 = sshll.u32 %s807, 4
          %s816 = int_to_ptr.vmem [resolvable:$true] %s815
          %818 = dma.hbm_to_vmem [thread:$0]  %s814, 32, %s816, %s804
        $region40: #{encoder_forward.1} parent=15 // pred_fallthru
          _
        // Predicated region
        $region41: #{encoder_forward.1} parent=15 // pred_check
          %p819 = pneg %p252
        $region42: #{encoder_forward.1} parent=15 // pred_check_branch
          %821 = sbr.rel (%p819) target = $region44
        $region43: #{encoder_forward.1} parent=15 // pred_region
          %p822 = scmp.lt.s32.totalorder %s72, 1
          %s823 = scalar_select %p822, %s72, 1
          %s824 = smul.addr %s823, 2
          %s825 = scalar_lea.vmem %s6, %s824
        $region44: #{encoder_forward.1} parent=15 // pred_fallthru
          _
        // Predicated region
        $region45: #{encoder_forward.1} parent=15 // pred_check
          %p826 = pneg %p278
        $region46: #{encoder_forward.1} parent=15 // pred_check_branch
          %828 = sbr.rel (%p826) target = $region48
        $region47: #{encoder_forward.1} parent=15 // pred_region
          %s829 = sand.u32 %s64, 1
          %s830 = scalar_lea.sflag [#allocation13], %s829
          %s831 = sand.u32 %s268, 1
          %s832 = smul.addr %s831, 2
          %s833 = scalar_lea.vmem [#allocation14], %s832
          %835 = vsyncadd %s830, 0
          %s836 = smul.addr %s72, 2
          %s837 = scalar_lea.hbm %s7, %s836
          %s839 = sshll.u32 %s837, 4
          %s840 = int_to_ptr.hbm [resolvable:$true] %s839
          %s841 = sshll.u32 %s833, 4
          %s842 = int_to_ptr.vmem [resolvable:$true] %s841
          %844 = dma.hbm_to_vmem [thread:$0]  %s840, 32, %s842, %s830
        $region48: #{encoder_forward.1} parent=15 // pred_fallthru
          _
        // Predicated region
        $region49: #{encoder_forward.1} parent=15 // pred_check
          %p845 = pneg %p304
        $region50: #{encoder_forward.1} parent=15 // pred_check_branch
          %847 = sbr.rel (%p845) target = $region52
        $region51: #{encoder_forward.1} parent=15 // pred_region
          %s848 = sand.u32 %s64, 1
          %s849 = scalar_lea.sflag [#allocation16], %s848
          %s850 = sand.u32 %s294, 1
          %s851 = smul.addr %s850, 256
          %s852 = scalar_lea.vmem [#allocation15], %s851
          %854 = vsyncadd %s849, 0
          %s855 = smul.addr %s72, 64
          %s856 = smul.addr %s855, 4
          %s857 = scalar_lea.hbm %s8, %s856
          %s858 = sshll.u32 %s857, 4
          %s859 = int_to_ptr.hbm [resolvable:$true] %s858
          %s860 = sshll.u32 %s852, 4
          %s861 = int_to_ptr.vmem [resolvable:$true] %s860
          %866 = dma.hbm_to_vmem [thread:$0]  %s859, 4096, %s861, %s849, 128, 128, 8
        $region52: #{encoder_forward.1} parent=15 // pred_fallthru
          _
        // Predicated region
        $region53: #{encoder_forward.1} parent=15 // pred_check
          %p867 = pneg %p330
        $region54: #{encoder_forward.1} parent=15 // pred_check_branch
          %869 = sbr.rel (%p867) target = $region56
        $region55: #{encoder_forward.1} parent=15 // pred_region
          %s870 = sand.u32 %s64, 1
          %s871 = scalar_lea.sflag [#allocation16], %s870
          %s872 = sand.u32 %s320, 1
          %s873 = smul.addr %s872, 2
          %s874 = scalar_lea.vmem [#allocation17], %s873
          %876 = vsyncadd %s871, 0
          %s877 = smul.addr %s72, 2
          %s878 = scalar_lea.hbm %s9, %s877
          %s880 = sshll.u32 %s878, 4
          %s881 = int_to_ptr.hbm [resolvable:$true] %s880
          %s882 = sshll.u32 %s874, 4
          %s883 = int_to_ptr.vmem [resolvable:$true] %s882
          %885 = dma.hbm_to_vmem [thread:$0]  %s881, 32, %s883, %s871
        $region56: #{encoder_forward.1} parent=15 // pred_fallthru
          _
        // Predicated region
        $region57: #{encoder_forward.1} parent=15 // pred_check
          %p886 = pneg %p356
        $region58: #{encoder_forward.1} parent=15 // pred_check_branch
          %888 = sbr.rel (%p886) target = $region60
        $region59: #{encoder_forward.1} parent=15 // pred_region
          %s889 = sand.u32 %s64, 1
          %s890 = scalar_lea.sflag [#allocation19], %s889
          %s891 = sand.u32 %s346, 1
          %s892 = smul.addr %s891, 512
          %s893 = scalar_lea.vmem [#allocation18], %s892
          %895 = vsyncadd %s890, 0
          %s896 = smul.addr %s72, 128
          %s897 = smul.addr %s896, 4
          %s898 = scalar_lea.hbm %s10, %s897
          %s899 = sshll.u32 %s898, 4
          %s900 = int_to_ptr.hbm [resolvable:$true] %s899
          %s901 = sshll.u32 %s893, 4
          %s902 = int_to_ptr.vmem [resolvable:$true] %s901
          %907 = dma.hbm_to_vmem [thread:$0]  %s900, 8192, %s902, %s890, 256, 256, 16
        $region60: #{encoder_forward.1} parent=15 // pred_fallthru
          _
        // Predicated region
        $region61: #{encoder_forward.1} parent=15 // pred_check
          %p908 = pneg %p382
        $region62: #{encoder_forward.1} parent=15 // pred_check_branch
          %910 = sbr.rel (%p908) target = $region64
        $region63: #{encoder_forward.1} parent=15 // pred_region
          %s911 = sand.u32 %s64, 1
          %s912 = scalar_lea.sflag [#allocation19], %s911
          %s913 = sand.u32 %s372, 1
          %s914 = smul.addr %s913, 4
          %s915 = scalar_lea.vmem [#allocation20], %s914
          %917 = vsyncadd %s912, 0
          %s918 = smul.addr %s72, 4
          %s919 = scalar_lea.hbm %s11, %s918
          %s921 = sshll.u32 %s919, 4
          %s922 = int_to_ptr.hbm [resolvable:$true] %s921
          %s923 = sshll.u32 %s915, 4
          %s924 = int_to_ptr.vmem [resolvable:$true] %s923
          %926 = dma.hbm_to_vmem [thread:$0]  %s922, 64, %s924, %s912
        $region64: #{encoder_forward.1} parent=15 // pred_fallthru
          _
        // Predicated region
        $region65: #{encoder_forward.1} parent=15 // pred_check
          %p927 = pneg %p408
        $region66: #{encoder_forward.1} parent=15 // pred_check_branch
          %929 = sbr.rel (%p927) target = $region68
        $region67: #{encoder_forward.1} parent=15 // pred_region
          %s930 = sand.u32 %s64, 1
          %s931 = scalar_lea.sflag [#allocation22], %s930
          %s932 = sand.u32 %s398, 1
          %s933 = smul.addr %s932, 256
          %s934 = scalar_lea.vmem [#allocation21], %s933
          %936 = vsyncadd %s931, 0
          %s937 = smul.addr %s72, 64
          %s938 = smul.addr %s937, 4
          %s939 = scalar_lea.hbm %s12, %s938
          %s940 = sshll.u32 %s939, 4
          %s941 = int_to_ptr.hbm [resolvable:$true] %s940
          %s942 = sshll.u32 %s934, 4
          %s943 = int_to_ptr.vmem [resolvable:$true] %s942
          %948 = dma.hbm_to_vmem [thread:$0]  %s941, 4096, %s943, %s931, 128, 128, 8
        $region68: #{encoder_forward.1} parent=15 // pred_fallthru
          _
        // Predicated region
        $region69: #{encoder_forward.1} parent=15 // pred_check
          %p949 = pneg %p434
        $region70: #{encoder_forward.1} parent=15 // pred_check_branch
          %951 = sbr.rel (%p949) target = $region72
        $region71: #{encoder_forward.1} parent=15 // pred_region
          %s952 = sand.u32 %s64, 1
          %s953 = scalar_lea.sflag [#allocation22], %s952
          %s954 = sand.u32 %s424, 1
          %s955 = smul.addr %s954, 2
          %s956 = scalar_lea.vmem [#allocation23], %s955
          %958 = vsyncadd %s953, 0
          %s959 = smul.addr %s72, 2
          %s960 = scalar_lea.hbm %s13, %s959
          %s962 = sshll.u32 %s960, 4
          %s963 = int_to_ptr.hbm [resolvable:$true] %s962
          %s964 = sshll.u32 %s956, 4
          %s965 = int_to_ptr.vmem [resolvable:$true] %s964
          %967 = dma.hbm_to_vmem [thread:$0]  %s963, 32, %s965, %s953
        $region72: #{encoder_forward.1} parent=15 // pred_fallthru
          _
        // Predicated region
        $region73: #{encoder_forward.1} parent=15 // pred_check
          %p968 = pneg %p460
        $region74: #{encoder_forward.1} parent=15 // pred_check_branch
          %970 = sbr.rel (%p968) target = $region76
        $region75: #{encoder_forward.1} parent=15 // pred_region
          %p971 = scmp.lt.s32.totalorder %s72, 1
          %s972 = scalar_select %p971, %s72, 1
          %s973 = smul.addr %s972, 2
          %s974 = scalar_lea.vmem %s14, %s973
        $region76: #{encoder_forward.1} parent=15 // pred_fallthru
          _
        // Predicated region
        $region77: #{encoder_forward.1} parent=15 // pred_check
          %p975 = pneg %p486
        $region78: #{encoder_forward.1} parent=15 // pred_check_branch
          %977 = sbr.rel (%p975) target = $region80
        $region79: #{encoder_forward.1} parent=15 // pred_region
          %s978 = sand.u32 %s64, 1
          %s979 = scalar_lea.sflag [#allocation25], %s978
          %s980 = sand.u32 %s476, 1
          %s981 = smul.addr %s980, 2
          %s982 = scalar_lea.vmem [#allocation24], %s981
          %984 = vsyncadd %s979, 0
          %s985 = smul.addr %s72, 2
          %s986 = scalar_lea.hbm %s15, %s985
          %s988 = sshll.u32 %s986, 4
          %s989 = int_to_ptr.hbm [resolvable:$true] %s988
          %s990 = sshll.u32 %s982, 4
          %s991 = int_to_ptr.vmem [resolvable:$true] %s990
          %993 = dma.hbm_to_vmem [thread:$0]  %s989, 32, %s991, %s979
        $region80: #{encoder_forward.1} parent=15 // pred_fallthru
          _
        // Predicated region
        $region81: #{encoder_forward.1} parent=15 // pred_check
          %p994 = pneg %p512
        $region82: #{encoder_forward.1} parent=15 // pred_check_branch
          %996 = sbr.rel (%p994) target = $region84
        $region83: #{encoder_forward.1} parent=15 // pred_region
          %s997 = sand.u32 %s64, 1
          %s998 = scalar_lea.sflag [#allocation25], %s997
          %s999 = sand.u32 %s502, 1
          %s1000 = smul.addr %s999, 512
          %s1001 = scalar_lea.vmem [#allocation26], %s1000
          %1003 = vsyncadd %s998, 0
          %s1004 = smul.addr %s72, 128
          %s1005 = smul.addr %s1004, 4
          %s1006 = scalar_lea.hbm %s16, %s1005
          %s1007 = sshll.u32 %s1006, 4
          %s1008 = int_to_ptr.hbm [resolvable:$true] %s1007
          %s1009 = sshll.u32 %s1001, 4
          %s1010 = int_to_ptr.vmem [resolvable:$true] %s1009
          %1015 = dma.hbm_to_vmem [thread:$0]  %s1008, 8192, %s1010, %s998, 256, 256, 16
        $region84: #{encoder_forward.1} parent=15 // pred_fallthru
          _
        // Predicated region
        $region85: #{encoder_forward.1} parent=15 // pred_check
          %p1016 = pneg %p538
        $region86: #{encoder_forward.1} parent=15 // pred_check_branch
          %1018 = sbr.rel (%p1016) target = $region88
        $region87: #{encoder_forward.1} parent=15 // pred_region
          %s1019 = sand.u32 %s64, 1
          %s1020 = scalar_lea.sflag [#allocation28], %s1019
          %s1021 = sand.u32 %s528, 1
          %s1022 = smul.addr %s1021, 4
          %s1023 = scalar_lea.vmem [#allocation27], %s1022
          %1025 = vsyncadd %s1020, 0
          %s1026 = smul.addr %s72, 4
          %s1027 = scalar_lea.hbm %s17, %s1026
          %s1029 = sshll.u32 %s1027, 4
          %s1030 = int_to_ptr.hbm [resolvable:$true] %s1029
          %s1031 = sshll.u32 %s1023, 4
          %s1032 = int_to_ptr.vmem [resolvable:$true] %s1031
          %1034 = dma.hbm_to_vmem [thread:$0]  %s1030, 64, %s1032, %s1020
        $region88: #{encoder_forward.1} parent=15 // pred_fallthru
          _
        // Predicated region
        $region89: #{encoder_forward.1} parent=15 // pred_check
          %p1035 = pneg %p564
        $region90: #{encoder_forward.1} parent=15 // pred_check_branch
          %1037 = sbr.rel (%p1035) target = $region92
        $region91: #{encoder_forward.1} parent=15 // pred_region
          %s1038 = sand.u32 %s64, 1
          %s1039 = scalar_lea.sflag [#allocation28], %s1038
          %s1040 = sand.u32 %s554, 1
          %s1041 = smul.addr %s1040, 512
          %s1042 = scalar_lea.vmem [#allocation29], %s1041
          %1044 = vsyncadd %s1039, 0
          %s1045 = smul.addr %s72, 128
          %s1046 = smul.addr %s1045, 4
          %s1047 = scalar_lea.hbm %s18, %s1046
          %s1048 = sshll.u32 %s1047, 4
          %s1049 = int_to_ptr.hbm [resolvable:$true] %s1048
          %s1050 = sshll.u32 %s1042, 4
          %s1051 = int_to_ptr.vmem [resolvable:$true] %s1050
          %1056 = dma.hbm_to_vmem [thread:$0]  %s1049, 8192, %s1051, %s1039, 128, 128, 8
        $region92: #{encoder_forward.1} parent=15 // pred_fallthru
          _
        // Predicated region
        $region93: #{encoder_forward.1} parent=15 // pred_check
          %p1057 = pneg %p590
        $region94: #{encoder_forward.1} parent=15 // pred_check_branch
          %1059 = sbr.rel (%p1057) target = $region96
        $region95: #{encoder_forward.1} parent=15 // pred_region
          %s1060 = sand.u32 %s64, 1
          %s1061 = scalar_lea.sflag [#allocation31], %s1060
          %s1062 = sand.u32 %s580, 1
          %s1063 = smul.addr %s1062, 2
          %s1064 = scalar_lea.vmem [#allocation30], %s1063
          %1066 = vsyncadd %s1061, 0
          %s1067 = smul.addr %s72, 2
          %s1068 = scalar_lea.hbm %s19, %s1067
          %s1070 = sshll.u32 %s1068, 4
          %s1071 = int_to_ptr.hbm [resolvable:$true] %s1070
          %s1072 = sshll.u32 %s1064, 4
          %s1073 = int_to_ptr.vmem [resolvable:$true] %s1072
          %1075 = dma.hbm_to_vmem [thread:$0]  %s1071, 32, %s1073, %s1061
        $region96: #{encoder_forward.1} parent=15 // pred_fallthru
          _
        // Predicated region
        $region97: #{encoder_forward.1} parent=15 // pred_check
          %p1076 = pneg %p616
        $region98: #{encoder_forward.1} parent=15 // pred_check_branch
          %1078 = sbr.rel (%p1076) target = $region100
        $region99: #{encoder_forward.1} parent=15 // pred_region
          %s1079 = sand.u32 %s64, 1
          %s1080 = scalar_lea.sflag [#allocation31], %s1079
          %s1081 = sand.u32 %s606, 1
          %s1082 = smul.addr %s1081, 2
          %s1083 = scalar_lea.vmem [#allocation32], %s1082
          %1085 = vsyncadd %s1080, 0
          %s1086 = smul.addr %s72, 2
          %s1087 = scalar_lea.hbm %s20, %s1086
          %s1089 = sshll.u32 %s1087, 4
          %s1090 = int_to_ptr.hbm [resolvable:$true] %s1089
          %s1091 = sshll.u32 %s1083, 4
          %s1092 = int_to_ptr.vmem [resolvable:$true] %s1091
          %1094 = dma.hbm_to_vmem [thread:$0]  %s1090, 32, %s1092, %s1080
        $region100: #{encoder_forward.1} parent=15 // pred_fallthru
          _
        // Predicated region
        $region101: #{encoder_forward.1} parent=15 // pred_check
          %p1095 = pneg %p642
        $region102: #{encoder_forward.1} parent=15 // pred_check_branch
          %1097 = sbr.rel (%p1095) target = $region104
        $region103: #{encoder_forward.1} parent=15 // pred_region
          %s1098 = sand.u32 %s632, 1
          %s1099 = scalar_lea.sflag [#allocation34], %s1098
          %s1100 = sand.u32 %s632, 1
          %s1101 = smul.addr %s1100, 2
          %s1102 = scalar_lea.vmem [#allocation33], %s1101
          %1104 = vsyncadd %s1099, 0
          %s1105 = smul.addr %s72, 2
          %s1106 = scalar_lea.hbm %s21, %s1105
          %s1108 = sshll.u32 %s1106, 4
          %s1109 = int_to_ptr.hbm [resolvable:$true] %s1108
          %s1110 = sshll.u32 %s1102, 4
          %s1111 = int_to_ptr.vmem [resolvable:$true] %s1110
          %1113 = dma.hbm_to_vmem [thread:$0]  %s1109, 32, %s1111, %s1099
        $region104: #{encoder_forward.1} parent=15 // pred_fallthru
          _
      $region16: #{encoder_forward.1} parent=5 // pred_fallthru
        _
      %p1114 = scmp.le.s32.totalorder 1, %s64
      %p1115 = scmp.lt.s32.totalorder %s64, 5
      %p1116 = pnand %p1114, %p1115
      %p1117 = pneg %p1116
      // Predicated region
      $region105: #{encoder_forward.1} parent=5 // pred_check
        _
      $region106: #{encoder_forward.1} parent=5 // pred_check_branch
        %1119 = sbr.rel (%p1116) target = $region108
      $region107: #{encoder_forward.1} parent=5 // pred_region
        %s1120 = ssub.s32 %s64, 1
        %s1121 = sand.u32 %s89, 1
        %s1122 = scalar_lea.sflag [#allocation4], %s1121
        %s1123 = sand.u32 %s89, 1
        %s1124 = smul.addr %s1123, 64
        %s1125 = scalar_lea.vmem [#allocation3], %s1124
        // Predicated region
        $region109: #{encoder_forward.1} parent=107 // pred_check
          %p1126 = pneg %p102
        $region110: #{encoder_forward.1} parent=107 // pred_check_branch
          %1128 = sbr.rel (%p1126) target = $region112
        $region111: #{encoder_forward.1} parent=107 // pred_region
          %1130 = dma.done %s1122, 1024
        $region112: #{encoder_forward.1} parent=107 // pred_fallthru
          _
        %s1131 = sand.u32 %s69, 1
        %s1132 = scalar_lea.sflag [#allocation7], %s1131
        %s1133 = sand.u32 %s115, 1
        %s1134 = smul.addr %s1133, 96
        %s1135 = scalar_lea.vmem [#allocation6], %s1134
        // Predicated region
        $region113: #{encoder_forward.1} parent=107 // pred_check
          %p1136 = pneg %p128
        $region114: #{encoder_forward.1} parent=107 // pred_check_branch
          %1138 = sbr.rel (%p1136) target = $region116
        $region115: #{encoder_forward.1} parent=107 // pred_region
          %1140 = dma.done %s1132, 1536
        $region116: #{encoder_forward.1} parent=107 // pred_fallthru
          _
        %s1141 = sand.u32 %s69, 1
        %s1142 = scalar_lea.sflag [#allocation7], %s1141
        %s1143 = sand.u32 %s141, 1
        %s1144 = smul.addr %s1143, 768
        %s1145 = scalar_lea.vmem [#allocation8], %s1144
        // Predicated region
        $region117: #{encoder_forward.1} parent=107 // pred_check
          %p1146 = pneg %p154
        $region118: #{encoder_forward.1} parent=107 // pred_check_branch
          %1148 = sbr.rel (%p1146) target = $region120
        $region119: #{encoder_forward.1} parent=107 // pred_region
          %1150 = dma.done %s1142, 12288
        $region120: #{encoder_forward.1} parent=107 // pred_fallthru
          _
        %s1151 = sand.u32 %s69, 1
        %s1152 = scalar_lea.sflag [#allocation10], %s1151
        %s1153 = sand.u32 %s167, 1
        %s1154 = smul.addr %s1153, 6
        %s1155 = scalar_lea.vmem [#allocation9], %s1154
        // Predicated region
        $region121: #{encoder_forward.1} parent=107 // pred_check
          %p1156 = pneg %p180
        $region122: #{encoder_forward.1} parent=107 // pred_check_branch
          %1158 = sbr.rel (%p1156) target = $region124
        $region123: #{encoder_forward.1} parent=107 // pred_region
          %1160 = dma.done %s1152, 96
        $region124: #{encoder_forward.1} parent=107 // pred_fallthru
          _
        %s1161 = sand.u32 %s69, 1
        %s1162 = scalar_lea.sflag [#allocation10], %s1161
        %s1163 = sand.u32 %s193, 1
        %s1164 = smul.addr %s1163, 256
        %s1165 = scalar_lea.vmem [#allocation11], %s1164
        // Predicated region
        $region125: #{encoder_forward.1} parent=107 // pred_check
          %p1166 = pneg %p206
        $region126: #{encoder_forward.1} parent=107 // pred_check_branch
          %1168 = sbr.rel (%p1166) target = $region128
        $region127: #{encoder_forward.1} parent=107 // pred_region
          %1170 = dma.done %s1162, 4096
        $region128: #{encoder_forward.1} parent=107 // pred_fallthru
          _
        %s1171 = sand.u32 %s69, 1
        %s1172 = scalar_lea.sflag [#allocation13], %s1171
        %s1173 = sand.u32 %s219, 1
        %s1174 = smul.addr %s1173, 2
        %s1175 = scalar_lea.vmem [#allocation12], %s1174
        // Predicated region
        $region129: #{encoder_forward.1} parent=107 // pred_check
          %p1176 = pneg %p232
        $region130: #{encoder_forward.1} parent=107 // pred_check_branch
          %1178 = sbr.rel (%p1176) target = $region132
        $region131: #{encoder_forward.1} parent=107 // pred_region
          %1180 = dma.done %s1172, 32
        $region132: #{encoder_forward.1} parent=107 // pred_fallthru
          _
        %s1181 = sand.u32 %s69, 1
        %s1182 = scalar_lea.sflag [#allocation13], %s1181
        %s1183 = sand.u32 %s271, 1
        %s1184 = smul.addr %s1183, 2
        %s1185 = scalar_lea.vmem [#allocation14], %s1184
        // Predicated region
        $region133: #{encoder_forward.1} parent=107 // pred_check
          %p1186 = pneg %p284
        $region134: #{encoder_forward.1} parent=107 // pred_check_branch
          %1188 = sbr.rel (%p1186) target = $region136
        $region135: #{encoder_forward.1} parent=107 // pred_region
          %1190 = dma.done %s1182, 32
        $region136: #{encoder_forward.1} parent=107 // pred_fallthru
          _
        %s1191 = sand.u32 %s69, 1
        %s1192 = scalar_lea.sflag [#allocation16], %s1191
        %s1193 = sand.u32 %s297, 1
        %s1194 = smul.addr %s1193, 256
        %s1195 = scalar_lea.vmem [#allocation15], %s1194
        // Predicated region
        $region137: #{encoder_forward.1} parent=107 // pred_check
          %p1196 = pneg %p310
        $region138: #{encoder_forward.1} parent=107 // pred_check_branch
          %1198 = sbr.rel (%p1196) target = $region140
        $region139: #{encoder_forward.1} parent=107 // pred_region
          %1200 = dma.done %s1192, 4096
        $region140: #{encoder_forward.1} parent=107 // pred_fallthru
          _
        %s1201 = sand.u32 %s69, 1
        %s1202 = scalar_lea.sflag [#allocation16], %s1201
        %s1203 = sand.u32 %s323, 1
        %s1204 = smul.addr %s1203, 2
        %s1205 = scalar_lea.vmem [#allocation17], %s1204
        // Predicated region
        $region141: #{encoder_forward.1} parent=107 // pred_check
          %p1206 = pneg %p336
        $region142: #{encoder_forward.1} parent=107 // pred_check_branch
          %1208 = sbr.rel (%p1206) target = $region144
        $region143: #{encoder_forward.1} parent=107 // pred_region
          %1210 = dma.done %s1202, 32
        $region144: #{encoder_forward.1} parent=107 // pred_fallthru
          _
        %s1211 = sand.u32 %s69, 1
        %s1212 = scalar_lea.sflag [#allocation19], %s1211
        %s1213 = sand.u32 %s349, 1
        %s1214 = smul.addr %s1213, 512
        %s1215 = scalar_lea.vmem [#allocation18], %s1214
        // Predicated region
        $region145: #{encoder_forward.1} parent=107 // pred_check
          %p1216 = pneg %p362
        $region146: #{encoder_forward.1} parent=107 // pred_check_branch
          %1218 = sbr.rel (%p1216) target = $region148
        $region147: #{encoder_forward.1} parent=107 // pred_region
          %1220 = dma.done %s1212, 8192
        $region148: #{encoder_forward.1} parent=107 // pred_fallthru
          _
        %s1221 = sand.u32 %s69, 1
        %s1222 = scalar_lea.sflag [#allocation19], %s1221
        %s1223 = sand.u32 %s375, 1
        %s1224 = smul.addr %s1223, 4
        %s1225 = scalar_lea.vmem [#allocation20], %s1224
        // Predicated region
        $region149: #{encoder_forward.1} parent=107 // pred_check
          %p1226 = pneg %p388
        $region150: #{encoder_forward.1} parent=107 // pred_check_branch
          %1228 = sbr.rel (%p1226) target = $region152
        $region151: #{encoder_forward.1} parent=107 // pred_region
          %1230 = dma.done %s1222, 64
        $region152: #{encoder_forward.1} parent=107 // pred_fallthru
          _
        %s1231 = sand.u32 %s69, 1
        %s1232 = scalar_lea.sflag [#allocation22], %s1231
        %s1233 = sand.u32 %s401, 1
        %s1234 = smul.addr %s1233, 256
        %s1235 = scalar_lea.vmem [#allocation21], %s1234
        // Predicated region
        $region153: #{encoder_forward.1} parent=107 // pred_check
          %p1236 = pneg %p414
        $region154: #{encoder_forward.1} parent=107 // pred_check_branch
          %1238 = sbr.rel (%p1236) target = $region156
        $region155: #{encoder_forward.1} parent=107 // pred_region
          %1240 = dma.done %s1232, 4096
        $region156: #{encoder_forward.1} parent=107 // pred_fallthru
          _
        %s1241 = sand.u32 %s69, 1
        %s1242 = scalar_lea.sflag [#allocation22], %s1241
        %s1243 = sand.u32 %s427, 1
        %s1244 = smul.addr %s1243, 2
        %s1245 = scalar_lea.vmem [#allocation23], %s1244
        // Predicated region
        $region157: #{encoder_forward.1} parent=107 // pred_check
          %p1246 = pneg %p440
        $region158: #{encoder_forward.1} parent=107 // pred_check_branch
          %1248 = sbr.rel (%p1246) target = $region160
        $region159: #{encoder_forward.1} parent=107 // pred_region
          %1250 = dma.done %s1242, 32
        $region160: #{encoder_forward.1} parent=107 // pred_fallthru
          _
        %s1251 = sand.u32 %s69, 1
        %s1252 = scalar_lea.sflag [#allocation25], %s1251
        %s1253 = sand.u32 %s479, 1
        %s1254 = smul.addr %s1253, 2
        %s1255 = scalar_lea.vmem [#allocation24], %s1254
        // Predicated region
        $region161: #{encoder_forward.1} parent=107 // pred_check
          %p1256 = pneg %p492
        $region162: #{encoder_forward.1} parent=107 // pred_check_branch
          %1258 = sbr.rel (%p1256) target = $region164
        $region163: #{encoder_forward.1} parent=107 // pred_region
          %1260 = dma.done %s1252, 32
        $region164: #{encoder_forward.1} parent=107 // pred_fallthru
          _
        %s1261 = sand.u32 %s69, 1
        %s1262 = scalar_lea.sflag [#allocation25], %s1261
        %s1263 = sand.u32 %s505, 1
        %s1264 = smul.addr %s1263, 512
        %s1265 = scalar_lea.vmem [#allocation26], %s1264
        // Predicated region
        $region165: #{encoder_forward.1} parent=107 // pred_check
          %p1266 = pneg %p518
        $region166: #{encoder_forward.1} parent=107 // pred_check_branch
          %1268 = sbr.rel (%p1266) target = $region168
        $region167: #{encoder_forward.1} parent=107 // pred_region
          %1270 = dma.done %s1262, 8192
        $region168: #{encoder_forward.1} parent=107 // pred_fallthru
          _
        %s1271 = sand.u32 %s69, 1
        %s1272 = scalar_lea.sflag [#allocation28], %s1271
        %s1273 = sand.u32 %s531, 1
        %s1274 = smul.addr %s1273, 4
        %s1275 = scalar_lea.vmem [#allocation27], %s1274
        // Predicated region
        $region169: #{encoder_forward.1} parent=107 // pred_check
          %p1276 = pneg %p544
        $region170: #{encoder_forward.1} parent=107 // pred_check_branch
          %1278 = sbr.rel (%p1276) target = $region172
        $region171: #{encoder_forward.1} parent=107 // pred_region
          %1280 = dma.done %s1272, 64
        $region172: #{encoder_forward.1} parent=107 // pred_fallthru
          _
        %s1281 = sand.u32 %s69, 1
        %s1282 = scalar_lea.sflag [#allocation28], %s1281
        %s1283 = sand.u32 %s557, 1
        %s1284 = smul.addr %s1283, 512
        %s1285 = scalar_lea.vmem [#allocation29], %s1284
        // Predicated region
        $region173: #{encoder_forward.1} parent=107 // pred_check
          %p1286 = pneg %p570
        $region174: #{encoder_forward.1} parent=107 // pred_check_branch
          %1288 = sbr.rel (%p1286) target = $region176
        $region175: #{encoder_forward.1} parent=107 // pred_region
          %1290 = dma.done %s1282, 8192
        $region176: #{encoder_forward.1} parent=107 // pred_fallthru
          _
        %s1291 = sand.u32 %s69, 1
        %s1292 = scalar_lea.sflag [#allocation31], %s1291
        %s1293 = sand.u32 %s583, 1
        %s1294 = smul.addr %s1293, 2
        %s1295 = scalar_lea.vmem [#allocation30], %s1294
        // Predicated region
        $region177: #{encoder_forward.1} parent=107 // pred_check
          %p1296 = pneg %p596
        $region178: #{encoder_forward.1} parent=107 // pred_check_branch
          %1298 = sbr.rel (%p1296) target = $region180
        $region179: #{encoder_forward.1} parent=107 // pred_region
          %1300 = dma.done %s1292, 32
        $region180: #{encoder_forward.1} parent=107 // pred_fallthru
          _
        %s1301 = sand.u32 %s69, 1
        %s1302 = scalar_lea.sflag [#allocation31], %s1301
        %s1303 = sand.u32 %s609, 1
        %s1304 = smul.addr %s1303, 2
        %s1305 = scalar_lea.vmem [#allocation32], %s1304
        // Predicated region
        $region181: #{encoder_forward.1} parent=107 // pred_check
          %p1306 = pneg %p622
        $region182: #{encoder_forward.1} parent=107 // pred_check_branch
          %1308 = sbr.rel (%p1306) target = $region184
        $region183: #{encoder_forward.1} parent=107 // pred_region
          %1310 = dma.done %s1302, 32
        $region184: #{encoder_forward.1} parent=107 // pred_fallthru
          _
        %s1311 = sand.u32 %s635, 1
        %s1312 = scalar_lea.sflag [#allocation34], %s1311
        %s1313 = sand.u32 %s635, 1
        %s1314 = smul.addr %s1313, 2
        %s1315 = scalar_lea.vmem [#allocation33], %s1314
        // Predicated region
        $region185: #{encoder_forward.1} parent=107 // pred_check
          %p1316 = pneg %p648
        $region186: #{encoder_forward.1} parent=107 // pred_check_branch
          %1318 = sbr.rel (%p1316) target = $region188
        $region187: #{encoder_forward.1} parent=107 // pred_region
          %1320 = dma.done %s1312, 32
        $region188: #{encoder_forward.1} parent=107 // pred_fallthru
          _
        %s1321 = sand.u32 %s89, 1
        %s1322 = scalar_lea.sflag [#allocation4], %s1321
        %s1323 = sand.u32 %s89, 1
        %s1324 = smul.addr %s1323, 64
        %s1325 = scalar_lea.vmem [#allocation3], %s1324
        %p1326 = pneg %p102
        %p1327 = pneg %p99
        %s1328 = sand.u32 %s69, 1
        %s1329 = scalar_lea.sflag [#allocation7], %s1328
        %s1330 = sand.u32 %s115, 1
        %s1331 = smul.addr %s1330, 96
        %s1332 = scalar_lea.vmem [#allocation6], %s1331
        %p1333 = pneg %p128
        %p1334 = pneg %p125
        %s1335 = sand.u32 %s69, 1
        %s1336 = scalar_lea.sflag [#allocation7], %s1335
        %s1337 = sand.u32 %s141, 1
        %s1338 = smul.addr %s1337, 768
        %s1339 = scalar_lea.vmem [#allocation8], %s1338
        %p1340 = pneg %p154
        %p1341 = pneg %p151
        %s1342 = sand.u32 %s69, 1
        %s1343 = scalar_lea.sflag [#allocation10], %s1342
        %s1344 = sand.u32 %s167, 1
        %s1345 = smul.addr %s1344, 6
        %s1346 = scalar_lea.vmem [#allocation9], %s1345
        %p1347 = pneg %p180
        %p1348 = pneg %p177
        %s1349 = sand.u32 %s69, 1
        %s1350 = scalar_lea.sflag [#allocation10], %s1349
        %s1351 = sand.u32 %s193, 1
        %s1352 = smul.addr %s1351, 256
        %s1353 = scalar_lea.vmem [#allocation11], %s1352
        %p1354 = pneg %p206
        %p1355 = pneg %p203
        %s1356 = sand.u32 %s69, 1
        %s1357 = scalar_lea.sflag [#allocation13], %s1356
        %s1358 = sand.u32 %s219, 1
        %s1359 = smul.addr %s1358, 2
        %s1360 = scalar_lea.vmem [#allocation12], %s1359
        %p1361 = pneg %p232
        %p1362 = pneg %p229
        %p1363 = scmp.lt.s32.totalorder %s74, 1
        %s1364 = scalar_select %p1363, %s74, 1
        %s1365 = smul.addr %s1364, 2
        %s1366 = scalar_lea.vmem %s6, %s1365
        %p1367 = pneg %p258
        %p1368 = pneg %p255
        %s1369 = sand.u32 %s69, 1
        %s1370 = scalar_lea.sflag [#allocation13], %s1369
        %s1371 = sand.u32 %s271, 1
        %s1372 = smul.addr %s1371, 2
        %s1373 = scalar_lea.vmem [#allocation14], %s1372
        %p1374 = pneg %p284
        %p1375 = pneg %p281
        %s1376 = sand.u32 %s69, 1
        %s1377 = scalar_lea.sflag [#allocation16], %s1376
        %s1378 = sand.u32 %s297, 1
        %s1379 = smul.addr %s1378, 256
        %s1380 = scalar_lea.vmem [#allocation15], %s1379
        %p1381 = pneg %p310
        %p1382 = pneg %p307
        %s1383 = sand.u32 %s69, 1
        %s1384 = scalar_lea.sflag [#allocation16], %s1383
        %s1385 = sand.u32 %s323, 1
        %s1386 = smul.addr %s1385, 2
        %s1387 = scalar_lea.vmem [#allocation17], %s1386
        %p1388 = pneg %p336
        %p1389 = pneg %p333
        %s1390 = sand.u32 %s69, 1
        %s1391 = scalar_lea.sflag [#allocation19], %s1390
        %s1392 = sand.u32 %s349, 1
        %s1393 = smul.addr %s1392, 512
        %s1394 = scalar_lea.vmem [#allocation18], %s1393
        %p1395 = pneg %p362
        %p1396 = pneg %p359
        %s1397 = sand.u32 %s69, 1
        %s1398 = scalar_lea.sflag [#allocation19], %s1397
        %s1399 = sand.u32 %s375, 1
        %s1400 = smul.addr %s1399, 4
        %s1401 = scalar_lea.vmem [#allocation20], %s1400
        %p1402 = pneg %p388
        %p1403 = pneg %p385
        %s1404 = sand.u32 %s69, 1
        %s1405 = scalar_lea.sflag [#allocation22], %s1404
        %s1406 = sand.u32 %s401, 1
        %s1407 = smul.addr %s1406, 256
        %s1408 = scalar_lea.vmem [#allocation21], %s1407
        %p1409 = pneg %p414
        %p1410 = pneg %p411
        %s1411 = sand.u32 %s69, 1
        %s1412 = scalar_lea.sflag [#allocation22], %s1411
        %s1413 = sand.u32 %s427, 1
        %s1414 = smul.addr %s1413, 2
        %s1415 = scalar_lea.vmem [#allocation23], %s1414
        %p1416 = pneg %p440
        %p1417 = pneg %p437
        %p1418 = scmp.lt.s32.totalorder %s74, 1
        %s1419 = scalar_select %p1418, %s74, 1
        %s1420 = smul.addr %s1419, 2
        %s1421 = scalar_lea.vmem %s14, %s1420
        %p1422 = pneg %p466
        %p1423 = pneg %p463
        %s1424 = sand.u32 %s69, 1
        %s1425 = scalar_lea.sflag [#allocation25], %s1424
        %s1426 = sand.u32 %s479, 1
        %s1427 = smul.addr %s1426, 2
        %s1428 = scalar_lea.vmem [#allocation24], %s1427
        %p1429 = pneg %p492
        %p1430 = pneg %p489
        %s1431 = sand.u32 %s69, 1
        %s1432 = scalar_lea.sflag [#allocation25], %s1431
        %s1433 = sand.u32 %s505, 1
        %s1434 = smul.addr %s1433, 512
        %s1435 = scalar_lea.vmem [#allocation26], %s1434
        %p1436 = pneg %p518
        %p1437 = pneg %p515
        %s1438 = sand.u32 %s69, 1
        %s1439 = scalar_lea.sflag [#allocation28], %s1438
        %s1440 = sand.u32 %s531, 1
        %s1441 = smul.addr %s1440, 4
        %s1442 = scalar_lea.vmem [#allocation27], %s1441
        %p1443 = pneg %p544
        %p1444 = pneg %p541
        %s1445 = sand.u32 %s69, 1
        %s1446 = scalar_lea.sflag [#allocation28], %s1445
        %s1447 = sand.u32 %s557, 1
        %s1448 = smul.addr %s1447, 512
        %s1449 = scalar_lea.vmem [#allocation29], %s1448
        %p1450 = pneg %p570
        %p1451 = pneg %p567
        %s1452 = sand.u32 %s69, 1
        %s1453 = scalar_lea.sflag [#allocation31], %s1452
        %s1454 = sand.u32 %s583, 1
        %s1455 = smul.addr %s1454, 2
        %s1456 = scalar_lea.vmem [#allocation30], %s1455
        %p1457 = pneg %p596
        %p1458 = pneg %p593
        %s1459 = sand.u32 %s69, 1
        %s1460 = scalar_lea.sflag [#allocation31], %s1459
        %s1461 = sand.u32 %s609, 1
        %s1462 = smul.addr %s1461, 2
        %s1463 = scalar_lea.vmem [#allocation32], %s1462
        %p1464 = pneg %p622
        %p1465 = pneg %p619
        %s1466 = sand.u32 %s635, 1
        %s1467 = scalar_lea.sflag [#allocation34], %s1466
        %s1468 = sand.u32 %s635, 1
        %s1469 = smul.addr %s1468, 2
        %s1470 = scalar_lea.vmem [#allocation33], %s1469
        %p1471 = pneg %p648
        %p1472 = pneg %p645
        %p1473 = pneg %p674
        %p1474 = pneg %p671
        %s1475 = sand.u32 %s661, 1
        %s1476 = scalar_lea.sflag [#allocation5], %s1475
        %s1477 = sand.u32 %s661, 1
        %s1478 = smul.addr %s1477, 64
        %s1479 = scalar_lea.vmem [#allocation35], %s1478
        %p1480 = scmp.lt.s32.totalorder %s74, 1
        %s1481 = scalar_select %p1480, %s74, 1
        %s1482 = smul.addr %s1481, 2
        %s1483 = scalar_lea.vmem %s6, %s1482
        %p1484 = scmp.lt.s32.totalorder %s74, 1
        %s1485 = scalar_select %p1484, %s74, 1
        %s1486 = smul.addr %s1485, 2
        %s1487 = scalar_lea.vmem %s14, %s1486
        %v1489 = vlaneseq
        %v1490 = vshrl.u32 %v1489, 7
        %v1491 = vadd.s32 %v1490, 8
        %v1492 = vadd.s32 %v1490, 16
        %v1493 = vadd.s32 %v1490, 24
        %v1494 = vlaneseq
        %v1495 = vand.u32 %v1494, 127
        %vm1496 = vcmp.ge.s32.totalorder %v1490, %v1495
        %vm1497 = vcmp.ge.s32.totalorder %v1491, %v1495
        %vm1498 = vcmp.ge.s32.totalorder %v1492, %v1495
        %vm1499 = vcmp.ge.s32.totalorder %v1493, %v1495
        %v1500 = vsel %vm1496, 0.0, -1e+09
        %v1501 = vsel %vm1497, 0.0, -1e+09
        %v1502 = vsel %vm1498, 0.0, -1e+09
        %v1503 = vsel %vm1499, 0.0, -1e+09
        %p1504 = scmp.eq.s32.totalorder %s74, 0
        // Predicated region
        $region189: #{encoder_forward.1} parent=107 // pred_check
          %p1505 = pneg %p1504
        $region190: #{encoder_forward.1} parent=107 // pred_check_branch
          %1507 = sbr.rel (%p1505) target = $region192
        $region191: #{encoder_forward.1} parent=107 // pred_region
          %v1508 = vld [vmem:[%s1125] sm:$0xff]
          %v1509 = vld [vmem:[%s1125 + $0x8] sm:$0xff]
          %v1510 = vld [vmem:[%s1125 + $0x10] sm:$0xff]
          %v1511 = vld [vmem:[%s1125 + $0x18] sm:$0xff]
          %v1512 = vld [vmem:[%s1125 + $0x20] sm:$0xff]
          %v1513 = vld [vmem:[%s1125 + $0x28] sm:$0xff]
          %v1514 = vld [vmem:[%s1125 + $0x30] sm:$0xff]
          %v1515 = vld [vmem:[%s1125 + $0x38] sm:$0xff]
          %1516 = vst [vmem:[#allocation2] sm:$0xff] %v1508
          %1517 = vst [vmem:[#allocation2 + $0x8] sm:$0xff] %v1509
          %1518 = vst [vmem:[#allocation2 + $0x10] sm:$0xff] %v1510
          %1519 = vst [vmem:[#allocation2 + $0x18] sm:$0xff] %v1511
          %1520 = vst [vmem:[#allocation2 + $0x20] sm:$0xff] %v1512
          %1521 = vst [vmem:[#allocation2 + $0x28] sm:$0xff] %v1513
          %1522 = vst [vmem:[#allocation2 + $0x30] sm:$0xff] %v1514
          %1523 = vst [vmem:[#allocation2 + $0x38] sm:$0xff] %v1515
        $region192: #{encoder_forward.1} parent=107 // pred_fallthru
          _
        %v1524 = vld [vmem:[#allocation2] sm:$0xff]
        %v1525 = vld [vmem:[#allocation2 + $0x8] sm:$0xff]
        %v1526 = vld [vmem:[#allocation2 + $0x10] sm:$0xff]
        %v1527 = vld [vmem:[#allocation2 + $0x18] sm:$0xff]
        %v1528 = vld [vmem:[#allocation2 + $0x20] sm:$0xff]
        %v1529 = vld [vmem:[#allocation2 + $0x28] sm:$0xff]
        %v1530 = vld [vmem:[#allocation2 + $0x30] sm:$0xff]
        %v1531 = vld [vmem:[#allocation2 + $0x38] sm:$0xff]
        %v1532 = vpack.c.bf16 %v1526, %v1524
        %v1533 = vpack.c.bf16 %v1527, %v1525
        %v1534 = vpack.c.bf16 %v1530, %v1528
        %v1535 = vpack.c.bf16 %v1531, %v1529
        %v1536 = vld [vmem:[%s1145] sm:$0xff]
        %v1537 = vld [vmem:[%s1145 + $0x8] sm:$0xff]
        %v1538 = vld [vmem:[%s1145 + $0x10] sm:$0xff]
        %v1539 = vld [vmem:[%s1145 + $0x18] sm:$0xff]
        %v1540 = vld [vmem:[%s1145 + $0x20] sm:$0xff]
        %v1541 = vld [vmem:[%s1145 + $0x28] sm:$0xff]
        %v1542 = vld [vmem:[%s1145 + $0x30] sm:$0xff]
        %v1543 = vld [vmem:[%s1145 + $0x38] sm:$0xff]
        %v1544 = vld [vmem:[%s1145 + $0x40] sm:$0xff]
        %v1545 = vld [vmem:[%s1145 + $0x48] sm:$0xff]
        %v1546 = vld [vmem:[%s1145 + $0x50] sm:$0xff]
        %v1547 = vld [vmem:[%s1145 + $0x58] sm:$0xff]
        %v1548 = vld [vmem:[%s1145 + $0x60] sm:$0xff]
        %v1549 = vld [vmem:[%s1145 + $0x68] sm:$0xff]
        %v1550 = vld [vmem:[%s1145 + $0x70] sm:$0xff]
        %v1551 = vld [vmem:[%s1145 + $0x78] sm:$0xff]
        %v1552 = vld [vmem:[%s1145 + $0x80] sm:$0xff]
        %v1553 = vld [vmem:[%s1145 + $0x88] sm:$0xff]
        %v1554 = vld [vmem:[%s1145 + $0x90] sm:$0xff]
        %v1555 = vld [vmem:[%s1145 + $0x98] sm:$0xff]
        %v1556 = vld [vmem:[%s1145 + $0xa0] sm:$0xff]
        %v1557 = vld [vmem:[%s1145 + $0xa8] sm:$0xff]
        %v1558 = vld [vmem:[%s1145 + $0xb0] sm:$0xff]
        %v1559 = vld [vmem:[%s1145 + $0xb8] sm:$0xff]
        %v1560 = vld [vmem:[%s1145 + $0xc0] sm:$0xff]
        %v1561 = vld [vmem:[%s1145 + $0xc8] sm:$0xff]
        %v1562 = vld [vmem:[%s1145 + $0xd0] sm:$0xff]
        %v1563 = vld [vmem:[%s1145 + $0xd8] sm:$0xff]
        %v1564 = vld [vmem:[%s1145 + $0xe0] sm:$0xff]
        %v1565 = vld [vmem:[%s1145 + $0xe8] sm:$0xff]
        %v1566 = vld [vmem:[%s1145 + $0xf0] sm:$0xff]
        %v1567 = vld [vmem:[%s1145 + $0xf8] sm:$0xff]
        %v1568 = vld [vmem:[%s1145 + $0x100] sm:$0xff]
        %v1569 = vld [vmem:[%s1145 + $0x108] sm:$0xff]
        %v1570 = vld [vmem:[%s1145 + $0x110] sm:$0xff]
        %v1571 = vld [vmem:[%s1145 + $0x118] sm:$0xff]
        %v1572 = vld [vmem:[%s1145 + $0x120] sm:$0xff]
        %v1573 = vld [vmem:[%s1145 + $0x128] sm:$0xff]
        %v1574 = vld [vmem:[%s1145 + $0x130] sm:$0xff]
        %v1575 = vld [vmem:[%s1145 + $0x138] sm:$0xff]
        %v1576 = vld [vmem:[%s1145 + $0x140] sm:$0xff]
        %v1577 = vld [vmem:[%s1145 + $0x148] sm:$0xff]
        %v1578 = vld [vmem:[%s1145 + $0x150] sm:$0xff]
        %v1579 = vld [vmem:[%s1145 + $0x158] sm:$0xff]
        %v1580 = vld [vmem:[%s1145 + $0x160] sm:$0xff]
        %v1581 = vld [vmem:[%s1145 + $0x168] sm:$0xff]
        %v1582 = vld [vmem:[%s1145 + $0x170] sm:$0xff]
        %v1583 = vld [vmem:[%s1145 + $0x178] sm:$0xff]
        %v1584 = vld [vmem:[%s1145 + $0x180] sm:$0xff]
        %v1585 = vld [vmem:[%s1145 + $0x188] sm:$0xff]
        %v1586 = vld [vmem:[%s1145 + $0x190] sm:$0xff]
        %v1587 = vld [vmem:[%s1145 + $0x198] sm:$0xff]
        %v1588 = vld [vmem:[%s1145 + $0x1a0] sm:$0xff]
        %v1589 = vld [vmem:[%s1145 + $0x1a8] sm:$0xff]
        %v1590 = vld [vmem:[%s1145 + $0x1b0] sm:$0xff]
        %v1591 = vld [vmem:[%s1145 + $0x1b8] sm:$0xff]
        %v1592 = vld [vmem:[%s1145 + $0x1c0] sm:$0xff]
        %v1593 = vld [vmem:[%s1145 + $0x1c8] sm:$0xff]
        %v1594 = vld [vmem:[%s1145 + $0x1d0] sm:$0xff]
        %v1595 = vld [vmem:[%s1145 + $0x1d8] sm:$0xff]
        %v1596 = vld [vmem:[%s1145 + $0x1e0] sm:$0xff]
        %v1597 = vld [vmem:[%s1145 + $0x1e8] sm:$0xff]
        %v1598 = vld [vmem:[%s1145 + $0x1f0] sm:$0xff]
        %v1599 = vld [vmem:[%s1145 + $0x1f8] sm:$0xff]
        %v1600 = vld [vmem:[%s1145 + $0x200] sm:$0xff]
        %v1601 = vld [vmem:[%s1145 + $0x208] sm:$0xff]
        %v1602 = vld [vmem:[%s1145 + $0x210] sm:$0xff]
        %v1603 = vld [vmem:[%s1145 + $0x218] sm:$0xff]
        %v1604 = vld [vmem:[%s1145 + $0x220] sm:$0xff]
        %v1605 = vld [vmem:[%s1145 + $0x228] sm:$0xff]
        %v1606 = vld [vmem:[%s1145 + $0x230] sm:$0xff]
        %v1607 = vld [vmem:[%s1145 + $0x238] sm:$0xff]
        %v1608 = vld [vmem:[%s1145 + $0x240] sm:$0xff]
        %v1609 = vld [vmem:[%s1145 + $0x248] sm:$0xff]
        %v1610 = vld [vmem:[%s1145 + $0x250] sm:$0xff]
        %v1611 = vld [vmem:[%s1145 + $0x258] sm:$0xff]
        %v1612 = vld [vmem:[%s1145 + $0x260] sm:$0xff]
        %v1613 = vld [vmem:[%s1145 + $0x268] sm:$0xff]
        %v1614 = vld [vmem:[%s1145 + $0x270] sm:$0xff]
        %v1615 = vld [vmem:[%s1145 + $0x278] sm:$0xff]
        %v1616 = vld [vmem:[%s1145 + $0x280] sm:$0xff]
        %v1617 = vld [vmem:[%s1145 + $0x288] sm:$0xff]
        %v1618 = vld [vmem:[%s1145 + $0x290] sm:$0xff]
        %v1619 = vld [vmem:[%s1145 + $0x298] sm:$0xff]
        %v1620 = vld [vmem:[%s1145 + $0x2a0] sm:$0xff]
        %v1621 = vld [vmem:[%s1145 + $0x2a8] sm:$0xff]
        %v1622 = vld [vmem:[%s1145 + $0x2b0] sm:$0xff]
        %v1623 = vld [vmem:[%s1145 + $0x2b8] sm:$0xff]
        %v1624 = vld [vmem:[%s1145 + $0x2c0] sm:$0xff]
        %v1625 = vld [vmem:[%s1145 + $0x2c8] sm:$0xff]
        %v1626 = vld [vmem:[%s1145 + $0x2d0] sm:$0xff]
        %v1627 = vld [vmem:[%s1145 + $0x2d8] sm:$0xff]
        %v1628 = vld [vmem:[%s1145 + $0x2e0] sm:$0xff]
        %v1629 = vld [vmem:[%s1145 + $0x2e8] sm:$0xff]
        %v1630 = vld [vmem:[%s1145 + $0x2f0] sm:$0xff]
        %v1631 = vld [vmem:[%s1145 + $0x2f8] sm:$0xff]
        %v1632 = vld [vmem:[%s1155] sm:$0x3f]
        %v1634 = vperm.slane %v1632, 0
        %v1635 = vperm.slane %v1632, 1
        %v1636 = vperm.slane %v1632, 2
        %v1637 = vperm.slane %v1632, 3
        %v1638 = vperm.slane %v1632, 4
        %v1639 = vperm.slane %v1632, 5
        %v1742 = vunpack.c.l.b16 %v1536
        %v1743 = vunpack.c.h.b16 %v1536
        %v1744 = vunpack.c.l.b16 %v1537
        %v1745 = vunpack.c.h.b16 %v1537
        %v1746 = vunpack.c.l.b16 %v1538
        %v1747 = vunpack.c.h.b16 %v1538
        %v1748 = vunpack.c.l.b16 %v1539
        %v1749 = vunpack.c.h.b16 %v1539
        %v1750 = vunpack.c.l.b16 %v1540
        %v1751 = vunpack.c.h.b16 %v1540
        %v1752 = vunpack.c.l.b16 %v1541
        %v1753 = vunpack.c.h.b16 %v1541
        %v1754 = vunpack.c.l.b16 %v1542
        %v1755 = vunpack.c.h.b16 %v1542
        %v1756 = vunpack.c.l.b16 %v1543
        %v1757 = vunpack.c.h.b16 %v1543
        %v1758 = vunpack.c.l.b16 %v1544
        %v1759 = vunpack.c.h.b16 %v1544
        %v1760 = vunpack.c.l.b16 %v1545
        %v1761 = vunpack.c.h.b16 %v1545
        %v1762 = vunpack.c.l.b16 %v1546
        %v1763 = vunpack.c.h.b16 %v1546
        %v1764 = vunpack.c.l.b16 %v1547
        %v1765 = vunpack.c.h.b16 %v1547
        %v1766 = vunpack.c.l.b16 %v1548
        %v1767 = vunpack.c.h.b16 %v1548
        %v1768 = vunpack.c.l.b16 %v1549
        %v1769 = vunpack.c.h.b16 %v1549
        %v1770 = vunpack.c.l.b16 %v1550
        %v1771 = vunpack.c.h.b16 %v1550
        %v1772 = vunpack.c.l.b16 %v1551
        %v1773 = vunpack.c.h.b16 %v1551
        %v1774 = vunpack.c.l.b16 %v1552
        %v1775 = vunpack.c.h.b16 %v1552
        %v1776 = vunpack.c.l.b16 %v1553
        %v1777 = vunpack.c.h.b16 %v1553
        %v1778 = vunpack.c.l.b16 %v1554
        %v1779 = vunpack.c.h.b16 %v1554
        %v1780 = vunpack.c.l.b16 %v1555
        %v1781 = vunpack.c.h.b16 %v1555
        %v1782 = vunpack.c.l.b16 %v1556
        %v1783 = vunpack.c.h.b16 %v1556
        %v1784 = vunpack.c.l.b16 %v1557
        %v1785 = vunpack.c.h.b16 %v1557
        %v1786 = vunpack.c.l.b16 %v1558
        %v1787 = vunpack.c.h.b16 %v1558
        %v1788 = vunpack.c.l.b16 %v1559
        %v1789 = vunpack.c.h.b16 %v1559
        %v1790 = vunpack.c.l.b16 %v1560
        %v1791 = vunpack.c.h.b16 %v1560
        %v1792 = vunpack.c.l.b16 %v1561
        %v1793 = vunpack.c.h.b16 %v1561
        %v1794 = vunpack.c.l.b16 %v1562
        %v1795 = vunpack.c.h.b16 %v1562
        %v1796 = vunpack.c.l.b16 %v1563
        %v1797 = vunpack.c.h.b16 %v1563
        %v1798 = vunpack.c.l.b16 %v1564
        %v1799 = vunpack.c.h.b16 %v1564
        %v1800 = vunpack.c.l.b16 %v1565
        %v1801 = vunpack.c.h.b16 %v1565
        %v1802 = vunpack.c.l.b16 %v1566
        %v1803 = vunpack.c.h.b16 %v1566
        %v1804 = vunpack.c.l.b16 %v1567
        %v1805 = vunpack.c.h.b16 %v1567
        %v1806 = vunpack.c.l.b16 %v1568
        %v1807 = vunpack.c.h.b16 %v1568
        %v1808 = vunpack.c.l.b16 %v1569
        %v1809 = vunpack.c.h.b16 %v1569
        %v1810 = vunpack.c.l.b16 %v1570
        %v1811 = vunpack.c.h.b16 %v1570
        %v1812 = vunpack.c.l.b16 %v1571
        %v1813 = vunpack.c.h.b16 %v1571
        %v1814 = vunpack.c.l.b16 %v1572
        %v1815 = vunpack.c.h.b16 %v1572
        %v1816 = vunpack.c.l.b16 %v1573
        %v1817 = vunpack.c.h.b16 %v1573
        %v1818 = vunpack.c.l.b16 %v1574
        %v1819 = vunpack.c.h.b16 %v1574
        %v1820 = vunpack.c.l.b16 %v1575
        %v1821 = vunpack.c.h.b16 %v1575
        %v1822 = vunpack.c.l.b16 %v1576
        %v1823 = vunpack.c.h.b16 %v1576
        %v1824 = vunpack.c.l.b16 %v1577
        %v1825 = vunpack.c.h.b16 %v1577
        %v1826 = vunpack.c.l.b16 %v1578
        %v1827 = vunpack.c.h.b16 %v1578
        %v1828 = vunpack.c.l.b16 %v1579
        %v1829 = vunpack.c.h.b16 %v1579
        %v1830 = vunpack.c.l.b16 %v1580
        %v1831 = vunpack.c.h.b16 %v1580
        %v1832 = vunpack.c.l.b16 %v1581
        %v1833 = vunpack.c.h.b16 %v1581
        %v1834 = vunpack.c.l.b16 %v1582
        %v1835 = vunpack.c.h.b16 %v1582
        %v1836 = vunpack.c.l.b16 %v1583
        %v1837 = vunpack.c.h.b16 %v1583
        %v1838 = vunpack.c.l.b16 %v1584
        %v1839 = vunpack.c.h.b16 %v1584
        %v1840 = vunpack.c.l.b16 %v1585
        %v1841 = vunpack.c.h.b16 %v1585
        %v1842 = vunpack.c.l.b16 %v1586
        %v1843 = vunpack.c.h.b16 %v1586
        %v1844 = vunpack.c.l.b16 %v1587
        %v1845 = vunpack.c.h.b16 %v1587
        %v1846 = vunpack.c.l.b16 %v1588
        %v1847 = vunpack.c.h.b16 %v1588
        %v1848 = vunpack.c.l.b16 %v1589
        %v1849 = vunpack.c.h.b16 %v1589
        %v1850 = vunpack.c.l.b16 %v1590
        %v1851 = vunpack.c.h.b16 %v1590
        %v1852 = vunpack.c.l.b16 %v1591
        %v1853 = vunpack.c.h.b16 %v1591
        %v1854 = vunpack.c.l.b16 %v1592
        %v1855 = vunpack.c.h.b16 %v1592
        %v1856 = vunpack.c.l.b16 %v1593
        %v1857 = vunpack.c.h.b16 %v1593
        %v1858 = vunpack.c.l.b16 %v1594
        %v1859 = vunpack.c.h.b16 %v1594
        %v1860 = vunpack.c.l.b16 %v1595
        %v1861 = vunpack.c.h.b16 %v1595
        %v1862 = vunpack.c.l.b16 %v1596
        %v1863 = vunpack.c.h.b16 %v1596
        %v1864 = vunpack.c.l.b16 %v1597
        %v1865 = vunpack.c.h.b16 %v1597
        %v1866 = vunpack.c.l.b16 %v1598
        %v1867 = vunpack.c.h.b16 %v1598
        %v1868 = vunpack.c.l.b16 %v1599
        %v1869 = vunpack.c.h.b16 %v1599
        %v1870 = vunpack.c.l.b16 %v1600
        %v1871 = vunpack.c.h.b16 %v1600
        %v1872 = vunpack.c.l.b16 %v1601
        %v1873 = vunpack.c.h.b16 %v1601
        %v1874 = vunpack.c.l.b16 %v1602
        %v1875 = vunpack.c.h.b16 %v1602
        %v1876 = vunpack.c.l.b16 %v1603
        %v1877 = vunpack.c.h.b16 %v1603
        %v1878 = vunpack.c.l.b16 %v1604
        %v1879 = vunpack.c.h.b16 %v1604
        %v1880 = vunpack.c.l.b16 %v1605
        %v1881 = vunpack.c.h.b16 %v1605
        %v1882 = vunpack.c.l.b16 %v1606
        %v1883 = vunpack.c.h.b16 %v1606
        %v1884 = vunpack.c.l.b16 %v1607
        %v1885 = vunpack.c.h.b16 %v1607
        %v1886 = vunpack.c.l.b16 %v1608
        %v1887 = vunpack.c.h.b16 %v1608
        %v1888 = vunpack.c.l.b16 %v1609
        %v1889 = vunpack.c.h.b16 %v1609
        %v1890 = vunpack.c.l.b16 %v1610
        %v1891 = vunpack.c.h.b16 %v1610
        %v1892 = vunpack.c.l.b16 %v1611
        %v1893 = vunpack.c.h.b16 %v1611
        %v1894 = vunpack.c.l.b16 %v1612
        %v1895 = vunpack.c.h.b16 %v1612
        %v1896 = vunpack.c.l.b16 %v1613
        %v1897 = vunpack.c.h.b16 %v1613
        %v1898 = vunpack.c.l.b16 %v1614
        %v1899 = vunpack.c.h.b16 %v1614
        %v1900 = vunpack.c.l.b16 %v1615
        %v1901 = vunpack.c.h.b16 %v1615
        %v1902 = vunpack.c.l.b16 %v1616
        %v1903 = vunpack.c.h.b16 %v1616
        %v1904 = vunpack.c.l.b16 %v1617
        %v1905 = vunpack.c.h.b16 %v1617
        %v1906 = vunpack.c.l.b16 %v1618
        %v1907 = vunpack.c.h.b16 %v1618
        %v1908 = vunpack.c.l.b16 %v1619
        %v1909 = vunpack.c.h.b16 %v1619
        %v1910 = vunpack.c.l.b16 %v1620
        %v1911 = vunpack.c.h.b16 %v1620
        %v1912 = vunpack.c.l.b16 %v1621
        %v1913 = vunpack.c.h.b16 %v1621
        %v1914 = vunpack.c.l.b16 %v1622
        %v1915 = vunpack.c.h.b16 %v1622
        %v1916 = vunpack.c.l.b16 %v1623
        %v1917 = vunpack.c.h.b16 %v1623
        %v1918 = vunpack.c.l.b16 %v1624
        %v1919 = vunpack.c.h.b16 %v1624
        %v1920 = vunpack.c.l.b16 %v1625
        %v1921 = vunpack.c.h.b16 %v1625
        %v1922 = vunpack.c.l.b16 %v1626
        %v1923 = vunpack.c.h.b16 %v1626
        %v1924 = vunpack.c.l.b16 %v1627
        %v1925 = vunpack.c.h.b16 %v1627
        %v1926 = vunpack.c.l.b16 %v1628
        %v1927 = vunpack.c.h.b16 %v1628
        %v1928 = vunpack.c.l.b16 %v1629
        %v1929 = vunpack.c.h.b16 %v1629
        %v1930 = vunpack.c.l.b16 %v1630
        %v1931 = vunpack.c.h.b16 %v1630
        %v1932 = vunpack.c.l.b16 %v1631
        %v1933 = vunpack.c.h.b16 %v1631
        %v1934 = vpack.c.b16 %v1748, %v1742
        %v1935 = vpack.c.b16 %v1749, %v1743
        %v1936 = vpack.c.b16 %v1750, %v1744
        %v1937 = vpack.c.b16 %v1751, %v1745
        %v1938 = vpack.c.b16 %v1752, %v1746
        %v1939 = vpack.c.b16 %v1753, %v1747
        %v1940 = vpack.c.b16 %v1760, %v1754
        %v1941 = vpack.c.b16 %v1761, %v1755
        %v1942 = vpack.c.b16 %v1762, %v1756
        %v1943 = vpack.c.b16 %v1763, %v1757
        %v1944 = vpack.c.b16 %v1764, %v1758
        %v1945 = vpack.c.b16 %v1765, %v1759
        %v1946 = vpack.c.b16 %v1772, %v1766
        %v1947 = vpack.c.b16 %v1773, %v1767
        %v1948 = vpack.c.b16 %v1774, %v1768
        %v1949 = vpack.c.b16 %v1775, %v1769
        %v1950 = vpack.c.b16 %v1776, %v1770
        %v1951 = vpack.c.b16 %v1777, %v1771
        %v1952 = vpack.c.b16 %v1784, %v1778
        %v1953 = vpack.c.b16 %v1785, %v1779
        %v1954 = vpack.c.b16 %v1786, %v1780
        %v1955 = vpack.c.b16 %v1787, %v1781
        %v1956 = vpack.c.b16 %v1788, %v1782
        %v1957 = vpack.c.b16 %v1789, %v1783
        %v1958 = vpack.c.b16 %v1796, %v1790
        %v1959 = vpack.c.b16 %v1797, %v1791
        %v1960 = vpack.c.b16 %v1798, %v1792
        %v1961 = vpack.c.b16 %v1799, %v1793
        %v1962 = vpack.c.b16 %v1800, %v1794
        %v1963 = vpack.c.b16 %v1801, %v1795
        %v1964 = vpack.c.b16 %v1808, %v1802
        %v1965 = vpack.c.b16 %v1809, %v1803
        %v1966 = vpack.c.b16 %v1810, %v1804
        %v1967 = vpack.c.b16 %v1811, %v1805
        %v1968 = vpack.c.b16 %v1812, %v1806
        %v1969 = vpack.c.b16 %v1813, %v1807
        %v1970 = vpack.c.b16 %v1820, %v1814
        %v1971 = vpack.c.b16 %v1821, %v1815
        %v1972 = vpack.c.b16 %v1822, %v1816
        %v1973 = vpack.c.b16 %v1823, %v1817
        %v1974 = vpack.c.b16 %v1824, %v1818
        %v1975 = vpack.c.b16 %v1825, %v1819
        %v1976 = vpack.c.b16 %v1832, %v1826
        %v1977 = vpack.c.b16 %v1833, %v1827
        %v1978 = vpack.c.b16 %v1834, %v1828
        %v1979 = vpack.c.b16 %v1835, %v1829
        %v1980 = vpack.c.b16 %v1836, %v1830
        %v1981 = vpack.c.b16 %v1837, %v1831
        %v1982 = vpack.c.b16 %v1844, %v1838
        %v1983 = vpack.c.b16 %v1845, %v1839
        %v1984 = vpack.c.b16 %v1846, %v1840
        %v1985 = vpack.c.b16 %v1847, %v1841
        %v1986 = vpack.c.b16 %v1848, %v1842
        %v1987 = vpack.c.b16 %v1849, %v1843
        %v1988 = vpack.c.b16 %v1856, %v1850
        %v1989 = vpack.c.b16 %v1857, %v1851
        %v1990 = vpack.c.b16 %v1858, %v1852
        %v1991 = vpack.c.b16 %v1859, %v1853
        %v1992 = vpack.c.b16 %v1860, %v1854
        %v1993 = vpack.c.b16 %v1861, %v1855
        %v1994 = vpack.c.b16 %v1868, %v1862
        %v1995 = vpack.c.b16 %v1869, %v1863
        %v1996 = vpack.c.b16 %v1870, %v1864
        %v1997 = vpack.c.b16 %v1871, %v1865
        %v1998 = vpack.c.b16 %v1872, %v1866
        %v1999 = vpack.c.b16 %v1873, %v1867
        %v2000 = vpack.c.b16 %v1880, %v1874
        %v2001 = vpack.c.b16 %v1881, %v1875
        %v2002 = vpack.c.b16 %v1882, %v1876
        %v2003 = vpack.c.b16 %v1883, %v1877
        %v2004 = vpack.c.b16 %v1884, %v1878
        %v2005 = vpack.c.b16 %v1885, %v1879
        %v2006 = vpack.c.b16 %v1892, %v1886
        %v2007 = vpack.c.b16 %v1893, %v1887
        %v2008 = vpack.c.b16 %v1894, %v1888
        %v2009 = vpack.c.b16 %v1895, %v1889
        %v2010 = vpack.c.b16 %v1896, %v1890
        %v2011 = vpack.c.b16 %v1897, %v1891
        %v2012 = vpack.c.b16 %v1904, %v1898
        %v2013 = vpack.c.b16 %v1905, %v1899
        %v2014 = vpack.c.b16 %v1906, %v1900
        %v2015 = vpack.c.b16 %v1907, %v1901
        %v2016 = vpack.c.b16 %v1908, %v1902
        %v2017 = vpack.c.b16 %v1909, %v1903
        %v2018 = vpack.c.b16 %v1916, %v1910
        %v2019 = vpack.c.b16 %v1917, %v1911
        %v2020 = vpack.c.b16 %v1918, %v1912
        %v2021 = vpack.c.b16 %v1919, %v1913
        %v2022 = vpack.c.b16 %v1920, %v1914
        %v2023 = vpack.c.b16 %v1921, %v1915
        %v2024 = vpack.c.b16 %v1928, %v1922
        %v2025 = vpack.c.b16 %v1929, %v1923
        %v2026 = vpack.c.b16 %v1930, %v1924
        %v2027 = vpack.c.b16 %v1931, %v1925
        %v2028 = vpack.c.b16 %v1932, %v1926
        %v2029 = vpack.c.b16 %v1933, %v1927
        %2126 = vmatpush.bf16.msra.mxu0 %v1976
        %2127 = vmatpush.bf16.msra.mxu0 %v1970
        %2128 = vmatpush.bf16.msra.mxu0 %v1964
        %2129 = vmatpush.bf16.msra.mxu0 %v1958
        %2130 = vmatpush.bf16.msra.mxu0 %v1952
        %2131 = vmatpush.bf16.msra.mxu0 %v1946
        %2132 = vmatpush.bf16.msra.mxu0 %v1940
        %2133 = vmatpush.bf16.msra.mxu0 %v1934
        %2134 = vmatmul.bf16.gmra.mxu0 %v1532
        %v2135 = vpop.f32.mrf.mxu0
        %v2136 = vadd.f32 %v1634, %v2135
        %v2137 = vpop.f32.mrf.mxu0
        %v2138 = vadd.f32 %v1634, %v2137
        %2139 = vmatmul.bf16.gmra.mxu0 %v1534
        %v2140 = vpop.f32.mrf.mxu0
        %v2141 = vadd.f32 %v1634, %v2140
        %v2142 = vpop.f32.mrf.mxu0
        %v2143 = vadd.f32 %v1634, %v2142
        %2144 = vdwg.mxu0
        %2145 = vmatpush.bf16.msra.mxu0 %v2024
        %2146 = vmatpush.bf16.msra.mxu0 %v2018
        %2147 = vmatpush.bf16.msra.mxu0 %v2012
        %2148 = vmatpush.bf16.msra.mxu0 %v2006
        %2149 = vmatpush.bf16.msra.mxu0 %v2000
        %2150 = vmatpush.bf16.msra.mxu0 %v1994
        %2151 = vmatpush.bf16.msra.mxu0 %v1988
        %2152 = vmatpush.bf16.msra.mxu0 %v1982
        %2153 = vmatmul.bf16.gmra.mxu0 %v1533
        %v2154 = vpop.f32.mrf.mxu0
        %v2155 = vadd.f32 %v2136, %v2154
        %v2156 = vpop.f32.mrf.mxu0
        %v2157 = vadd.f32 %v2138, %v2156
        %2158 = vmatmul.bf16.gmra.mxu0 %v1535
        %v2159 = vpop.f32.mrf.mxu0
        %v2160 = vadd.f32 %v2141, %v2159
        %v2161 = vpop.f32.mrf.mxu0
        %v2162 = vadd.f32 %v2143, %v2161
        %2163 = vdwg.mxu0
        %2164 = vmatpush.bf16.msra.mxu0 %v1977
        %2165 = vmatpush.bf16.msra.mxu0 %v1971
        %2166 = vmatpush.bf16.msra.mxu0 %v1965
        %2167 = vmatpush.bf16.msra.mxu0 %v1959
        %2168 = vmatpush.bf16.msra.mxu0 %v1953
        %2169 = vmatpush.bf16.msra.mxu0 %v1947
        %2170 = vmatpush.bf16.msra.mxu0 %v1941
        %2171 = vmatpush.bf16.msra.mxu0 %v1935
        %2172 = vmatmul.bf16.gmra.mxu0 %v1532
        %v2173 = vpop.f32.mrf.mxu0
        %v2174 = vadd.f32 %v1635, %v2173
        %v2175 = vpop.f32.mrf.mxu0
        %v2176 = vadd.f32 %v1635, %v2175
        %2177 = vmatmul.bf16.gmra.mxu0 %v1534
        %v2178 = vpop.f32.mrf.mxu0
        %v2179 = vadd.f32 %v1635, %v2178
        %v2180 = vpop.f32.mrf.mxu0
        %v2181 = vadd.f32 %v1635, %v2180
        %2182 = vdwg.mxu0
        %2183 = vmatpush.bf16.msra.mxu0 %v2025
        %2184 = vmatpush.bf16.msra.mxu0 %v2019
        %2185 = vmatpush.bf16.msra.mxu0 %v2013
        %2186 = vmatpush.bf16.msra.mxu0 %v2007
        %2187 = vmatpush.bf16.msra.mxu0 %v2001
        %2188 = vmatpush.bf16.msra.mxu0 %v1995
        %2189 = vmatpush.bf16.msra.mxu0 %v1989
        %2190 = vmatpush.bf16.msra.mxu0 %v1983
        %2191 = vmatmul.bf16.gmra.mxu0 %v1533
        %v2192 = vpop.f32.mrf.mxu0
        %v2193 = vadd.f32 %v2174, %v2192
        %v2194 = vpop.f32.mrf.mxu0
        %v2195 = vadd.f32 %v2176, %v2194
        %2196 = vmatmul.bf16.gmra.mxu0 %v1535
        %v2197 = vpop.f32.mrf.mxu0
        %v2198 = vadd.f32 %v2179, %v2197
        %v2199 = vpop.f32.mrf.mxu0
        %v2200 = vadd.f32 %v2181, %v2199
        %2201 = vdwg.mxu0
        %2202 = vmatpush.bf16.msra.mxu0 %v1978
        %2203 = vmatpush.bf16.msra.mxu0 %v1972
        %2204 = vmatpush.bf16.msra.mxu0 %v1966
        %2205 = vmatpush.bf16.msra.mxu0 %v1960
        %2206 = vmatpush.bf16.msra.mxu0 %v1954
        %2207 = vmatpush.bf16.msra.mxu0 %v1948
        %2208 = vmatpush.bf16.msra.mxu0 %v1942
        %2209 = vmatpush.bf16.msra.mxu0 %v1936
        %2210 = vmatmul.bf16.gmra.mxu0 %v1532
        %v2211 = vpop.f32.mrf.mxu0
        %v2212 = vadd.f32 %v1636, %v2211
        %v2213 = vpop.f32.mrf.mxu0
        %v2214 = vadd.f32 %v1636, %v2213
        %2215 = vmatmul.bf16.gmra.mxu0 %v1534
        %v2216 = vpop.f32.mrf.mxu0
        %v2217 = vadd.f32 %v1636, %v2216
        %v2218 = vpop.f32.mrf.mxu0
        %v2219 = vadd.f32 %v1636, %v2218
        %2220 = vdwg.mxu0
        %2221 = vmatpush.bf16.msra.mxu0 %v2026
        %2222 = vmatpush.bf16.msra.mxu0 %v2020
        %2223 = vmatpush.bf16.msra.mxu0 %v2014
        %2224 = vmatpush.bf16.msra.mxu0 %v2008
        %2225 = vmatpush.bf16.msra.mxu0 %v2002
        %2226 = vmatpush.bf16.msra.mxu0 %v1996
        %2227 = vmatpush.bf16.msra.mxu0 %v1990
        %2228 = vmatpush.bf16.msra.mxu0 %v1984
        %2229 = vmatmul.bf16.gmra.mxu0 %v1533
        %v2230 = vpop.f32.mrf.mxu0
        %v2231 = vadd.f32 %v2212, %v2230
        %v2232 = vpop.f32.mrf.mxu0
        %v2233 = vadd.f32 %v2214, %v2232
        %2234 = vmatmul.bf16.gmra.mxu0 %v1535
        %v2235 = vpop.f32.mrf.mxu0
        %v2236 = vadd.f32 %v2217, %v2235
        %v2237 = vpop.f32.mrf.mxu0
        %v2238 = vadd.f32 %v2219, %v2237
        %2239 = vdwg.mxu0
        %2240 = vmatpush.bf16.msra.mxu0 %v1979
        %2241 = vmatpush.bf16.msra.mxu0 %v1973
        %2242 = vmatpush.bf16.msra.mxu0 %v1967
        %2243 = vmatpush.bf16.msra.mxu0 %v1961
        %2244 = vmatpush.bf16.msra.mxu0 %v1955
        %2245 = vmatpush.bf16.msra.mxu0 %v1949
        %2246 = vmatpush.bf16.msra.mxu0 %v1943
        %2247 = vmatpush.bf16.msra.mxu0 %v1937
        %2248 = vmatmul.bf16.gmra.mxu0 %v1532
        %v2249 = vpop.f32.mrf.mxu0
        %v2250 = vadd.f32 %v1637, %v2249
        %v2251 = vpop.f32.mrf.mxu0
        %v2252 = vadd.f32 %v1637, %v2251
        %2253 = vmatmul.bf16.gmra.mxu0 %v1534
        %v2254 = vpop.f32.mrf.mxu0
        %v2255 = vadd.f32 %v1637, %v2254
        %v2256 = vpop.f32.mrf.mxu0
        %v2257 = vadd.f32 %v1637, %v2256
        %2258 = vdwg.mxu0
        %2259 = vmatpush.bf16.msra.mxu0 %v2027
        %2260 = vmatpush.bf16.msra.mxu0 %v2021
        %2261 = vmatpush.bf16.msra.mxu0 %v2015
        %2262 = vmatpush.bf16.msra.mxu0 %v2009
        %2263 = vmatpush.bf16.msra.mxu0 %v2003
        %2264 = vmatpush.bf16.msra.mxu0 %v1997
        %2265 = vmatpush.bf16.msra.mxu0 %v1991
        %2266 = vmatpush.bf16.msra.mxu0 %v1985
        %2267 = vmatmul.bf16.gmra.mxu0 %v1533
        %v2268 = vpop.f32.mrf.mxu0
        %v2269 = vadd.f32 %v2250, %v2268
        %v2270 = vpop.f32.mrf.mxu0
        %v2271 = vadd.f32 %v2252, %v2270
        %2272 = vmatmul.bf16.gmra.mxu0 %v1535
        %v2273 = vpop.f32.mrf.mxu0
        %v2274 = vadd.f32 %v2255, %v2273
        %v2275 = vpop.f32.mrf.mxu0
        %v2276 = vadd.f32 %v2257, %v2275
        %2277 = vdwg.mxu0
        %2278 = vmatpush.bf16.msra.mxu0 %v1980
        %2279 = vmatpush.bf16.msra.mxu0 %v1974
        %2280 = vmatpush.bf16.msra.mxu0 %v1968
        %2281 = vmatpush.bf16.msra.mxu0 %v1962
        %2282 = vmatpush.bf16.msra.mxu0 %v1956
        %2283 = vmatpush.bf16.msra.mxu0 %v1950
        %2284 = vmatpush.bf16.msra.mxu0 %v1944
        %2285 = vmatpush.bf16.msra.mxu0 %v1938
        %2286 = vmatmul.bf16.gmra.mxu0 %v1532
        %v2287 = vpop.f32.mrf.mxu0
        %v2288 = vadd.f32 %v1638, %v2287
        %v2289 = vpop.f32.mrf.mxu0
        %v2290 = vadd.f32 %v1638, %v2289
        %2291 = vmatmul.bf16.gmra.mxu0 %v1534
        %v2292 = vpop.f32.mrf.mxu0
        %v2293 = vadd.f32 %v1638, %v2292
        %v2294 = vpop.f32.mrf.mxu0
        %v2295 = vadd.f32 %v1638, %v2294
        %2296 = vdwg.mxu0
        %2297 = vmatpush.bf16.msra.mxu0 %v2028
        %2298 = vmatpush.bf16.msra.mxu0 %v2022
        %2299 = vmatpush.bf16.msra.mxu0 %v2016
        %2300 = vmatpush.bf16.msra.mxu0 %v2010
        %2301 = vmatpush.bf16.msra.mxu0 %v2004
        %2302 = vmatpush.bf16.msra.mxu0 %v1998
        %2303 = vmatpush.bf16.msra.mxu0 %v1992
        %2304 = vmatpush.bf16.msra.mxu0 %v1986
        %2305 = vmatmul.bf16.gmra.mxu0 %v1533
        %v2306 = vpop.f32.mrf.mxu0
        %v2307 = vadd.f32 %v2288, %v2306
        %v2308 = vpop.f32.mrf.mxu0
        %v2309 = vadd.f32 %v2290, %v2308
        %2310 = vmatmul.bf16.gmra.mxu0 %v1535
        %v2311 = vpop.f32.mrf.mxu0
        %v2312 = vadd.f32 %v2293, %v2311
        %v2313 = vpop.f32.mrf.mxu0
        %v2314 = vadd.f32 %v2295, %v2313
        %2315 = vdwg.mxu0
        %2316 = vmatpush.bf16.msra.mxu0 %v1981
        %2317 = vmatpush.bf16.msra.mxu0 %v1975
        %2318 = vmatpush.bf16.msra.mxu0 %v1969
        %2319 = vmatpush.bf16.msra.mxu0 %v1963
        %2320 = vmatpush.bf16.msra.mxu0 %v1957
        %2321 = vmatpush.bf16.msra.mxu0 %v1951
        %2322 = vmatpush.bf16.msra.mxu0 %v1945
        %2323 = vmatpush.bf16.msra.mxu0 %v1939
        %2324 = vmatmul.bf16.gmra.mxu0 %v1532
        %v2325 = vpop.f32.mrf.mxu0
        %v2326 = vadd.f32 %v1639, %v2325
        %v2327 = vpop.f32.mrf.mxu0
        %v2328 = vadd.f32 %v1639, %v2327
        %2329 = vmatmul.bf16.gmra.mxu0 %v1534
        %v2330 = vpop.f32.mrf.mxu0
        %v2331 = vadd.f32 %v1639, %v2330
        %v2332 = vpop.f32.mrf.mxu0
        %v2333 = vadd.f32 %v1639, %v2332
        %2334 = vdwg.mxu0
        %2335 = vmatpush.bf16.msra.mxu0 %v2029
        %2336 = vmatpush.bf16.msra.mxu0 %v2023
        %2337 = vmatpush.bf16.msra.mxu0 %v2017
        %2338 = vmatpush.bf16.msra.mxu0 %v2011
        %2339 = vmatpush.bf16.msra.mxu0 %v2005
        %2340 = vmatpush.bf16.msra.mxu0 %v1999
        %2341 = vmatpush.bf16.msra.mxu0 %v1993
        %2342 = vmatpush.bf16.msra.mxu0 %v1987
        %2343 = vmatmul.bf16.gmra.mxu0 %v1533
        %v2344 = vpop.f32.mrf.mxu0
        %v2345 = vadd.f32 %v2326, %v2344
        %v2346 = vpop.f32.mrf.mxu0
        %v2347 = vadd.f32 %v2328, %v2346
        %2348 = vmatmul.bf16.gmra.mxu0 %v1535
        %v2349 = vpop.f32.mrf.mxu0
        %v2350 = vadd.f32 %v2331, %v2349
        %v2351 = vpop.f32.mrf.mxu0
        %v2352 = vadd.f32 %v2333, %v2351
        %2353 = vdwg.mxu0
        %v2354 = vld [vmem:[%s1165] sm:$0xff]
        %v2355 = vld [vmem:[%s1165 + $0x8] sm:$0xff]
        %v2356 = vld [vmem:[%s1165 + $0x10] sm:$0xff]
        %v2357 = vld [vmem:[%s1165 + $0x18] sm:$0xff]
        %v2358 = vld [vmem:[%s1165 + $0x20] sm:$0xff]
        %v2359 = vld [vmem:[%s1165 + $0x28] sm:$0xff]
        %v2360 = vld [vmem:[%s1165 + $0x30] sm:$0xff]
        %v2361 = vld [vmem:[%s1165 + $0x38] sm:$0xff]
        %v2362 = vld [vmem:[%s1165 + $0x40] sm:$0xff]
        %v2363 = vld [vmem:[%s1165 + $0x48] sm:$0xff]
        %v2364 = vld [vmem:[%s1165 + $0x50] sm:$0xff]
        %v2365 = vld [vmem:[%s1165 + $0x58] sm:$0xff]
        %v2366 = vld [vmem:[%s1165 + $0x60] sm:$0xff]
        %v2367 = vld [vmem:[%s1165 + $0x68] sm:$0xff]
        %v2368 = vld [vmem:[%s1165 + $0x70] sm:$0xff]
        %v2369 = vld [vmem:[%s1165 + $0x78] sm:$0xff]
        %v2370 = vld [vmem:[%s1165 + $0x80] sm:$0xff]
        %v2371 = vld [vmem:[%s1165 + $0x88] sm:$0xff]
        %v2372 = vld [vmem:[%s1165 + $0x90] sm:$0xff]
        %v2373 = vld [vmem:[%s1165 + $0x98] sm:$0xff]
        %v2374 = vld [vmem:[%s1165 + $0xa0] sm:$0xff]
        %v2375 = vld [vmem:[%s1165 + $0xa8] sm:$0xff]
        %v2376 = vld [vmem:[%s1165 + $0xb0] sm:$0xff]
        %v2377 = vld [vmem:[%s1165 + $0xb8] sm:$0xff]
        %v2378 = vld [vmem:[%s1165 + $0xc0] sm:$0xff]
        %v2379 = vld [vmem:[%s1165 + $0xc8] sm:$0xff]
        %v2380 = vld [vmem:[%s1165 + $0xd0] sm:$0xff]
        %v2381 = vld [vmem:[%s1165 + $0xd8] sm:$0xff]
        %v2382 = vld [vmem:[%s1165 + $0xe0] sm:$0xff]
        %v2383 = vld [vmem:[%s1165 + $0xe8] sm:$0xff]
        %v2384 = vld [vmem:[%s1165 + $0xf0] sm:$0xff]
        %v2385 = vld [vmem:[%s1165 + $0xf8] sm:$0xff]
        %v2386 = vld [vmem:[%s1175] sm:$0x3]
        %v2387 = vpack.c.bf16 %v2193, %v2155
        %v2388 = vpack.c.bf16 %v2195, %v2157
        %v2389 = vpack.c.bf16 %v2198, %v2160
        %v2390 = vpack.c.bf16 %v2200, %v2162
        %v2391 = vpack.c.bf16 %v2269, %v2231
        %v2392 = vpack.c.bf16 %v2271, %v2233
        %v2393 = vpack.c.bf16 %v2274, %v2236
        %v2394 = vpack.c.bf16 %v2276, %v2238
        %v2395 = vpack.c.bf16 %v2345, %v2307
        %v2396 = vpack.c.bf16 %v2347, %v2309
        %v2397 = vpack.c.bf16 %v2350, %v2312
        %v2398 = vpack.c.bf16 %v2352, %v2314
        %v2403 = vunpack.c.l.b16 %v2387
        %v2404 = vunpack.c.l.b16 %v2388
        %v2405 = vunpack.c.l.b16 %v2389
        %v2406 = vunpack.c.l.b16 %v2390
        %v2407 = vpack.c.b16 %v2404, %v2403
        %v2408 = vpack.c.b16 %v2406, %v2405
        %v2415 = vunpack.c.l.b16 %v2391
        %v2416 = vunpack.c.l.b16 %v2392
        %v2417 = vunpack.c.l.b16 %v2393
        %v2418 = vunpack.c.l.b16 %v2394
        %v2419 = vpack.c.b16 %v2416, %v2415
        %v2420 = vpack.c.b16 %v2418, %v2417
        %2423 = vmatpush.bf16.xpose.msra.mxu0 0
        %2424 = vmatpush.bf16.xpose.msra.mxu0 0
        %2425 = vmatpush.bf16.xpose.msra.mxu0 0
        %2426 = vmatpush.bf16.xpose.msra.mxu0 0
        %2427 = vmatpush.bf16.xpose.msra.mxu0 0
        %2428 = vmatpush.bf16.xpose.msra.mxu0 0
        %2429 = vmatpush.bf16.xpose.msra.mxu0 %v2420
        %2430 = vmatpush.bf16.xpose.msra.mxu0 %v2419
        %2431 = vmatmul.bf16.gmra.mxu0 %v2407
        %v2432 = vpop.f32.mrf.mxu0
        %v2433 = vadd.f32 0.0, %v2432
        %v2434 = vpop.f32.mrf.mxu0
        %v2435 = vadd.f32 0.0, %v2434
        %2436 = vmatmul.bf16.gmra.mxu0 %v2408
        %v2437 = vpop.f32.mrf.mxu0
        %v2438 = vadd.f32 0.0, %v2437
        %v2439 = vpop.f32.mrf.mxu0
        %v2440 = vadd.f32 0.0, %v2439
        %2441 = vdwg.mxu0
        %v2442 = vmul.f32 %v2433, 0.088388346
        %v2443 = vmul.f32 %v2435, 0.088388346
        %v2444 = vmul.f32 %v2438, 0.088388346
        %v2445 = vmul.f32 %v2440, 0.088388346
        %v2446 = vadd.f32 %v2442, %v1500
        %v2447 = vadd.f32 %v2443, %v1501
        %v2448 = vadd.f32 %v2444, %v1502
        %v2449 = vadd.f32 %v2445, %v1503
        %vm2450 = vcmask 261120
        %v2451 = vsel %vm2450, %v2446, -inf
        %2452 = vmax.xlane.f32.xlu0 %v2451
        %v2453 = vpop.xlane.xlu0 %2452
        %v2454 = vsel %vm2450, %v2447, -inf
        %2455 = vmax.xlane.f32.xlu0 %v2454
        %v2456 = vpop.xlane.xlu0 %2455
        %v2457 = vsel %vm2450, %v2448, -inf
        %2458 = vmax.xlane.f32.xlu0 %v2457
        %v2459 = vpop.xlane.xlu0 %2458
        %v2460 = vsel %vm2450, %v2449, -inf
        %2461 = vmax.xlane.f32.xlu0 %v2460
        %v2462 = vpop.xlane.xlu0 %2461
        %v2463 = vsub.f32 %v2446, %v2453
        %v2464 = vsub.f32 %v2447, %v2456
        %v2465 = vsub.f32 %v2448, %v2459
        %v2466 = vsub.f32 %v2449, %v2462
        %v2467 = vmul.f32 %v2463, 1.442695
        %v2468 = vpow.pop %v2467
        %v2469 = vmul.f32 %v2464, 1.442695
        %v2470 = vpow.pop %v2469
        %v2471 = vmul.f32 %v2465, 1.442695
        %v2472 = vpow.pop %v2471
        %v2473 = vmul.f32 %v2466, 1.442695
        %v2474 = vpow.pop %v2473
        %v2475 = vsel %vm2450, %v2468, 0.0
        %2476 = vadd.xlane.f32.xlu0 %v2475
        %v2477 = vpop.xlane.xlu0 %2476
        %v2478 = vsel %vm2450, %v2470, 0.0
        %2479 = vadd.xlane.f32.xlu0 %v2478
        %v2480 = vpop.xlane.xlu0 %2479
        %v2481 = vsel %vm2450, %v2472, 0.0
        %2482 = vadd.xlane.f32.xlu0 %v2481
        %v2483 = vpop.xlane.xlu0 %2482
        %v2484 = vsel %vm2450, %v2474, 0.0
        %2485 = vadd.xlane.f32.xlu0 %v2484
        %v2486 = vpop.xlane.xlu0 %2485
        %v2487 = vrcp.pop %v2477
        %v2488 = vmul.f32 %v2477, %v2487
        %v2489 = vsub.f32 1.0, %v2488
        %v2490 = vmul.f32 %v2487, %v2489
        %v2491 = vadd.f32 %v2487, %v2490
        %vm2492 = vweird.f32 %v2477
        %vm2493 = vweird.f32 %v2487
        %vm2494 = vmor %vm2492, %vm2493
        %v2495 = vsel %vm2494, %v2487, %v2491
        %v2496 = vand.u32 2147483647, %v2477
        %vm2497 = vcmp.eq.f32.partialorder %v2496, 8.507059e+37
        %v2498 = vand.u32 %v2477, 2147483648
        %v2499 = vor.u32 1.1754944e-38, %v2498
        %v2500 = vsel %vm2497, %v2499, %v2495
        %v2501 = vmul.f32 %v2468, %v2500
        %v2502 = vrcp.pop %v2480
        %v2503 = vmul.f32 %v2480, %v2502
        %v2504 = vsub.f32 1.0, %v2503
        %v2505 = vmul.f32 %v2502, %v2504
        %v2506 = vadd.f32 %v2502, %v2505
        %vm2507 = vweird.f32 %v2480
        %vm2508 = vweird.f32 %v2502
        %vm2509 = vmor %vm2507, %vm2508
        %v2510 = vsel %vm2509, %v2502, %v2506
        %v2511 = vand.u32 2147483647, %v2480
        %vm2512 = vcmp.eq.f32.partialorder %v2511, 8.507059e+37
        %v2513 = vand.u32 %v2480, 2147483648
        %v2514 = vor.u32 1.1754944e-38, %v2513
        %v2515 = vsel %vm2512, %v2514, %v2510
        %v2516 = vmul.f32 %v2470, %v2515
        %v2517 = vrcp.pop %v2483
        %v2518 = vmul.f32 %v2483, %v2517
        %v2519 = vsub.f32 1.0, %v2518
        %v2520 = vmul.f32 %v2517, %v2519
        %v2521 = vadd.f32 %v2517, %v2520
        %vm2522 = vweird.f32 %v2483
        %vm2523 = vweird.f32 %v2517
        %vm2524 = vmor %vm2522, %vm2523
        %v2525 = vsel %vm2524, %v2517, %v2521
        %v2526 = vand.u32 2147483647, %v2483
        %vm2527 = vcmp.eq.f32.partialorder %v2526, 8.507059e+37
        %v2528 = vand.u32 %v2483, 2147483648
        %v2529 = vor.u32 1.1754944e-38, %v2528
        %v2530 = vsel %vm2527, %v2529, %v2525
        %v2531 = vmul.f32 %v2472, %v2530
        %v2532 = vrcp.pop %v2486
        %v2533 = vmul.f32 %v2486, %v2532
        %v2534 = vsub.f32 1.0, %v2533
        %v2535 = vmul.f32 %v2532, %v2534
        %v2536 = vadd.f32 %v2532, %v2535
        %vm2537 = vweird.f32 %v2486
        %vm2538 = vweird.f32 %v2532
        %vm2539 = vmor %vm2537, %vm2538
        %v2540 = vsel %vm2539, %v2532, %v2536
        %v2541 = vand.u32 2147483647, %v2486
        %vm2542 = vcmp.eq.f32.partialorder %v2541, 8.507059e+37
        %v2543 = vand.u32 %v2486, 2147483648
        %v2544 = vor.u32 1.1754944e-38, %v2543
        %v2545 = vsel %vm2542, %v2544, %v2540
        %v2546 = vmul.f32 %v2474, %v2545
        %v2547 = vpack.c.bf16 %v2516, %v2501
        %v2548 = vpack.c.bf16 %v2546, %v2531
        %v2553 = vunpack.c.l.b16 %v2395
        %v2554 = vunpack.c.l.b16 %v2396
        %v2555 = vunpack.c.l.b16 %v2397
        %v2556 = vunpack.c.l.b16 %v2398
        %v2557 = vpack.c.b16 %v2554, %v2553
        %v2558 = vpack.c.b16 %v2556, %v2555
        %v2562 = vsel %vm2450, %v2547, 0
        %v2565 = vsel %vm2450, %v2548, 0
        %2567 = vmatpush.bf16.msra.mxu0 0
        %2568 = vmatpush.bf16.msra.mxu0 0
        %2569 = vmatpush.bf16.msra.mxu0 0
        %2570 = vmatpush.bf16.msra.mxu0 0
        %2571 = vmatpush.bf16.msra.mxu0 0
        %2572 = vmatpush.bf16.msra.mxu0 0
        %2573 = vmatpush.bf16.msra.mxu0 %v2558
        %2574 = vmatpush.bf16.msra.mxu0 %v2557
        %2575 = vmatmul.bf16.gmra.mxu0 %v2562
        %v2576 = vpop.f32.mrf.mxu0
        %v2577 = vadd.f32 0.0, %v2576
        %v2578 = vpop.f32.mrf.mxu0
        %v2579 = vadd.f32 0.0, %v2578
        %2580 = vmatmul.bf16.gmra.mxu0 %v2565
        %v2581 = vpop.f32.mrf.mxu0
        %v2582 = vadd.f32 0.0, %v2581
        %v2583 = vpop.f32.mrf.mxu0
        %v2584 = vadd.f32 0.0, %v2583
        %2585 = vdwg.mxu0
        %v2586 = vunpack.c.h.b16 %v2387
        %v2587 = vunpack.c.h.b16 %v2388
        %v2588 = vunpack.c.h.b16 %v2389
        %v2589 = vunpack.c.h.b16 %v2390
        %v2590 = vpack.c.b16 %v2587, %v2586
        %v2591 = vpack.c.b16 %v2589, %v2588
        %v2594 = vunpack.c.h.b16 %v2391
        %v2595 = vunpack.c.h.b16 %v2392
        %v2596 = vunpack.c.h.b16 %v2393
        %v2597 = vunpack.c.h.b16 %v2394
        %v2598 = vpack.c.b16 %v2595, %v2594
        %v2599 = vpack.c.b16 %v2597, %v2596
        %2602 = vmatpush.bf16.xpose.msra.mxu0 0
        %2603 = vmatpush.bf16.xpose.msra.mxu0 0
        %2604 = vmatpush.bf16.xpose.msra.mxu0 0
        %2605 = vmatpush.bf16.xpose.msra.mxu0 0
        %2606 = vmatpush.bf16.xpose.msra.mxu0 0
        %2607 = vmatpush.bf16.xpose.msra.mxu0 0
        %2608 = vmatpush.bf16.xpose.msra.mxu0 %v2599
        %2609 = vmatpush.bf16.xpose.msra.mxu0 %v2598
        %2610 = vmatmul.bf16.gmra.mxu0 %v2590
        %v2611 = vpop.f32.mrf.mxu0
        %v2612 = vadd.f32 0.0, %v2611
        %v2613 = vpop.f32.mrf.mxu0
        %v2614 = vadd.f32 0.0, %v2613
        %2615 = vmatmul.bf16.gmra.mxu0 %v2591
        %v2616 = vpop.f32.mrf.mxu0
        %v2617 = vadd.f32 0.0, %v2616
        %v2618 = vpop.f32.mrf.mxu0
        %v2619 = vadd.f32 0.0, %v2618
        %2620 = vdwg.mxu0
        %v2621 = vmul.f32 %v2612, 0.088388346
        %v2622 = vmul.f32 %v2614, 0.088388346
        %v2623 = vmul.f32 %v2617, 0.088388346
        %v2624 = vmul.f32 %v2619, 0.088388346
        %v2625 = vadd.f32 %v2621, %v1500
        %v2626 = vadd.f32 %v2622, %v1501
        %v2627 = vadd.f32 %v2623, %v1502
        %v2628 = vadd.f32 %v2624, %v1503
        %v2629 = vsel %vm2450, %v2625, -inf
        %2630 = vmax.xlane.f32.xlu0 %v2629
        %v2631 = vpop.xlane.xlu0 %2630
        %v2632 = vsel %vm2450, %v2626, -inf
        %2633 = vmax.xlane.f32.xlu0 %v2632
        %v2634 = vpop.xlane.xlu0 %2633
        %v2635 = vsel %vm2450, %v2627, -inf
        %2636 = vmax.xlane.f32.xlu0 %v2635
        %v2637 = vpop.xlane.xlu0 %2636
        %v2638 = vsel %vm2450, %v2628, -inf
        %2639 = vmax.xlane.f32.xlu0 %v2638
        %v2640 = vpop.xlane.xlu0 %2639
        %v2641 = vsub.f32 %v2625, %v2631
        %v2642 = vsub.f32 %v2626, %v2634
        %v2643 = vsub.f32 %v2627, %v2637
        %v2644 = vsub.f32 %v2628, %v2640
        %v2645 = vmul.f32 %v2641, 1.442695
        %v2646 = vpow.pop %v2645
        %v2647 = vmul.f32 %v2642, 1.442695
        %v2648 = vpow.pop %v2647
        %v2649 = vmul.f32 %v2643, 1.442695
        %v2650 = vpow.pop %v2649
        %v2651 = vmul.f32 %v2644, 1.442695
        %v2652 = vpow.pop %v2651
        %v2653 = vsel %vm2450, %v2646, 0.0
        %2654 = vadd.xlane.f32.xlu0 %v2653
        %v2655 = vpop.xlane.xlu0 %2654
        %v2656 = vsel %vm2450, %v2648, 0.0
        %2657 = vadd.xlane.f32.xlu0 %v2656
        %v2658 = vpop.xlane.xlu0 %2657
        %v2659 = vsel %vm2450, %v2650, 0.0
        %2660 = vadd.xlane.f32.xlu0 %v2659
        %v2661 = vpop.xlane.xlu0 %2660
        %v2662 = vsel %vm2450, %v2652, 0.0
        %2663 = vadd.xlane.f32.xlu0 %v2662
        %v2664 = vpop.xlane.xlu0 %2663
        %v2665 = vrcp.pop %v2655
        %v2666 = vmul.f32 %v2655, %v2665
        %v2667 = vsub.f32 1.0, %v2666
        %v2668 = vmul.f32 %v2665, %v2667
        %v2669 = vadd.f32 %v2665, %v2668
        %vm2670 = vweird.f32 %v2655
        %vm2671 = vweird.f32 %v2665
        %vm2672 = vmor %vm2670, %vm2671
        %v2673 = vsel %vm2672, %v2665, %v2669
        %v2674 = vand.u32 2147483647, %v2655
        %vm2675 = vcmp.eq.f32.partialorder %v2674, 8.507059e+37
        %v2676 = vand.u32 %v2655, 2147483648
        %v2677 = vor.u32 1.1754944e-38, %v2676
        %v2678 = vsel %vm2675, %v2677, %v2673
        %v2679 = vmul.f32 %v2646, %v2678
        %v2680 = vrcp.pop %v2658
        %v2681 = vmul.f32 %v2658, %v2680
        %v2682 = vsub.f32 1.0, %v2681
        %v2683 = vmul.f32 %v2680, %v2682
        %v2684 = vadd.f32 %v2680, %v2683
        %vm2685 = vweird.f32 %v2658
        %vm2686 = vweird.f32 %v2680
        %vm2687 = vmor %vm2685, %vm2686
        %v2688 = vsel %vm2687, %v2680, %v2684
        %v2689 = vand.u32 2147483647, %v2658
        %vm2690 = vcmp.eq.f32.partialorder %v2689, 8.507059e+37
        %v2691 = vand.u32 %v2658, 2147483648
        %v2692 = vor.u32 1.1754944e-38, %v2691
        %v2693 = vsel %vm2690, %v2692, %v2688
        %v2694 = vmul.f32 %v2648, %v2693
        %v2695 = vrcp.pop %v2661
        %v2696 = vmul.f32 %v2661, %v2695
        %v2697 = vsub.f32 1.0, %v2696
        %v2698 = vmul.f32 %v2695, %v2697
        %v2699 = vadd.f32 %v2695, %v2698
        %vm2700 = vweird.f32 %v2661
        %vm2701 = vweird.f32 %v2695
        %vm2702 = vmor %vm2700, %vm2701
        %v2703 = vsel %vm2702, %v2695, %v2699
        %v2704 = vand.u32 2147483647, %v2661
        %vm2705 = vcmp.eq.f32.partialorder %v2704, 8.507059e+37
        %v2706 = vand.u32 %v2661, 2147483648
        %v2707 = vor.u32 1.1754944e-38, %v2706
        %v2708 = vsel %vm2705, %v2707, %v2703
        %v2709 = vmul.f32 %v2650, %v2708
        %v2710 = vrcp.pop %v2664
        %v2711 = vmul.f32 %v2664, %v2710
        %v2712 = vsub.f32 1.0, %v2711
        %v2713 = vmul.f32 %v2710, %v2712
        %v2714 = vadd.f32 %v2710, %v2713
        %vm2715 = vweird.f32 %v2664
        %vm2716 = vweird.f32 %v2710
        %vm2717 = vmor %vm2715, %vm2716
        %v2718 = vsel %vm2717, %v2710, %v2714
        %v2719 = vand.u32 2147483647, %v2664
        %vm2720 = vcmp.eq.f32.partialorder %v2719, 8.507059e+37
        %v2721 = vand.u32 %v2664, 2147483648
        %v2722 = vor.u32 1.1754944e-38, %v2721
        %v2723 = vsel %vm2720, %v2722, %v2718
        %v2724 = vmul.f32 %v2652, %v2723
        %v2725 = vpack.c.bf16 %v2694, %v2679
        %v2726 = vpack.c.bf16 %v2724, %v2709
        %v2727 = vunpack.c.h.b16 %v2395
        %v2728 = vunpack.c.h.b16 %v2396
        %v2729 = vunpack.c.h.b16 %v2397
        %v2730 = vunpack.c.h.b16 %v2398
        %v2731 = vpack.c.b16 %v2728, %v2727
        %v2732 = vpack.c.b16 %v2730, %v2729
        %v2736 = vsel %vm2450, %v2725, 0
        %v2739 = vsel %vm2450, %v2726, 0
        %2741 = vmatpush.bf16.msra.mxu0 0
        %2742 = vmatpush.bf16.msra.mxu0 0
        %2743 = vmatpush.bf16.msra.mxu0 0
        %2744 = vmatpush.bf16.msra.mxu0 0
        %2745 = vmatpush.bf16.msra.mxu0 0
        %2746 = vmatpush.bf16.msra.mxu0 0
        %2747 = vmatpush.bf16.msra.mxu0 %v2732
        %2748 = vmatpush.bf16.msra.mxu0 %v2731
        %2749 = vmatmul.bf16.gmra.mxu0 %v2736
        %v2750 = vpop.f32.mrf.mxu0
        %v2751 = vadd.f32 0.0, %v2750
        %v2752 = vpop.f32.mrf.mxu0
        %v2753 = vadd.f32 0.0, %v2752
        %2754 = vmatmul.bf16.gmra.mxu0 %v2739
        %v2755 = vpop.f32.mrf.mxu0
        %v2756 = vadd.f32 0.0, %v2755
        %v2757 = vpop.f32.mrf.mxu0
        %v2758 = vadd.f32 0.0, %v2757
        %2759 = vdwg.mxu0
        %v2760 = vpack.c.bf16 %v2579, %v2577
        %v2761 = vpack.c.bf16 %v2753, %v2751
        %v2762 = vpack.c.bf16 %v2584, %v2582
        %v2763 = vpack.c.bf16 %v2758, %v2756
        %v2765 = vperm.slane %v2386, 0
        %v2766 = vperm.slane %v2386, 1
        %v2801 = vunpack.c.l.b16 %v2354
        %v2802 = vunpack.c.h.b16 %v2354
        %v2803 = vunpack.c.l.b16 %v2355
        %v2804 = vunpack.c.h.b16 %v2355
        %v2805 = vunpack.c.l.b16 %v2356
        %v2806 = vunpack.c.h.b16 %v2356
        %v2807 = vunpack.c.l.b16 %v2357
        %v2808 = vunpack.c.h.b16 %v2357
        %v2809 = vunpack.c.l.b16 %v2358
        %v2810 = vunpack.c.h.b16 %v2358
        %v2811 = vunpack.c.l.b16 %v2359
        %v2812 = vunpack.c.h.b16 %v2359
        %v2813 = vunpack.c.l.b16 %v2360
        %v2814 = vunpack.c.h.b16 %v2360
        %v2815 = vunpack.c.l.b16 %v2361
        %v2816 = vunpack.c.h.b16 %v2361
        %v2817 = vunpack.c.l.b16 %v2362
        %v2818 = vunpack.c.h.b16 %v2362
        %v2819 = vunpack.c.l.b16 %v2363
        %v2820 = vunpack.c.h.b16 %v2363
        %v2821 = vunpack.c.l.b16 %v2364
        %v2822 = vunpack.c.h.b16 %v2364
        %v2823 = vunpack.c.l.b16 %v2365
        %v2824 = vunpack.c.h.b16 %v2365
        %v2825 = vunpack.c.l.b16 %v2366
        %v2826 = vunpack.c.h.b16 %v2366
        %v2827 = vunpack.c.l.b16 %v2367
        %v2828 = vunpack.c.h.b16 %v2367
        %v2829 = vunpack.c.l.b16 %v2368
        %v2830 = vunpack.c.h.b16 %v2368
        %v2831 = vunpack.c.l.b16 %v2369
        %v2832 = vunpack.c.h.b16 %v2369
        %v2833 = vunpack.c.l.b16 %v2370
        %v2834 = vunpack.c.h.b16 %v2370
        %v2835 = vunpack.c.l.b16 %v2371
        %v2836 = vunpack.c.h.b16 %v2371
        %v2837 = vunpack.c.l.b16 %v2372
        %v2838 = vunpack.c.h.b16 %v2372
        %v2839 = vunpack.c.l.b16 %v2373
        %v2840 = vunpack.c.h.b16 %v2373
        %v2841 = vunpack.c.l.b16 %v2374
        %v2842 = vunpack.c.h.b16 %v2374
        %v2843 = vunpack.c.l.b16 %v2375
        %v2844 = vunpack.c.h.b16 %v2375
        %v2845 = vunpack.c.l.b16 %v2376
        %v2846 = vunpack.c.h.b16 %v2376
        %v2847 = vunpack.c.l.b16 %v2377
        %v2848 = vunpack.c.h.b16 %v2377
        %v2849 = vunpack.c.l.b16 %v2378
        %v2850 = vunpack.c.h.b16 %v2378
        %v2851 = vunpack.c.l.b16 %v2379
        %v2852 = vunpack.c.h.b16 %v2379
        %v2853 = vunpack.c.l.b16 %v2380
        %v2854 = vunpack.c.h.b16 %v2380
        %v2855 = vunpack.c.l.b16 %v2381
        %v2856 = vunpack.c.h.b16 %v2381
        %v2857 = vunpack.c.l.b16 %v2382
        %v2858 = vunpack.c.h.b16 %v2382
        %v2859 = vunpack.c.l.b16 %v2383
        %v2860 = vunpack.c.h.b16 %v2383
        %v2861 = vunpack.c.l.b16 %v2384
        %v2862 = vunpack.c.h.b16 %v2384
        %v2863 = vunpack.c.l.b16 %v2385
        %v2864 = vunpack.c.h.b16 %v2385
        %v2865 = vpack.c.b16 %v2803, %v2801
        %v2866 = vpack.c.b16 %v2804, %v2802
        %v2867 = vpack.c.b16 %v2807, %v2805
        %v2868 = vpack.c.b16 %v2808, %v2806
        %v2869 = vpack.c.b16 %v2811, %v2809
        %v2870 = vpack.c.b16 %v2812, %v2810
        %v2871 = vpack.c.b16 %v2815, %v2813
        %v2872 = vpack.c.b16 %v2816, %v2814
        %v2873 = vpack.c.b16 %v2819, %v2817
        %v2874 = vpack.c.b16 %v2820, %v2818
        %v2875 = vpack.c.b16 %v2823, %v2821
        %v2876 = vpack.c.b16 %v2824, %v2822
        %v2877 = vpack.c.b16 %v2827, %v2825
        %v2878 = vpack.c.b16 %v2828, %v2826
        %v2879 = vpack.c.b16 %v2831, %v2829
        %v2880 = vpack.c.b16 %v2832, %v2830
        %v2881 = vpack.c.b16 %v2835, %v2833
        %v2882 = vpack.c.b16 %v2836, %v2834
        %v2883 = vpack.c.b16 %v2839, %v2837
        %v2884 = vpack.c.b16 %v2840, %v2838
        %v2885 = vpack.c.b16 %v2843, %v2841
        %v2886 = vpack.c.b16 %v2844, %v2842
        %v2887 = vpack.c.b16 %v2847, %v2845
        %v2888 = vpack.c.b16 %v2848, %v2846
        %v2889 = vpack.c.b16 %v2851, %v2849
        %v2890 = vpack.c.b16 %v2852, %v2850
        %v2891 = vpack.c.b16 %v2855, %v2853
        %v2892 = vpack.c.b16 %v2856, %v2854
        %v2893 = vpack.c.b16 %v2859, %v2857
        %v2894 = vpack.c.b16 %v2860, %v2858
        %v2895 = vpack.c.b16 %v2863, %v2861
        %v2896 = vpack.c.b16 %v2864, %v2862
        %2929 = vmatpush.bf16.msra.mxu0 %v2879
        %2930 = vmatpush.bf16.msra.mxu0 %v2877
        %2931 = vmatpush.bf16.msra.mxu0 %v2875
        %2932 = vmatpush.bf16.msra.mxu0 %v2873
        %2933 = vmatpush.bf16.msra.mxu0 %v2871
        %2934 = vmatpush.bf16.msra.mxu0 %v2869
        %2935 = vmatpush.bf16.msra.mxu0 %v2867
        %2936 = vmatpush.bf16.msra.mxu0 %v2865
        %2937 = vmatmul.bf16.gmra.mxu0 %v2760
        %v2938 = vpop.f32.mrf.mxu0
        %v2939 = vadd.f32 %v2765, %v2938
        %v2940 = vpop.f32.mrf.mxu0
        %v2941 = vadd.f32 %v2765, %v2940
        %2942 = vmatmul.bf16.gmra.mxu0 %v2762
        %v2943 = vpop.f32.mrf.mxu0
        %v2944 = vadd.f32 %v2765, %v2943
        %v2945 = vpop.f32.mrf.mxu0
        %v2946 = vadd.f32 %v2765, %v2945
        %2947 = vdwg.mxu0
        %2948 = vmatpush.bf16.msra.mxu0 %v2895
        %2949 = vmatpush.bf16.msra.mxu0 %v2893
        %2950 = vmatpush.bf16.msra.mxu0 %v2891
        %2951 = vmatpush.bf16.msra.mxu0 %v2889
        %2952 = vmatpush.bf16.msra.mxu0 %v2887
        %2953 = vmatpush.bf16.msra.mxu0 %v2885
        %2954 = vmatpush.bf16.msra.mxu0 %v2883
        %2955 = vmatpush.bf16.msra.mxu0 %v2881
        %2956 = vmatmul.bf16.gmra.mxu0 %v2761
        %v2957 = vpop.f32.mrf.mxu0
        %v2958 = vadd.f32 %v2939, %v2957
        %v2959 = vpop.f32.mrf.mxu0
        %v2960 = vadd.f32 %v2941, %v2959
        %2961 = vmatmul.bf16.gmra.mxu0 %v2763
        %v2962 = vpop.f32.mrf.mxu0
        %v2963 = vadd.f32 %v2944, %v2962
        %v2964 = vpop.f32.mrf.mxu0
        %v2965 = vadd.f32 %v2946, %v2964
        %2966 = vdwg.mxu0
        %2967 = vmatpush.bf16.msra.mxu0 %v2880
        %2968 = vmatpush.bf16.msra.mxu0 %v2878
        %2969 = vmatpush.bf16.msra.mxu0 %v2876
        %2970 = vmatpush.bf16.msra.mxu0 %v2874
        %2971 = vmatpush.bf16.msra.mxu0 %v2872
        %2972 = vmatpush.bf16.msra.mxu0 %v2870
        %2973 = vmatpush.bf16.msra.mxu0 %v2868
        %2974 = vmatpush.bf16.msra.mxu0 %v2866
        %2975 = vmatmul.bf16.gmra.mxu0 %v2760
        %v2976 = vpop.f32.mrf.mxu0
        %v2977 = vadd.f32 %v2766, %v2976
        %v2978 = vpop.f32.mrf.mxu0
        %v2979 = vadd.f32 %v2766, %v2978
        %2980 = vmatmul.bf16.gmra.mxu0 %v2762
        %v2981 = vpop.f32.mrf.mxu0
        %v2982 = vadd.f32 %v2766, %v2981
        %v2983 = vpop.f32.mrf.mxu0
        %v2984 = vadd.f32 %v2766, %v2983
        %2985 = vdwg.mxu0
        %2986 = vmatpush.bf16.msra.mxu0 %v2896
        %2987 = vmatpush.bf16.msra.mxu0 %v2894
        %2988 = vmatpush.bf16.msra.mxu0 %v2892
        %2989 = vmatpush.bf16.msra.mxu0 %v2890
        %2990 = vmatpush.bf16.msra.mxu0 %v2888
        %2991 = vmatpush.bf16.msra.mxu0 %v2886
        %2992 = vmatpush.bf16.msra.mxu0 %v2884
        %2993 = vmatpush.bf16.msra.mxu0 %v2882
        %2994 = vmatmul.bf16.gmra.mxu0 %v2761
        %v2995 = vpop.f32.mrf.mxu0
        %v2996 = vadd.f32 %v2977, %v2995
        %v2997 = vpop.f32.mrf.mxu0
        %v2998 = vadd.f32 %v2979, %v2997
        %2999 = vmatmul.bf16.gmra.mxu0 %v2763
        %v3000 = vpop.f32.mrf.mxu0
        %v3001 = vadd.f32 %v2982, %v3000
        %v3002 = vpop.f32.mrf.mxu0
        %v3003 = vadd.f32 %v2984, %v3002
        %3004 = vdwg.mxu0
        %v3005 = vadd.f32 %v1524, %v2958
        %v3006 = vadd.f32 %v1525, %v2996
        %v3007 = vadd.f32 %v1526, %v2960
        %v3008 = vadd.f32 %v1527, %v2998
        %v3009 = vadd.f32 %v1528, %v2963
        %v3010 = vadd.f32 %v1529, %v3001
        %v3011 = vadd.f32 %v1530, %v2965
        %v3012 = vadd.f32 %v1531, %v3003
        %v3013 = vld [vmem:[%s1483] sm:$0x3]
        %v3014 = vld [vmem:[%s1185] sm:$0x3]
        %v3015 = vadd.f32 %v3005, %v3006
        %3016 = vadd.xlane.f32.xlu0 %v3015
        %v3017 = vpop.xlane.xlu0 %3016
        %v3018 = vadd.f32 %v3007, %v3008
        %3019 = vadd.xlane.f32.xlu0 %v3018
        %v3020 = vpop.xlane.xlu0 %3019
        %v3021 = vadd.f32 %v3009, %v3010
        %3022 = vadd.xlane.f32.xlu0 %v3021
        %v3023 = vpop.xlane.xlu0 %3022
        %v3024 = vadd.f32 %v3011, %v3012
        %3025 = vadd.xlane.f32.xlu0 %v3024
        %v3026 = vpop.xlane.xlu0 %3025
        %v3027 = vrcp.pop 256.0
        %v3028 = vmul.f32 256.0, %v3027
        %v3029 = vsub.f32 1.0, %v3028
        %v3030 = vmul.f32 %v3027, %v3029
        %v3031 = vadd.f32 %v3027, %v3030
        %vm3032 = vweird.f32 %v3027
        %v3033 = vsel %vm3032, %v3027, %v3031
        %v3034 = vmul.f32 %v3017, %v3033
        %v3035 = vmul.f32 %v3020, %v3033
        %v3036 = vmul.f32 %v3023, %v3033
        %v3037 = vmul.f32 %v3026, %v3033
        %v3038 = vsub.f32 %v3005, %v3034
        %v3039 = vsub.f32 %v3006, %v3034
        %v3040 = vsub.f32 %v3007, %v3035
        %v3041 = vsub.f32 %v3008, %v3035
        %v3042 = vsub.f32 %v3009, %v3036
        %v3043 = vsub.f32 %v3010, %v3036
        %v3044 = vsub.f32 %v3011, %v3037
        %v3045 = vsub.f32 %v3012, %v3037
        %v3046 = vmul.f32 %v3038, %v3038
        %v3047 = vmul.f32 %v3039, %v3039
        %v3048 = vmul.f32 %v3040, %v3040
        %v3049 = vmul.f32 %v3041, %v3041
        %v3050 = vmul.f32 %v3042, %v3042
        %v3051 = vmul.f32 %v3043, %v3043
        %v3052 = vmul.f32 %v3044, %v3044
        %v3053 = vmul.f32 %v3045, %v3045
        %v3054 = vadd.f32 %v3046, %v3047
        %3055 = vadd.xlane.f32.xlu0 %v3054
        %v3056 = vpop.xlane.xlu0 %3055
        %v3057 = vadd.f32 %v3048, %v3049
        %3058 = vadd.xlane.f32.xlu0 %v3057
        %v3059 = vpop.xlane.xlu0 %3058
        %v3060 = vadd.f32 %v3050, %v3051
        %3061 = vadd.xlane.f32.xlu0 %v3060
        %v3062 = vpop.xlane.xlu0 %3061
        %v3063 = vadd.f32 %v3052, %v3053
        %3064 = vadd.xlane.f32.xlu0 %v3063
        %v3065 = vpop.xlane.xlu0 %3064
        %v3066 = vmul.f32 %v3056, %v3033
        %v3067 = vmul.f32 %v3059, %v3033
        %v3068 = vmul.f32 %v3062, %v3033
        %v3069 = vmul.f32 %v3065, %v3033
        %v3070 = vadd.f32 %v3066, 1e-05
        %v3071 = vadd.f32 %v3067, 1e-05
        %v3072 = vadd.f32 %v3068, 1e-05
        %v3073 = vadd.f32 %v3069, 1e-05
        %v3074 = vrsqrt.pop %v3070
        %v3075 = vmul.f32 %v3074, %v3070
        %v3076 = vmul.f32 %v3075, %v3074
        %v3077 = vmul.f32 0.5, %v3076
        %v3078 = vsub.f32 1.5, %v3077
        %v3079 = vmul.f32 %v3074, %v3078
        %vm3080 = vweird.f32 %v3070
        %vm3081 = vweird.f32 %v3074
        %vm3082 = vmor %vm3080, %vm3081
        %v3083 = vsel %vm3082, %v3074, %v3079
        %v3084 = vrsqrt.pop %v3071
        %v3085 = vmul.f32 %v3084, %v3071
        %v3086 = vmul.f32 %v3085, %v3084
        %v3087 = vmul.f32 0.5, %v3086
        %v3088 = vsub.f32 1.5, %v3087
        %v3089 = vmul.f32 %v3084, %v3088
        %vm3090 = vweird.f32 %v3071
        %vm3091 = vweird.f32 %v3084
        %vm3092 = vmor %vm3090, %vm3091
        %v3093 = vsel %vm3092, %v3084, %v3089
        %v3094 = vrsqrt.pop %v3072
        %v3095 = vmul.f32 %v3094, %v3072
        %v3096 = vmul.f32 %v3095, %v3094
        %v3097 = vmul.f32 0.5, %v3096
        %v3098 = vsub.f32 1.5, %v3097
        %v3099 = vmul.f32 %v3094, %v3098
        %vm3100 = vweird.f32 %v3072
        %vm3101 = vweird.f32 %v3094
        %vm3102 = vmor %vm3100, %vm3101
        %v3103 = vsel %vm3102, %v3094, %v3099
        %v3104 = vrsqrt.pop %v3073
        %v3105 = vmul.f32 %v3104, %v3073
        %v3106 = vmul.f32 %v3105, %v3104
        %v3107 = vmul.f32 0.5, %v3106
        %v3108 = vsub.f32 1.5, %v3107
        %v3109 = vmul.f32 %v3104, %v3108
        %vm3110 = vweird.f32 %v3073
        %vm3111 = vweird.f32 %v3104
        %vm3112 = vmor %vm3110, %vm3111
        %v3113 = vsel %vm3112, %v3104, %v3109
        %v3114 = vmul.f32 %v3038, %v3083
        %v3115 = vmul.f32 %v3039, %v3083
        %v3116 = vmul.f32 %v3040, %v3093
        %v3117 = vmul.f32 %v3041, %v3093
        %v3118 = vmul.f32 %v3042, %v3103
        %v3119 = vmul.f32 %v3043, %v3103
        %v3120 = vmul.f32 %v3044, %v3113
        %v3121 = vmul.f32 %v3045, %v3113
        %v3123 = vperm.slane %v3013, 0
        %v3124 = vperm.slane %v3013, 1
        %v3127 = vmul.f32 %v3114, %v3123
        %v3128 = vmul.f32 %v3115, %v3124
        %v3129 = vmul.f32 %v3116, %v3123
        %v3130 = vmul.f32 %v3117, %v3124
        %v3131 = vmul.f32 %v3118, %v3123
        %v3132 = vmul.f32 %v3119, %v3124
        %v3133 = vmul.f32 %v3120, %v3123
        %v3134 = vmul.f32 %v3121, %v3124
        %v3136 = vperm.slane %v3014, 0
        %v3137 = vperm.slane %v3014, 1
        %v3140 = vadd.f32 %v3127, %v3136
        %v3141 = vadd.f32 %v3128, %v3137
        %v3142 = vadd.f32 %v3129, %v3136
        %v3143 = vadd.f32 %v3130, %v3137
        %v3144 = vadd.f32 %v3131, %v3136
        %v3145 = vadd.f32 %v3132, %v3137
        %v3146 = vadd.f32 %v3133, %v3136
        %v3147 = vadd.f32 %v3134, %v3137
        %v3148 = vpack.c.bf16 %v3142, %v3140
        %v3149 = vpack.c.bf16 %v3143, %v3141
        %v3150 = vpack.c.bf16 %v3146, %v3144
        %v3151 = vpack.c.bf16 %v3147, %v3145
        %v3152 = vld [vmem:[%s1195] sm:$0xff]
        %v3153 = vld [vmem:[%s1195 + $0x8] sm:$0xff]
        %v3154 = vld [vmem:[%s1195 + $0x10] sm:$0xff]
        %v3155 = vld [vmem:[%s1195 + $0x18] sm:$0xff]
        %v3156 = vld [vmem:[%s1195 + $0x20] sm:$0xff]
        %v3157 = vld [vmem:[%s1195 + $0x28] sm:$0xff]
        %v3158 = vld [vmem:[%s1195 + $0x30] sm:$0xff]
        %v3159 = vld [vmem:[%s1195 + $0x38] sm:$0xff]
        %v3160 = vld [vmem:[%s1195 + $0x40] sm:$0xff]
        %v3161 = vld [vmem:[%s1195 + $0x48] sm:$0xff]
        %v3162 = vld [vmem:[%s1195 + $0x50] sm:$0xff]
        %v3163 = vld [vmem:[%s1195 + $0x58] sm:$0xff]
        %v3164 = vld [vmem:[%s1195 + $0x60] sm:$0xff]
        %v3165 = vld [vmem:[%s1195 + $0x68] sm:$0xff]
        %v3166 = vld [vmem:[%s1195 + $0x70] sm:$0xff]
        %v3167 = vld [vmem:[%s1195 + $0x78] sm:$0xff]
        %v3168 = vld [vmem:[%s1195 + $0x80] sm:$0xff]
        %v3169 = vld [vmem:[%s1195 + $0x88] sm:$0xff]
        %v3170 = vld [vmem:[%s1195 + $0x90] sm:$0xff]
        %v3171 = vld [vmem:[%s1195 + $0x98] sm:$0xff]
        %v3172 = vld [vmem:[%s1195 + $0xa0] sm:$0xff]
        %v3173 = vld [vmem:[%s1195 + $0xa8] sm:$0xff]
        %v3174 = vld [vmem:[%s1195 + $0xb0] sm:$0xff]
        %v3175 = vld [vmem:[%s1195 + $0xb8] sm:$0xff]
        %v3176 = vld [vmem:[%s1195 + $0xc0] sm:$0xff]
        %v3177 = vld [vmem:[%s1195 + $0xc8] sm:$0xff]
        %v3178 = vld [vmem:[%s1195 + $0xd0] sm:$0xff]
        %v3179 = vld [vmem:[%s1195 + $0xd8] sm:$0xff]
        %v3180 = vld [vmem:[%s1195 + $0xe0] sm:$0xff]
        %v3181 = vld [vmem:[%s1195 + $0xe8] sm:$0xff]
        %v3182 = vld [vmem:[%s1195 + $0xf0] sm:$0xff]
        %v3183 = vld [vmem:[%s1195 + $0xf8] sm:$0xff]
        %v3184 = vld [vmem:[%s1205] sm:$0x3]
        %v3186 = vperm.slane %v3184, 0
        %v3187 = vperm.slane %v3184, 1
        %v3222 = vunpack.c.l.b16 %v3152
        %v3223 = vunpack.c.h.b16 %v3152
        %v3224 = vunpack.c.l.b16 %v3153
        %v3225 = vunpack.c.h.b16 %v3153
        %v3226 = vunpack.c.l.b16 %v3154
        %v3227 = vunpack.c.h.b16 %v3154
        %v3228 = vunpack.c.l.b16 %v3155
        %v3229 = vunpack.c.h.b16 %v3155
        %v3230 = vunpack.c.l.b16 %v3156
        %v3231 = vunpack.c.h.b16 %v3156
        %v3232 = vunpack.c.l.b16 %v3157
        %v3233 = vunpack.c.h.b16 %v3157
        %v3234 = vunpack.c.l.b16 %v3158
        %v3235 = vunpack.c.h.b16 %v3158
        %v3236 = vunpack.c.l.b16 %v3159
        %v3237 = vunpack.c.h.b16 %v3159
        %v3238 = vunpack.c.l.b16 %v3160
        %v3239 = vunpack.c.h.b16 %v3160
        %v3240 = vunpack.c.l.b16 %v3161
        %v3241 = vunpack.c.h.b16 %v3161
        %v3242 = vunpack.c.l.b16 %v3162
        %v3243 = vunpack.c.h.b16 %v3162
        %v3244 = vunpack.c.l.b16 %v3163
        %v3245 = vunpack.c.h.b16 %v3163
        %v3246 = vunpack.c.l.b16 %v3164
        %v3247 = vunpack.c.h.b16 %v3164
        %v3248 = vunpack.c.l.b16 %v3165
        %v3249 = vunpack.c.h.b16 %v3165
        %v3250 = vunpack.c.l.b16 %v3166
        %v3251 = vunpack.c.h.b16 %v3166
        %v3252 = vunpack.c.l.b16 %v3167
        %v3253 = vunpack.c.h.b16 %v3167
        %v3254 = vunpack.c.l.b16 %v3168
        %v3255 = vunpack.c.h.b16 %v3168
        %v3256 = vunpack.c.l.b16 %v3169
        %v3257 = vunpack.c.h.b16 %v3169
        %v3258 = vunpack.c.l.b16 %v3170
        %v3259 = vunpack.c.h.b16 %v3170
        %v3260 = vunpack.c.l.b16 %v3171
        %v3261 = vunpack.c.h.b16 %v3171
        %v3262 = vunpack.c.l.b16 %v3172
        %v3263 = vunpack.c.h.b16 %v3172
        %v3264 = vunpack.c.l.b16 %v3173
        %v3265 = vunpack.c.h.b16 %v3173
        %v3266 = vunpack.c.l.b16 %v3174
        %v3267 = vunpack.c.h.b16 %v3174
        %v3268 = vunpack.c.l.b16 %v3175
        %v3269 = vunpack.c.h.b16 %v3175
        %v3270 = vunpack.c.l.b16 %v3176
        %v3271 = vunpack.c.h.b16 %v3176
        %v3272 = vunpack.c.l.b16 %v3177
        %v3273 = vunpack.c.h.b16 %v3177
        %v3274 = vunpack.c.l.b16 %v3178
        %v3275 = vunpack.c.h.b16 %v3178
        %v3276 = vunpack.c.l.b16 %v3179
        %v3277 = vunpack.c.h.b16 %v3179
        %v3278 = vunpack.c.l.b16 %v3180
        %v3279 = vunpack.c.h.b16 %v3180
        %v3280 = vunpack.c.l.b16 %v3181
        %v3281 = vunpack.c.h.b16 %v3181
        %v3282 = vunpack.c.l.b16 %v3182
        %v3283 = vunpack.c.h.b16 %v3182
        %v3284 = vunpack.c.l.b16 %v3183
        %v3285 = vunpack.c.h.b16 %v3183
        %v3286 = vpack.c.b16 %v3224, %v3222
        %v3287 = vpack.c.b16 %v3225, %v3223
        %v3288 = vpack.c.b16 %v3228, %v3226
        %v3289 = vpack.c.b16 %v3229, %v3227
        %v3290 = vpack.c.b16 %v3232, %v3230
        %v3291 = vpack.c.b16 %v3233, %v3231
        %v3292 = vpack.c.b16 %v3236, %v3234
        %v3293 = vpack.c.b16 %v3237, %v3235
        %v3294 = vpack.c.b16 %v3240, %v3238
        %v3295 = vpack.c.b16 %v3241, %v3239
        %v3296 = vpack.c.b16 %v3244, %v3242
        %v3297 = vpack.c.b16 %v3245, %v3243
        %v3298 = vpack.c.b16 %v3248, %v3246
        %v3299 = vpack.c.b16 %v3249, %v3247
        %v3300 = vpack.c.b16 %v3252, %v3250
        %v3301 = vpack.c.b16 %v3253, %v3251
        %v3302 = vpack.c.b16 %v3256, %v3254
        %v3303 = vpack.c.b16 %v3257, %v3255
        %v3304 = vpack.c.b16 %v3260, %v3258
        %v3305 = vpack.c.b16 %v3261, %v3259
        %v3306 = vpack.c.b16 %v3264, %v3262
        %v3307 = vpack.c.b16 %v3265, %v3263
        %v3308 = vpack.c.b16 %v3268, %v3266
        %v3309 = vpack.c.b16 %v3269, %v3267
        %v3310 = vpack.c.b16 %v3272, %v3270
        %v3311 = vpack.c.b16 %v3273, %v3271
        %v3312 = vpack.c.b16 %v3276, %v3274
        %v3313 = vpack.c.b16 %v3277, %v3275
        %v3314 = vpack.c.b16 %v3280, %v3278
        %v3315 = vpack.c.b16 %v3281, %v3279
        %v3316 = vpack.c.b16 %v3284, %v3282
        %v3317 = vpack.c.b16 %v3285, %v3283
        %3350 = vmatpush.bf16.msra.mxu0 %v3300
        %3351 = vmatpush.bf16.msra.mxu0 %v3298
        %3352 = vmatpush.bf16.msra.mxu0 %v3296
        %3353 = vmatpush.bf16.msra.mxu0 %v3294
        %3354 = vmatpush.bf16.msra.mxu0 %v3292
        %3355 = vmatpush.bf16.msra.mxu0 %v3290
        %3356 = vmatpush.bf16.msra.mxu0 %v3288
        %3357 = vmatpush.bf16.msra.mxu0 %v3286
        %3358 = vmatmul.bf16.gmra.mxu0 %v3148
        %v3359 = vpop.f32.mrf.mxu0
        %v3360 = vadd.f32 %v3186, %v3359
        %v3361 = vpop.f32.mrf.mxu0
        %v3362 = vadd.f32 %v3186, %v3361
        %3363 = vmatmul.bf16.gmra.mxu0 %v3150
        %v3364 = vpop.f32.mrf.mxu0
        %v3365 = vadd.f32 %v3186, %v3364
        %v3366 = vpop.f32.mrf.mxu0
        %v3367 = vadd.f32 %v3186, %v3366
        %3368 = vdwg.mxu0
        %3369 = vmatpush.bf16.msra.mxu0 %v3316
        %3370 = vmatpush.bf16.msra.mxu0 %v3314
        %3371 = vmatpush.bf16.msra.mxu0 %v3312
        %3372 = vmatpush.bf16.msra.mxu0 %v3310
        %3373 = vmatpush.bf16.msra.mxu0 %v3308
        %3374 = vmatpush.bf16.msra.mxu0 %v3306
        %3375 = vmatpush.bf16.msra.mxu0 %v3304
        %3376 = vmatpush.bf16.msra.mxu0 %v3302
        %3377 = vmatmul.bf16.gmra.mxu0 %v3149
        %v3378 = vpop.f32.mrf.mxu0
        %v3379 = vadd.f32 %v3360, %v3378
        %v3380 = vpop.f32.mrf.mxu0
        %v3381 = vadd.f32 %v3362, %v3380
        %3382 = vmatmul.bf16.gmra.mxu0 %v3151
        %v3383 = vpop.f32.mrf.mxu0
        %v3384 = vadd.f32 %v3365, %v3383
        %v3385 = vpop.f32.mrf.mxu0
        %v3386 = vadd.f32 %v3367, %v3385
        %3387 = vdwg.mxu0
        %3388 = vmatpush.bf16.msra.mxu0 %v3301
        %3389 = vmatpush.bf16.msra.mxu0 %v3299
        %3390 = vmatpush.bf16.msra.mxu0 %v3297
        %3391 = vmatpush.bf16.msra.mxu0 %v3295
        %3392 = vmatpush.bf16.msra.mxu0 %v3293
        %3393 = vmatpush.bf16.msra.mxu0 %v3291
        %3394 = vmatpush.bf16.msra.mxu0 %v3289
        %3395 = vmatpush.bf16.msra.mxu0 %v3287
        %3396 = vmatmul.bf16.gmra.mxu0 %v3148
        %v3397 = vpop.f32.mrf.mxu0
        %v3398 = vadd.f32 %v3187, %v3397
        %v3399 = vpop.f32.mrf.mxu0
        %v3400 = vadd.f32 %v3187, %v3399
        %3401 = vmatmul.bf16.gmra.mxu0 %v3150
        %v3402 = vpop.f32.mrf.mxu0
        %v3403 = vadd.f32 %v3187, %v3402
        %v3404 = vpop.f32.mrf.mxu0
        %v3405 = vadd.f32 %v3187, %v3404
        %3406 = vdwg.mxu0
        %3407 = vmatpush.bf16.msra.mxu0 %v3317
        %3408 = vmatpush.bf16.msra.mxu0 %v3315
        %3409 = vmatpush.bf16.msra.mxu0 %v3313
        %3410 = vmatpush.bf16.msra.mxu0 %v3311
        %3411 = vmatpush.bf16.msra.mxu0 %v3309
        %3412 = vmatpush.bf16.msra.mxu0 %v3307
        %3413 = vmatpush.bf16.msra.mxu0 %v3305
        %3414 = vmatpush.bf16.msra.mxu0 %v3303
        %3415 = vmatmul.bf16.gmra.mxu0 %v3149
        %v3416 = vpop.f32.mrf.mxu0
        %v3417 = vadd.f32 %v3398, %v3416
        %v3418 = vpop.f32.mrf.mxu0
        %v3419 = vadd.f32 %v3400, %v3418
        %3420 = vmatmul.bf16.gmra.mxu0 %v3151
        %v3421 = vpop.f32.mrf.mxu0
        %v3422 = vadd.f32 %v3403, %v3421
        %v3423 = vpop.f32.mrf.mxu0
        %v3424 = vadd.f32 %v3405, %v3423
        %3425 = vdwg.mxu0
        %v3426 = vld [vmem:[%s1135] sm:$0xff]
        %v3427 = vld [vmem:[%s1135 + $0x8] sm:$0xff]
        %v3428 = vld [vmem:[%s1135 + $0x10] sm:$0xff]
        %v3429 = vld [vmem:[%s1135 + $0x18] sm:$0xff]
        %v3430 = vld [vmem:[%s1135 + $0x20] sm:$0xff]
        %v3431 = vld [vmem:[%s1135 + $0x28] sm:$0xff]
        %v3432 = vld [vmem:[%s1135 + $0x30] sm:$0xff]
        %v3433 = vld [vmem:[%s1135 + $0x38] sm:$0xff]
        %v3434 = vld [vmem:[%s1135 + $0x40] sm:$0xff]
        %v3435 = vld [vmem:[%s1135 + $0x48] sm:$0xff]
        %v3436 = vld [vmem:[%s1135 + $0x50] sm:$0xff]
        %v3437 = vld [vmem:[%s1135 + $0x58] sm:$0xff]
        %v3438 = vpack.c.bf16 %v3428, %v3426
        %v3439 = vpack.c.bf16 %v3429, %v3427
        %v3440 = vpack.c.bf16 %v3432, %v3430
        %v3441 = vpack.c.bf16 %v3433, %v3431
        %v3442 = vpack.c.bf16 %v3436, %v3434
        %v3443 = vpack.c.bf16 %v3437, %v3435
        %v3444 = vld [vmem:[%s1215] sm:$0xff]
        %v3445 = vld [vmem:[%s1215 + $0x8] sm:$0xff]
        %v3446 = vld [vmem:[%s1215 + $0x10] sm:$0xff]
        %v3447 = vld [vmem:[%s1215 + $0x18] sm:$0xff]
        %v3448 = vld [vmem:[%s1215 + $0x20] sm:$0xff]
        %v3449 = vld [vmem:[%s1215 + $0x28] sm:$0xff]
        %v3450 = vld [vmem:[%s1215 + $0x30] sm:$0xff]
        %v3451 = vld [vmem:[%s1215 + $0x38] sm:$0xff]
        %v3452 = vld [vmem:[%s1215 + $0x40] sm:$0xff]
        %v3453 = vld [vmem:[%s1215 + $0x48] sm:$0xff]
        %v3454 = vld [vmem:[%s1215 + $0x50] sm:$0xff]
        %v3455 = vld [vmem:[%s1215 + $0x58] sm:$0xff]
        %v3456 = vld [vmem:[%s1215 + $0x60] sm:$0xff]
        %v3457 = vld [vmem:[%s1215 + $0x68] sm:$0xff]
        %v3458 = vld [vmem:[%s1215 + $0x70] sm:$0xff]
        %v3459 = vld [vmem:[%s1215 + $0x78] sm:$0xff]
        %v3460 = vld [vmem:[%s1215 + $0x80] sm:$0xff]
        %v3461 = vld [vmem:[%s1215 + $0x88] sm:$0xff]
        %v3462 = vld [vmem:[%s1215 + $0x90] sm:$0xff]
        %v3463 = vld [vmem:[%s1215 + $0x98] sm:$0xff]
        %v3464 = vld [vmem:[%s1215 + $0xa0] sm:$0xff]
        %v3465 = vld [vmem:[%s1215 + $0xa8] sm:$0xff]
        %v3466 = vld [vmem:[%s1215 + $0xb0] sm:$0xff]
        %v3467 = vld [vmem:[%s1215 + $0xb8] sm:$0xff]
        %v3468 = vld [vmem:[%s1215 + $0xc0] sm:$0xff]
        %v3469 = vld [vmem:[%s1215 + $0xc8] sm:$0xff]
        %v3470 = vld [vmem:[%s1215 + $0xd0] sm:$0xff]
        %v3471 = vld [vmem:[%s1215 + $0xd8] sm:$0xff]
        %v3472 = vld [vmem:[%s1215 + $0xe0] sm:$0xff]
        %v3473 = vld [vmem:[%s1215 + $0xe8] sm:$0xff]
        %v3474 = vld [vmem:[%s1215 + $0xf0] sm:$0xff]
        %v3475 = vld [vmem:[%s1215 + $0xf8] sm:$0xff]
        %v3476 = vld [vmem:[%s1215 + $0x100] sm:$0xff]
        %v3477 = vld [vmem:[%s1215 + $0x108] sm:$0xff]
        %v3478 = vld [vmem:[%s1215 + $0x110] sm:$0xff]
        %v3479 = vld [vmem:[%s1215 + $0x118] sm:$0xff]
        %v3480 = vld [vmem:[%s1215 + $0x120] sm:$0xff]
        %v3481 = vld [vmem:[%s1215 + $0x128] sm:$0xff]
        %v3482 = vld [vmem:[%s1215 + $0x130] sm:$0xff]
        %v3483 = vld [vmem:[%s1215 + $0x138] sm:$0xff]
        %v3484 = vld [vmem:[%s1215 + $0x140] sm:$0xff]
        %v3485 = vld [vmem:[%s1215 + $0x148] sm:$0xff]
        %v3486 = vld [vmem:[%s1215 + $0x150] sm:$0xff]
        %v3487 = vld [vmem:[%s1215 + $0x158] sm:$0xff]
        %v3488 = vld [vmem:[%s1215 + $0x160] sm:$0xff]
        %v3489 = vld [vmem:[%s1215 + $0x168] sm:$0xff]
        %v3490 = vld [vmem:[%s1215 + $0x170] sm:$0xff]
        %v3491 = vld [vmem:[%s1215 + $0x178] sm:$0xff]
        %v3492 = vld [vmem:[%s1215 + $0x180] sm:$0xff]
        %v3493 = vld [vmem:[%s1215 + $0x188] sm:$0xff]
        %v3494 = vld [vmem:[%s1215 + $0x190] sm:$0xff]
        %v3495 = vld [vmem:[%s1215 + $0x198] sm:$0xff]
        %v3496 = vld [vmem:[%s1215 + $0x1a0] sm:$0xff]
        %v3497 = vld [vmem:[%s1215 + $0x1a8] sm:$0xff]
        %v3498 = vld [vmem:[%s1215 + $0x1b0] sm:$0xff]
        %v3499 = vld [vmem:[%s1215 + $0x1b8] sm:$0xff]
        %v3500 = vld [vmem:[%s1215 + $0x1c0] sm:$0xff]
        %v3501 = vld [vmem:[%s1215 + $0x1c8] sm:$0xff]
        %v3502 = vld [vmem:[%s1215 + $0x1d0] sm:$0xff]
        %v3503 = vld [vmem:[%s1215 + $0x1d8] sm:$0xff]
        %v3504 = vld [vmem:[%s1215 + $0x1e0] sm:$0xff]
        %v3505 = vld [vmem:[%s1215 + $0x1e8] sm:$0xff]
        %v3506 = vld [vmem:[%s1215 + $0x1f0] sm:$0xff]
        %v3507 = vld [vmem:[%s1215 + $0x1f8] sm:$0xff]
        %v3508 = vld [vmem:[%s1225] sm:$0xf]
        %v3510 = vperm.slane %v3508, 0
        %v3511 = vperm.slane %v3508, 1
        %v3512 = vperm.slane %v3508, 2
        %v3513 = vperm.slane %v3508, 3
        %v3582 = vunpack.c.l.b16 %v3444
        %v3583 = vunpack.c.h.b16 %v3444
        %v3584 = vunpack.c.l.b16 %v3445
        %v3585 = vunpack.c.h.b16 %v3445
        %v3586 = vunpack.c.l.b16 %v3446
        %v3587 = vunpack.c.h.b16 %v3446
        %v3588 = vunpack.c.l.b16 %v3447
        %v3589 = vunpack.c.h.b16 %v3447
        %v3590 = vunpack.c.l.b16 %v3448
        %v3591 = vunpack.c.h.b16 %v3448
        %v3592 = vunpack.c.l.b16 %v3449
        %v3593 = vunpack.c.h.b16 %v3449
        %v3594 = vunpack.c.l.b16 %v3450
        %v3595 = vunpack.c.h.b16 %v3450
        %v3596 = vunpack.c.l.b16 %v3451
        %v3597 = vunpack.c.h.b16 %v3451
        %v3598 = vunpack.c.l.b16 %v3452
        %v3599 = vunpack.c.h.b16 %v3452
        %v3600 = vunpack.c.l.b16 %v3453
        %v3601 = vunpack.c.h.b16 %v3453
        %v3602 = vunpack.c.l.b16 %v3454
        %v3603 = vunpack.c.h.b16 %v3454
        %v3604 = vunpack.c.l.b16 %v3455
        %v3605 = vunpack.c.h.b16 %v3455
        %v3606 = vunpack.c.l.b16 %v3456
        %v3607 = vunpack.c.h.b16 %v3456
        %v3608 = vunpack.c.l.b16 %v3457
        %v3609 = vunpack.c.h.b16 %v3457
        %v3610 = vunpack.c.l.b16 %v3458
        %v3611 = vunpack.c.h.b16 %v3458
        %v3612 = vunpack.c.l.b16 %v3459
        %v3613 = vunpack.c.h.b16 %v3459
        %v3614 = vunpack.c.l.b16 %v3460
        %v3615 = vunpack.c.h.b16 %v3460
        %v3616 = vunpack.c.l.b16 %v3461
        %v3617 = vunpack.c.h.b16 %v3461
        %v3618 = vunpack.c.l.b16 %v3462
        %v3619 = vunpack.c.h.b16 %v3462
        %v3620 = vunpack.c.l.b16 %v3463
        %v3621 = vunpack.c.h.b16 %v3463
        %v3622 = vunpack.c.l.b16 %v3464
        %v3623 = vunpack.c.h.b16 %v3464
        %v3624 = vunpack.c.l.b16 %v3465
        %v3625 = vunpack.c.h.b16 %v3465
        %v3626 = vunpack.c.l.b16 %v3466
        %v3627 = vunpack.c.h.b16 %v3466
        %v3628 = vunpack.c.l.b16 %v3467
        %v3629 = vunpack.c.h.b16 %v3467
        %v3630 = vunpack.c.l.b16 %v3468
        %v3631 = vunpack.c.h.b16 %v3468
        %v3632 = vunpack.c.l.b16 %v3469
        %v3633 = vunpack.c.h.b16 %v3469
        %v3634 = vunpack.c.l.b16 %v3470
        %v3635 = vunpack.c.h.b16 %v3470
        %v3636 = vunpack.c.l.b16 %v3471
        %v3637 = vunpack.c.h.b16 %v3471
        %v3638 = vunpack.c.l.b16 %v3472
        %v3639 = vunpack.c.h.b16 %v3472
        %v3640 = vunpack.c.l.b16 %v3473
        %v3641 = vunpack.c.h.b16 %v3473
        %v3642 = vunpack.c.l.b16 %v3474
        %v3643 = vunpack.c.h.b16 %v3474
        %v3644 = vunpack.c.l.b16 %v3475
        %v3645 = vunpack.c.h.b16 %v3475
        %v3646 = vunpack.c.l.b16 %v3476
        %v3647 = vunpack.c.h.b16 %v3476
        %v3648 = vunpack.c.l.b16 %v3477
        %v3649 = vunpack.c.h.b16 %v3477
        %v3650 = vunpack.c.l.b16 %v3478
        %v3651 = vunpack.c.h.b16 %v3478
        %v3652 = vunpack.c.l.b16 %v3479
        %v3653 = vunpack.c.h.b16 %v3479
        %v3654 = vunpack.c.l.b16 %v3480
        %v3655 = vunpack.c.h.b16 %v3480
        %v3656 = vunpack.c.l.b16 %v3481
        %v3657 = vunpack.c.h.b16 %v3481
        %v3658 = vunpack.c.l.b16 %v3482
        %v3659 = vunpack.c.h.b16 %v3482
        %v3660 = vunpack.c.l.b16 %v3483
        %v3661 = vunpack.c.h.b16 %v3483
        %v3662 = vunpack.c.l.b16 %v3484
        %v3663 = vunpack.c.h.b16 %v3484
        %v3664 = vunpack.c.l.b16 %v3485
        %v3665 = vunpack.c.h.b16 %v3485
        %v3666 = vunpack.c.l.b16 %v3486
        %v3667 = vunpack.c.h.b16 %v3486
        %v3668 = vunpack.c.l.b16 %v3487
        %v3669 = vunpack.c.h.b16 %v3487
        %v3670 = vunpack.c.l.b16 %v3488
        %v3671 = vunpack.c.h.b16 %v3488
        %v3672 = vunpack.c.l.b16 %v3489
        %v3673 = vunpack.c.h.b16 %v3489
        %v3674 = vunpack.c.l.b16 %v3490
        %v3675 = vunpack.c.h.b16 %v3490
        %v3676 = vunpack.c.l.b16 %v3491
        %v3677 = vunpack.c.h.b16 %v3491
        %v3678 = vunpack.c.l.b16 %v3492
        %v3679 = vunpack.c.h.b16 %v3492
        %v3680 = vunpack.c.l.b16 %v3493
        %v3681 = vunpack.c.h.b16 %v3493
        %v3682 = vunpack.c.l.b16 %v3494
        %v3683 = vunpack.c.h.b16 %v3494
        %v3684 = vunpack.c.l.b16 %v3495
        %v3685 = vunpack.c.h.b16 %v3495
        %v3686 = vunpack.c.l.b16 %v3496
        %v3687 = vunpack.c.h.b16 %v3496
        %v3688 = vunpack.c.l.b16 %v3497
        %v3689 = vunpack.c.h.b16 %v3497
        %v3690 = vunpack.c.l.b16 %v3498
        %v3691 = vunpack.c.h.b16 %v3498
        %v3692 = vunpack.c.l.b16 %v3499
        %v3693 = vunpack.c.h.b16 %v3499
        %v3694 = vunpack.c.l.b16 %v3500
        %v3695 = vunpack.c.h.b16 %v3500
        %v3696 = vunpack.c.l.b16 %v3501
        %v3697 = vunpack.c.h.b16 %v3501
        %v3698 = vunpack.c.l.b16 %v3502
        %v3699 = vunpack.c.h.b16 %v3502
        %v3700 = vunpack.c.l.b16 %v3503
        %v3701 = vunpack.c.h.b16 %v3503
        %v3702 = vunpack.c.l.b16 %v3504
        %v3703 = vunpack.c.h.b16 %v3504
        %v3704 = vunpack.c.l.b16 %v3505
        %v3705 = vunpack.c.h.b16 %v3505
        %v3706 = vunpack.c.l.b16 %v3506
        %v3707 = vunpack.c.h.b16 %v3506
        %v3708 = vunpack.c.l.b16 %v3507
        %v3709 = vunpack.c.h.b16 %v3507
        %v3710 = vpack.c.b16 %v3586, %v3582
        %v3711 = vpack.c.b16 %v3587, %v3583
        %v3712 = vpack.c.b16 %v3588, %v3584
        %v3713 = vpack.c.b16 %v3589, %v3585
        %v3714 = vpack.c.b16 %v3594, %v3590
        %v3715 = vpack.c.b16 %v3595, %v3591
        %v3716 = vpack.c.b16 %v3596, %v3592
        %v3717 = vpack.c.b16 %v3597, %v3593
        %v3718 = vpack.c.b16 %v3602, %v3598
        %v3719 = vpack.c.b16 %v3603, %v3599
        %v3720 = vpack.c.b16 %v3604, %v3600
        %v3721 = vpack.c.b16 %v3605, %v3601
        %v3722 = vpack.c.b16 %v3610, %v3606
        %v3723 = vpack.c.b16 %v3611, %v3607
        %v3724 = vpack.c.b16 %v3612, %v3608
        %v3725 = vpack.c.b16 %v3613, %v3609
        %v3726 = vpack.c.b16 %v3618, %v3614
        %v3727 = vpack.c.b16 %v3619, %v3615
        %v3728 = vpack.c.b16 %v3620, %v3616
        %v3729 = vpack.c.b16 %v3621, %v3617
        %v3730 = vpack.c.b16 %v3626, %v3622
        %v3731 = vpack.c.b16 %v3627, %v3623
        %v3732 = vpack.c.b16 %v3628, %v3624
        %v3733 = vpack.c.b16 %v3629, %v3625
        %v3734 = vpack.c.b16 %v3634, %v3630
        %v3735 = vpack.c.b16 %v3635, %v3631
        %v3736 = vpack.c.b16 %v3636, %v3632
        %v3737 = vpack.c.b16 %v3637, %v3633
        %v3738 = vpack.c.b16 %v3642, %v3638
        %v3739 = vpack.c.b16 %v3643, %v3639
        %v3740 = vpack.c.b16 %v3644, %v3640
        %v3741 = vpack.c.b16 %v3645, %v3641
        %v3742 = vpack.c.b16 %v3650, %v3646
        %v3743 = vpack.c.b16 %v3651, %v3647
        %v3744 = vpack.c.b16 %v3652, %v3648
        %v3745 = vpack.c.b16 %v3653, %v3649
        %v3746 = vpack.c.b16 %v3658, %v3654
        %v3747 = vpack.c.b16 %v3659, %v3655
        %v3748 = vpack.c.b16 %v3660, %v3656
        %v3749 = vpack.c.b16 %v3661, %v3657
        %v3750 = vpack.c.b16 %v3666, %v3662
        %v3751 = vpack.c.b16 %v3667, %v3663
        %v3752 = vpack.c.b16 %v3668, %v3664
        %v3753 = vpack.c.b16 %v3669, %v3665
        %v3754 = vpack.c.b16 %v3674, %v3670
        %v3755 = vpack.c.b16 %v3675, %v3671
        %v3756 = vpack.c.b16 %v3676, %v3672
        %v3757 = vpack.c.b16 %v3677, %v3673
        %v3758 = vpack.c.b16 %v3682, %v3678
        %v3759 = vpack.c.b16 %v3683, %v3679
        %v3760 = vpack.c.b16 %v3684, %v3680
        %v3761 = vpack.c.b16 %v3685, %v3681
        %v3762 = vpack.c.b16 %v3690, %v3686
        %v3763 = vpack.c.b16 %v3691, %v3687
        %v3764 = vpack.c.b16 %v3692, %v3688
        %v3765 = vpack.c.b16 %v3693, %v3689
        %v3766 = vpack.c.b16 %v3698, %v3694
        %v3767 = vpack.c.b16 %v3699, %v3695
        %v3768 = vpack.c.b16 %v3700, %v3696
        %v3769 = vpack.c.b16 %v3701, %v3697
        %v3770 = vpack.c.b16 %v3706, %v3702
        %v3771 = vpack.c.b16 %v3707, %v3703
        %v3772 = vpack.c.b16 %v3708, %v3704
        %v3773 = vpack.c.b16 %v3709, %v3705
        %3838 = vmatpush.bf16.msra.mxu0 %v3738
        %3839 = vmatpush.bf16.msra.mxu0 %v3734
        %3840 = vmatpush.bf16.msra.mxu0 %v3730
        %3841 = vmatpush.bf16.msra.mxu0 %v3726
        %3842 = vmatpush.bf16.msra.mxu0 %v3722
        %3843 = vmatpush.bf16.msra.mxu0 %v3718
        %3844 = vmatpush.bf16.msra.mxu0 %v3714
        %3845 = vmatpush.bf16.msra.mxu0 %v3710
        %3846 = vmatmul.bf16.gmra.mxu0 %v3438
        %v3847 = vpop.f32.mrf.mxu0
        %v3848 = vadd.f32 %v3510, %v3847
        %v3849 = vpop.f32.mrf.mxu0
        %v3850 = vadd.f32 %v3510, %v3849
        %3851 = vmatmul.bf16.gmra.mxu0 %v3440
        %v3852 = vpop.f32.mrf.mxu0
        %v3853 = vadd.f32 %v3510, %v3852
        %v3854 = vpop.f32.mrf.mxu0
        %v3855 = vadd.f32 %v3510, %v3854
        %3856 = vmatmul.bf16.gmra.mxu0 %v3442
        %v3857 = vpop.f32.mrf.mxu0
        %v3858 = vadd.f32 %v3510, %v3857
        %v3859 = vpop.f32.mrf.mxu0
        %v3860 = vadd.f32 %v3510, %v3859
        %3861 = vdwg.mxu0
        %3862 = vmatpush.bf16.msra.mxu0 %v3770
        %3863 = vmatpush.bf16.msra.mxu0 %v3766
        %3864 = vmatpush.bf16.msra.mxu0 %v3762
        %3865 = vmatpush.bf16.msra.mxu0 %v3758
        %3866 = vmatpush.bf16.msra.mxu0 %v3754
        %3867 = vmatpush.bf16.msra.mxu0 %v3750
        %3868 = vmatpush.bf16.msra.mxu0 %v3746
        %3869 = vmatpush.bf16.msra.mxu0 %v3742
        %3870 = vmatmul.bf16.gmra.mxu0 %v3439
        %v3871 = vpop.f32.mrf.mxu0
        %v3872 = vadd.f32 %v3848, %v3871
        %v3873 = vpop.f32.mrf.mxu0
        %v3874 = vadd.f32 %v3850, %v3873
        %3875 = vmatmul.bf16.gmra.mxu0 %v3441
        %v3876 = vpop.f32.mrf.mxu0
        %v3877 = vadd.f32 %v3853, %v3876
        %v3878 = vpop.f32.mrf.mxu0
        %v3879 = vadd.f32 %v3855, %v3878
        %3880 = vmatmul.bf16.gmra.mxu0 %v3443
        %v3881 = vpop.f32.mrf.mxu0
        %v3882 = vadd.f32 %v3858, %v3881
        %v3883 = vpop.f32.mrf.mxu0
        %v3884 = vadd.f32 %v3860, %v3883
        %3885 = vdwg.mxu0
        %3886 = vmatpush.bf16.msra.mxu0 %v3739
        %3887 = vmatpush.bf16.msra.mxu0 %v3735
        %3888 = vmatpush.bf16.msra.mxu0 %v3731
        %3889 = vmatpush.bf16.msra.mxu0 %v3727
        %3890 = vmatpush.bf16.msra.mxu0 %v3723
        %3891 = vmatpush.bf16.msra.mxu0 %v3719
        %3892 = vmatpush.bf16.msra.mxu0 %v3715
        %3893 = vmatpush.bf16.msra.mxu0 %v3711
        %3894 = vmatmul.bf16.gmra.mxu0 %v3438
        %v3895 = vpop.f32.mrf.mxu0
        %v3896 = vadd.f32 %v3511, %v3895
        %v3897 = vpop.f32.mrf.mxu0
        %v3898 = vadd.f32 %v3511, %v3897
        %3899 = vmatmul.bf16.gmra.mxu0 %v3440
        %v3900 = vpop.f32.mrf.mxu0
        %v3901 = vadd.f32 %v3511, %v3900
        %v3902 = vpop.f32.mrf.mxu0
        %v3903 = vadd.f32 %v3511, %v3902
        %3904 = vmatmul.bf16.gmra.mxu0 %v3442
        %v3905 = vpop.f32.mrf.mxu0
        %v3906 = vadd.f32 %v3511, %v3905
        %v3907 = vpop.f32.mrf.mxu0
        %v3908 = vadd.f32 %v3511, %v3907
        %3909 = vdwg.mxu0
        %3910 = vmatpush.bf16.msra.mxu0 %v3771
        %3911 = vmatpush.bf16.msra.mxu0 %v3767
        %3912 = vmatpush.bf16.msra.mxu0 %v3763
        %3913 = vmatpush.bf16.msra.mxu0 %v3759
        %3914 = vmatpush.bf16.msra.mxu0 %v3755
        %3915 = vmatpush.bf16.msra.mxu0 %v3751
        %3916 = vmatpush.bf16.msra.mxu0 %v3747
        %3917 = vmatpush.bf16.msra.mxu0 %v3743
        %3918 = vmatmul.bf16.gmra.mxu0 %v3439
        %v3919 = vpop.f32.mrf.mxu0
        %v3920 = vadd.f32 %v3896, %v3919
        %v3921 = vpop.f32.mrf.mxu0
        %v3922 = vadd.f32 %v3898, %v3921
        %3923 = vmatmul.bf16.gmra.mxu0 %v3441
        %v3924 = vpop.f32.mrf.mxu0
        %v3925 = vadd.f32 %v3901, %v3924
        %v3926 = vpop.f32.mrf.mxu0
        %v3927 = vadd.f32 %v3903, %v3926
        %3928 = vmatmul.bf16.gmra.mxu0 %v3443
        %v3929 = vpop.f32.mrf.mxu0
        %v3930 = vadd.f32 %v3906, %v3929
        %v3931 = vpop.f32.mrf.mxu0
        %v3932 = vadd.f32 %v3908, %v3931
        %3933 = vdwg.mxu0
        %3934 = vmatpush.bf16.msra.mxu0 %v3740
        %3935 = vmatpush.bf16.msra.mxu0 %v3736
        %3936 = vmatpush.bf16.msra.mxu0 %v3732
        %3937 = vmatpush.bf16.msra.mxu0 %v3728
        %3938 = vmatpush.bf16.msra.mxu0 %v3724
        %3939 = vmatpush.bf16.msra.mxu0 %v3720
        %3940 = vmatpush.bf16.msra.mxu0 %v3716
        %3941 = vmatpush.bf16.msra.mxu0 %v3712
        %3942 = vmatmul.bf16.gmra.mxu0 %v3438
        %v3943 = vpop.f32.mrf.mxu0
        %v3944 = vadd.f32 %v3512, %v3943
        %v3945 = vpop.f32.mrf.mxu0
        %v3946 = vadd.f32 %v3512, %v3945
        %3947 = vmatmul.bf16.gmra.mxu0 %v3440
        %v3948 = vpop.f32.mrf.mxu0
        %v3949 = vadd.f32 %v3512, %v3948
        %v3950 = vpop.f32.mrf.mxu0
        %v3951 = vadd.f32 %v3512, %v3950
        %3952 = vmatmul.bf16.gmra.mxu0 %v3442
        %v3953 = vpop.f32.mrf.mxu0
        %v3954 = vadd.f32 %v3512, %v3953
        %v3955 = vpop.f32.mrf.mxu0
        %v3956 = vadd.f32 %v3512, %v3955
        %3957 = vdwg.mxu0
        %3958 = vmatpush.bf16.msra.mxu0 %v3772
        %3959 = vmatpush.bf16.msra.mxu0 %v3768
        %3960 = vmatpush.bf16.msra.mxu0 %v3764
        %3961 = vmatpush.bf16.msra.mxu0 %v3760
        %3962 = vmatpush.bf16.msra.mxu0 %v3756
        %3963 = vmatpush.bf16.msra.mxu0 %v3752
        %3964 = vmatpush.bf16.msra.mxu0 %v3748
        %3965 = vmatpush.bf16.msra.mxu0 %v3744
        %3966 = vmatmul.bf16.gmra.mxu0 %v3439
        %v3967 = vpop.f32.mrf.mxu0
        %v3968 = vadd.f32 %v3944, %v3967
        %v3969 = vpop.f32.mrf.mxu0
        %v3970 = vadd.f32 %v3946, %v3969
        %3971 = vmatmul.bf16.gmra.mxu0 %v3441
        %v3972 = vpop.f32.mrf.mxu0
        %v3973 = vadd.f32 %v3949, %v3972
        %v3974 = vpop.f32.mrf.mxu0
        %v3975 = vadd.f32 %v3951, %v3974
        %3976 = vmatmul.bf16.gmra.mxu0 %v3443
        %v3977 = vpop.f32.mrf.mxu0
        %v3978 = vadd.f32 %v3954, %v3977
        %v3979 = vpop.f32.mrf.mxu0
        %v3980 = vadd.f32 %v3956, %v3979
        %3981 = vdwg.mxu0
        %3982 = vmatpush.bf16.msra.mxu0 %v3741
        %3983 = vmatpush.bf16.msra.mxu0 %v3737
        %3984 = vmatpush.bf16.msra.mxu0 %v3733
        %3985 = vmatpush.bf16.msra.mxu0 %v3729
        %3986 = vmatpush.bf16.msra.mxu0 %v3725
        %3987 = vmatpush.bf16.msra.mxu0 %v3721
        %3988 = vmatpush.bf16.msra.mxu0 %v3717
        %3989 = vmatpush.bf16.msra.mxu0 %v3713
        %3990 = vmatmul.bf16.gmra.mxu0 %v3438
        %v3991 = vpop.f32.mrf.mxu0
        %v3992 = vadd.f32 %v3513, %v3991
        %v3993 = vpop.f32.mrf.mxu0
        %v3994 = vadd.f32 %v3513, %v3993
        %3995 = vmatmul.bf16.gmra.mxu0 %v3440
        %v3996 = vpop.f32.mrf.mxu0
        %v3997 = vadd.f32 %v3513, %v3996
        %v3998 = vpop.f32.mrf.mxu0
        %v3999 = vadd.f32 %v3513, %v3998
        %4000 = vmatmul.bf16.gmra.mxu0 %v3442
        %v4001 = vpop.f32.mrf.mxu0
        %v4002 = vadd.f32 %v3513, %v4001
        %v4003 = vpop.f32.mrf.mxu0
        %v4004 = vadd.f32 %v3513, %v4003
        %4005 = vdwg.mxu0
        %4006 = vmatpush.bf16.msra.mxu0 %v3773
        %4007 = vmatpush.bf16.msra.mxu0 %v3769
        %4008 = vmatpush.bf16.msra.mxu0 %v3765
        %4009 = vmatpush.bf16.msra.mxu0 %v3761
        %4010 = vmatpush.bf16.msra.mxu0 %v3757
        %4011 = vmatpush.bf16.msra.mxu0 %v3753
        %4012 = vmatpush.bf16.msra.mxu0 %v3749
        %4013 = vmatpush.bf16.msra.mxu0 %v3745
        %4014 = vmatmul.bf16.gmra.mxu0 %v3439
        %v4015 = vpop.f32.mrf.mxu0
        %v4016 = vadd.f32 %v3992, %v4015
        %v4017 = vpop.f32.mrf.mxu0
        %v4018 = vadd.f32 %v3994, %v4017
        %4019 = vmatmul.bf16.gmra.mxu0 %v3441
        %v4020 = vpop.f32.mrf.mxu0
        %v4021 = vadd.f32 %v3997, %v4020
        %v4022 = vpop.f32.mrf.mxu0
        %v4023 = vadd.f32 %v3999, %v4022
        %4024 = vmatmul.bf16.gmra.mxu0 %v3443
        %v4025 = vpop.f32.mrf.mxu0
        %v4026 = vadd.f32 %v4002, %v4025
        %v4027 = vpop.f32.mrf.mxu0
        %v4028 = vadd.f32 %v4004, %v4027
        %4029 = vdwg.mxu0
        %v4030 = vld [vmem:[%s1235] sm:$0xff]
        %v4031 = vld [vmem:[%s1235 + $0x8] sm:$0xff]
        %v4032 = vld [vmem:[%s1235 + $0x10] sm:$0xff]
        %v4033 = vld [vmem:[%s1235 + $0x18] sm:$0xff]
        %v4034 = vld [vmem:[%s1235 + $0x20] sm:$0xff]
        %v4035 = vld [vmem:[%s1235 + $0x28] sm:$0xff]
        %v4036 = vld [vmem:[%s1235 + $0x30] sm:$0xff]
        %v4037 = vld [vmem:[%s1235 + $0x38] sm:$0xff]
        %v4038 = vld [vmem:[%s1235 + $0x40] sm:$0xff]
        %v4039 = vld [vmem:[%s1235 + $0x48] sm:$0xff]
        %v4040 = vld [vmem:[%s1235 + $0x50] sm:$0xff]
        %v4041 = vld [vmem:[%s1235 + $0x58] sm:$0xff]
        %v4042 = vld [vmem:[%s1235 + $0x60] sm:$0xff]
        %v4043 = vld [vmem:[%s1235 + $0x68] sm:$0xff]
        %v4044 = vld [vmem:[%s1235 + $0x70] sm:$0xff]
        %v4045 = vld [vmem:[%s1235 + $0x78] sm:$0xff]
        %v4046 = vld [vmem:[%s1235 + $0x80] sm:$0xff]
        %v4047 = vld [vmem:[%s1235 + $0x88] sm:$0xff]
        %v4048 = vld [vmem:[%s1235 + $0x90] sm:$0xff]
        %v4049 = vld [vmem:[%s1235 + $0x98] sm:$0xff]
        %v4050 = vld [vmem:[%s1235 + $0xa0] sm:$0xff]
        %v4051 = vld [vmem:[%s1235 + $0xa8] sm:$0xff]
        %v4052 = vld [vmem:[%s1235 + $0xb0] sm:$0xff]
        %v4053 = vld [vmem:[%s1235 + $0xb8] sm:$0xff]
        %v4054 = vld [vmem:[%s1235 + $0xc0] sm:$0xff]
        %v4055 = vld [vmem:[%s1235 + $0xc8] sm:$0xff]
        %v4056 = vld [vmem:[%s1235 + $0xd0] sm:$0xff]
        %v4057 = vld [vmem:[%s1235 + $0xd8] sm:$0xff]
        %v4058 = vld [vmem:[%s1235 + $0xe0] sm:$0xff]
        %v4059 = vld [vmem:[%s1235 + $0xe8] sm:$0xff]
        %v4060 = vld [vmem:[%s1235 + $0xf0] sm:$0xff]
        %v4061 = vld [vmem:[%s1235 + $0xf8] sm:$0xff]
        %v4062 = vld [vmem:[%s1245] sm:$0x3]
        %v4063 = vpack.c.bf16 %v3417, %v3379
        %v4064 = vpack.c.bf16 %v3419, %v3381
        %v4065 = vpack.c.bf16 %v3422, %v3384
        %v4066 = vpack.c.bf16 %v3424, %v3386
        %v4067 = vpack.c.bf16 %v3920, %v3872
        %v4068 = vpack.c.bf16 %v3922, %v3874
        %v4069 = vpack.c.bf16 %v3925, %v3877
        %v4070 = vpack.c.bf16 %v3927, %v3879
        %v4071 = vpack.c.bf16 %v3930, %v3882
        %v4072 = vpack.c.bf16 %v3932, %v3884
        %v4073 = vpack.c.bf16 %v4016, %v3968
        %v4074 = vpack.c.bf16 %v4018, %v3970
        %v4075 = vpack.c.bf16 %v4021, %v3973
        %v4076 = vpack.c.bf16 %v4023, %v3975
        %v4077 = vpack.c.bf16 %v4026, %v3978
        %v4078 = vpack.c.bf16 %v4028, %v3980
        %v4083 = vunpack.c.l.b16 %v4063
        %v4084 = vunpack.c.l.b16 %v4064
        %v4085 = vunpack.c.l.b16 %v4065
        %v4086 = vunpack.c.l.b16 %v4066
        %v4087 = vpack.c.b16 %v4084, %v4083
        %v4088 = vpack.c.b16 %v4086, %v4085
        %v4097 = vunpack.c.l.b16 %v4067
        %v4098 = vunpack.c.l.b16 %v4068
        %v4099 = vunpack.c.l.b16 %v4069
        %v4100 = vunpack.c.l.b16 %v4070
        %v4101 = vunpack.c.l.b16 %v4071
        %v4102 = vunpack.c.l.b16 %v4072
        %v4103 = vpack.c.b16 %v4098, %v4097
        %v4104 = vpack.c.b16 %v4100, %v4099
        %v4105 = vpack.c.b16 %v4102, %v4101
        %4109 = vmatpush.bf16.xpose.msra.mxu0 0
        %4110 = vmatpush.bf16.xpose.msra.mxu0 0
        %4111 = vmatpush.bf16.xpose.msra.mxu0 0
        %4112 = vmatpush.bf16.xpose.msra.mxu0 0
        %4113 = vmatpush.bf16.xpose.msra.mxu0 0
        %4114 = vmatpush.bf16.xpose.msra.mxu0 %v4105
        %4115 = vmatpush.bf16.xpose.msra.mxu0 %v4104
        %4116 = vmatpush.bf16.xpose.msra.mxu0 %v4103
        %4117 = vmatmul.bf16.gmra.mxu0 %v4087
        %v4118 = vpop.f32.mrf.mxu0
        %v4119 = vadd.f32 0.0, %v4118
        %v4120 = vpop.f32.mrf.mxu0
        %v4121 = vadd.f32 0.0, %v4120
        %4122 = vmatmul.bf16.gmra.mxu0 %v4088
        %v4123 = vpop.f32.mrf.mxu0
        %v4124 = vadd.f32 0.0, %v4123
        %v4125 = vpop.f32.mrf.mxu0
        %v4126 = vadd.f32 0.0, %v4125
        %4127 = vdwg.mxu0
        %v4128 = vmul.f32 %v4119, 0.088388346
        %v4129 = vmul.f32 %v4121, 0.088388346
        %v4130 = vmul.f32 %v4124, 0.088388346
        %v4131 = vmul.f32 %v4126, 0.088388346
        %vm4132 = vcmask 392192
        %v4133 = vsel %vm4132, %v4128, -inf
        %4134 = vmax.xlane.f32.xlu0 %v4133
        %v4135 = vpop.xlane.xlu0 %4134
        %v4136 = vsel %vm4132, %v4129, -inf
        %4137 = vmax.xlane.f32.xlu0 %v4136
        %v4138 = vpop.xlane.xlu0 %4137
        %v4139 = vsel %vm4132, %v4130, -inf
        %4140 = vmax.xlane.f32.xlu0 %v4139
        %v4141 = vpop.xlane.xlu0 %4140
        %v4142 = vsel %vm4132, %v4131, -inf
        %4143 = vmax.xlane.f32.xlu0 %v4142
        %v4144 = vpop.xlane.xlu0 %4143
        %v4145 = vsub.f32 %v4128, %v4135
        %v4146 = vsub.f32 %v4129, %v4138
        %v4147 = vsub.f32 %v4130, %v4141
        %v4148 = vsub.f32 %v4131, %v4144
        %v4149 = vmul.f32 %v4145, 1.442695
        %v4150 = vpow.pop %v4149
        %v4151 = vmul.f32 %v4146, 1.442695
        %v4152 = vpow.pop %v4151
        %v4153 = vmul.f32 %v4147, 1.442695
        %v4154 = vpow.pop %v4153
        %v4155 = vmul.f32 %v4148, 1.442695
        %v4156 = vpow.pop %v4155
        %v4157 = vsel %vm4132, %v4150, 0.0
        %4158 = vadd.xlane.f32.xlu0 %v4157
        %v4159 = vpop.xlane.xlu0 %4158
        %v4160 = vsel %vm4132, %v4152, 0.0
        %4161 = vadd.xlane.f32.xlu0 %v4160
        %v4162 = vpop.xlane.xlu0 %4161
        %v4163 = vsel %vm4132, %v4154, 0.0
        %4164 = vadd.xlane.f32.xlu0 %v4163
        %v4165 = vpop.xlane.xlu0 %4164
        %v4166 = vsel %vm4132, %v4156, 0.0
        %4167 = vadd.xlane.f32.xlu0 %v4166
        %v4168 = vpop.xlane.xlu0 %4167
        %v4169 = vrcp.pop %v4159
        %v4170 = vmul.f32 %v4159, %v4169
        %v4171 = vsub.f32 1.0, %v4170
        %v4172 = vmul.f32 %v4169, %v4171
        %v4173 = vadd.f32 %v4169, %v4172
        %vm4174 = vweird.f32 %v4159
        %vm4175 = vweird.f32 %v4169
        %vm4176 = vmor %vm4174, %vm4175
        %v4177 = vsel %vm4176, %v4169, %v4173
        %v4178 = vand.u32 2147483647, %v4159
        %vm4179 = vcmp.eq.f32.partialorder %v4178, 8.507059e+37
        %v4180 = vand.u32 %v4159, 2147483648
        %v4181 = vor.u32 1.1754944e-38, %v4180
        %v4182 = vsel %vm4179, %v4181, %v4177
        %v4183 = vmul.f32 %v4150, %v4182
        %v4184 = vrcp.pop %v4162
        %v4185 = vmul.f32 %v4162, %v4184
        %v4186 = vsub.f32 1.0, %v4185
        %v4187 = vmul.f32 %v4184, %v4186
        %v4188 = vadd.f32 %v4184, %v4187
        %vm4189 = vweird.f32 %v4162
        %vm4190 = vweird.f32 %v4184
        %vm4191 = vmor %vm4189, %vm4190
        %v4192 = vsel %vm4191, %v4184, %v4188
        %v4193 = vand.u32 2147483647, %v4162
        %vm4194 = vcmp.eq.f32.partialorder %v4193, 8.507059e+37
        %v4195 = vand.u32 %v4162, 2147483648
        %v4196 = vor.u32 1.1754944e-38, %v4195
        %v4197 = vsel %vm4194, %v4196, %v4192
        %v4198 = vmul.f32 %v4152, %v4197
        %v4199 = vrcp.pop %v4165
        %v4200 = vmul.f32 %v4165, %v4199
        %v4201 = vsub.f32 1.0, %v4200
        %v4202 = vmul.f32 %v4199, %v4201
        %v4203 = vadd.f32 %v4199, %v4202
        %vm4204 = vweird.f32 %v4165
        %vm4205 = vweird.f32 %v4199
        %vm4206 = vmor %vm4204, %vm4205
        %v4207 = vsel %vm4206, %v4199, %v4203
        %v4208 = vand.u32 2147483647, %v4165
        %vm4209 = vcmp.eq.f32.partialorder %v4208, 8.507059e+37
        %v4210 = vand.u32 %v4165, 2147483648
        %v4211 = vor.u32 1.1754944e-38, %v4210
        %v4212 = vsel %vm4209, %v4211, %v4207
        %v4213 = vmul.f32 %v4154, %v4212
        %v4214 = vrcp.pop %v4168
        %v4215 = vmul.f32 %v4168, %v4214
        %v4216 = vsub.f32 1.0, %v4215
        %v4217 = vmul.f32 %v4214, %v4216
        %v4218 = vadd.f32 %v4214, %v4217
        %vm4219 = vweird.f32 %v4168
        %vm4220 = vweird.f32 %v4214
        %vm4221 = vmor %vm4219, %vm4220
        %v4222 = vsel %vm4221, %v4214, %v4218
        %v4223 = vand.u32 2147483647, %v4168
        %vm4224 = vcmp.eq.f32.partialorder %v4223, 8.507059e+37
        %v4225 = vand.u32 %v4168, 2147483648
        %v4226 = vor.u32 1.1754944e-38, %v4225
        %v4227 = vsel %vm4224, %v4226, %v4222
        %v4228 = vmul.f32 %v4156, %v4227
        %v4229 = vpack.c.bf16 %v4198, %v4183
        %v4230 = vpack.c.bf16 %v4228, %v4213
        %v4237 = vunpack.c.l.b16 %v4073
        %v4238 = vunpack.c.l.b16 %v4074
        %v4239 = vunpack.c.l.b16 %v4075
        %v4240 = vunpack.c.l.b16 %v4076
        %v4241 = vunpack.c.l.b16 %v4077
        %v4242 = vunpack.c.l.b16 %v4078
        %v4243 = vpack.c.b16 %v4238, %v4237
        %v4244 = vpack.c.b16 %v4240, %v4239
        %v4245 = vpack.c.b16 %v4242, %v4241
        %v4250 = vsel %vm4132, %v4229, 0
        %v4253 = vsel %vm4132, %v4230, 0
        %4255 = vmatpush.bf16.msra.mxu0 0
        %4256 = vmatpush.bf16.msra.mxu0 0
        %4257 = vmatpush.bf16.msra.mxu0 0
        %4258 = vmatpush.bf16.msra.mxu0 0
        %4259 = vmatpush.bf16.msra.mxu0 0
        %4260 = vmatpush.bf16.msra.mxu0 %v4245
        %4261 = vmatpush.bf16.msra.mxu0 %v4244
        %4262 = vmatpush.bf16.msra.mxu0 %v4243
        %4263 = vmatmul.bf16.gmra.mxu0 %v4250
        %v4264 = vpop.f32.mrf.mxu0
        %v4265 = vadd.f32 0.0, %v4264
        %v4266 = vpop.f32.mrf.mxu0
        %v4267 = vadd.f32 0.0, %v4266
        %4268 = vmatmul.bf16.gmra.mxu0 %v4253
        %v4269 = vpop.f32.mrf.mxu0
        %v4270 = vadd.f32 0.0, %v4269
        %v4271 = vpop.f32.mrf.mxu0
        %v4272 = vadd.f32 0.0, %v4271
        %4273 = vdwg.mxu0
        %v4274 = vunpack.c.h.b16 %v4063
        %v4275 = vunpack.c.h.b16 %v4064
        %v4276 = vunpack.c.h.b16 %v4065
        %v4277 = vunpack.c.h.b16 %v4066
        %v4278 = vpack.c.b16 %v4275, %v4274
        %v4279 = vpack.c.b16 %v4277, %v4276
        %v4282 = vunpack.c.h.b16 %v4067
        %v4283 = vunpack.c.h.b16 %v4068
        %v4284 = vunpack.c.h.b16 %v4069
        %v4285 = vunpack.c.h.b16 %v4070
        %v4286 = vunpack.c.h.b16 %v4071
        %v4287 = vunpack.c.h.b16 %v4072
        %v4288 = vpack.c.b16 %v4283, %v4282
        %v4289 = vpack.c.b16 %v4285, %v4284
        %v4290 = vpack.c.b16 %v4287, %v4286
        %4294 = vmatpush.bf16.xpose.msra.mxu0 0
        %4295 = vmatpush.bf16.xpose.msra.mxu0 0
        %4296 = vmatpush.bf16.xpose.msra.mxu0 0
        %4297 = vmatpush.bf16.xpose.msra.mxu0 0
        %4298 = vmatpush.bf16.xpose.msra.mxu0 0
        %4299 = vmatpush.bf16.xpose.msra.mxu0 %v4290
        %4300 = vmatpush.bf16.xpose.msra.mxu0 %v4289
        %4301 = vmatpush.bf16.xpose.msra.mxu0 %v4288
        %4302 = vmatmul.bf16.gmra.mxu0 %v4278
        %v4303 = vpop.f32.mrf.mxu0
        %v4304 = vadd.f32 0.0, %v4303
        %v4305 = vpop.f32.mrf.mxu0
        %v4306 = vadd.f32 0.0, %v4305
        %4307 = vmatmul.bf16.gmra.mxu0 %v4279
        %v4308 = vpop.f32.mrf.mxu0
        %v4309 = vadd.f32 0.0, %v4308
        %v4310 = vpop.f32.mrf.mxu0
        %v4311 = vadd.f32 0.0, %v4310
        %4312 = vdwg.mxu0
        %v4313 = vmul.f32 %v4304, 0.088388346
        %v4314 = vmul.f32 %v4306, 0.088388346
        %v4315 = vmul.f32 %v4309, 0.088388346
        %v4316 = vmul.f32 %v4311, 0.088388346
        %v4317 = vsel %vm4132, %v4313, -inf
        %4318 = vmax.xlane.f32.xlu0 %v4317
        %v4319 = vpop.xlane.xlu0 %4318
        %v4320 = vsel %vm4132, %v4314, -inf
        %4321 = vmax.xlane.f32.xlu0 %v4320
        %v4322 = vpop.xlane.xlu0 %4321
        %v4323 = vsel %vm4132, %v4315, -inf
        %4324 = vmax.xlane.f32.xlu0 %v4323
        %v4325 = vpop.xlane.xlu0 %4324
        %v4326 = vsel %vm4132, %v4316, -inf
        %4327 = vmax.xlane.f32.xlu0 %v4326
        %v4328 = vpop.xlane.xlu0 %4327
        %v4329 = vsub.f32 %v4313, %v4319
        %v4330 = vsub.f32 %v4314, %v4322
        %v4331 = vsub.f32 %v4315, %v4325
        %v4332 = vsub.f32 %v4316, %v4328
        %v4333 = vmul.f32 %v4329, 1.442695
        %v4334 = vpow.pop %v4333
        %v4335 = vmul.f32 %v4330, 1.442695
        %v4336 = vpow.pop %v4335
        %v4337 = vmul.f32 %v4331, 1.442695
        %v4338 = vpow.pop %v4337
        %v4339 = vmul.f32 %v4332, 1.442695
        %v4340 = vpow.pop %v4339
        %v4341 = vsel %vm4132, %v4334, 0.0
        %4342 = vadd.xlane.f32.xlu0 %v4341
        %v4343 = vpop.xlane.xlu0 %4342
        %v4344 = vsel %vm4132, %v4336, 0.0
        %4345 = vadd.xlane.f32.xlu0 %v4344
        %v4346 = vpop.xlane.xlu0 %4345
        %v4347 = vsel %vm4132, %v4338, 0.0
        %4348 = vadd.xlane.f32.xlu0 %v4347
        %v4349 = vpop.xlane.xlu0 %4348
        %v4350 = vsel %vm4132, %v4340, 0.0
        %4351 = vadd.xlane.f32.xlu0 %v4350
        %v4352 = vpop.xlane.xlu0 %4351
        %v4353 = vrcp.pop %v4343
        %v4354 = vmul.f32 %v4343, %v4353
        %v4355 = vsub.f32 1.0, %v4354
        %v4356 = vmul.f32 %v4353, %v4355
        %v4357 = vadd.f32 %v4353, %v4356
        %vm4358 = vweird.f32 %v4343
        %vm4359 = vweird.f32 %v4353
        %vm4360 = vmor %vm4358, %vm4359
        %v4361 = vsel %vm4360, %v4353, %v4357
        %v4362 = vand.u32 2147483647, %v4343
        %vm4363 = vcmp.eq.f32.partialorder %v4362, 8.507059e+37
        %v4364 = vand.u32 %v4343, 2147483648
        %v4365 = vor.u32 1.1754944e-38, %v4364
        %v4366 = vsel %vm4363, %v4365, %v4361
        %v4367 = vmul.f32 %v4334, %v4366
        %v4368 = vrcp.pop %v4346
        %v4369 = vmul.f32 %v4346, %v4368
        %v4370 = vsub.f32 1.0, %v4369
        %v4371 = vmul.f32 %v4368, %v4370
        %v4372 = vadd.f32 %v4368, %v4371
        %vm4373 = vweird.f32 %v4346
        %vm4374 = vweird.f32 %v4368
        %vm4375 = vmor %vm4373, %vm4374
        %v4376 = vsel %vm4375, %v4368, %v4372
        %v4377 = vand.u32 2147483647, %v4346
        %vm4378 = vcmp.eq.f32.partialorder %v4377, 8.507059e+37
        %v4379 = vand.u32 %v4346, 2147483648
        %v4380 = vor.u32 1.1754944e-38, %v4379
        %v4381 = vsel %vm4378, %v4380, %v4376
        %v4382 = vmul.f32 %v4336, %v4381
        %v4383 = vrcp.pop %v4349
        %v4384 = vmul.f32 %v4349, %v4383
        %v4385 = vsub.f32 1.0, %v4384
        %v4386 = vmul.f32 %v4383, %v4385
        %v4387 = vadd.f32 %v4383, %v4386
        %vm4388 = vweird.f32 %v4349
        %vm4389 = vweird.f32 %v4383
        %vm4390 = vmor %vm4388, %vm4389
        %v4391 = vsel %vm4390, %v4383, %v4387
        %v4392 = vand.u32 2147483647, %v4349
        %vm4393 = vcmp.eq.f32.partialorder %v4392, 8.507059e+37
        %v4394 = vand.u32 %v4349, 2147483648
        %v4395 = vor.u32 1.1754944e-38, %v4394
        %v4396 = vsel %vm4393, %v4395, %v4391
        %v4397 = vmul.f32 %v4338, %v4396
        %v4398 = vrcp.pop %v4352
        %v4399 = vmul.f32 %v4352, %v4398
        %v4400 = vsub.f32 1.0, %v4399
        %v4401 = vmul.f32 %v4398, %v4400
        %v4402 = vadd.f32 %v4398, %v4401
        %vm4403 = vweird.f32 %v4352
        %vm4404 = vweird.f32 %v4398
        %vm4405 = vmor %vm4403, %vm4404
        %v4406 = vsel %vm4405, %v4398, %v4402
        %v4407 = vand.u32 2147483647, %v4352
        %vm4408 = vcmp.eq.f32.partialorder %v4407, 8.507059e+37
        %v4409 = vand.u32 %v4352, 2147483648
        %v4410 = vor.u32 1.1754944e-38, %v4409
        %v4411 = vsel %vm4408, %v4410, %v4406
        %v4412 = vmul.f32 %v4340, %v4411
        %v4413 = vpack.c.bf16 %v4382, %v4367
        %v4414 = vpack.c.bf16 %v4412, %v4397
        %v4415 = vunpack.c.h.b16 %v4073
        %v4416 = vunpack.c.h.b16 %v4074
        %v4417 = vunpack.c.h.b16 %v4075
        %v4418 = vunpack.c.h.b16 %v4076
        %v4419 = vunpack.c.h.b16 %v4077
        %v4420 = vunpack.c.h.b16 %v4078
        %v4421 = vpack.c.b16 %v4416, %v4415
        %v4422 = vpack.c.b16 %v4418, %v4417
        %v4423 = vpack.c.b16 %v4420, %v4419
        %v4428 = vsel %vm4132, %v4413, 0
        %v4431 = vsel %vm4132, %v4414, 0
        %4433 = vmatpush.bf16.msra.mxu0 0
        %4434 = vmatpush.bf16.msra.mxu0 0
        %4435 = vmatpush.bf16.msra.mxu0 0
        %4436 = vmatpush.bf16.msra.mxu0 0
        %4437 = vmatpush.bf16.msra.mxu0 0
        %4438 = vmatpush.bf16.msra.mxu0 %v4423
        %4439 = vmatpush.bf16.msra.mxu0 %v4422
        %4440 = vmatpush.bf16.msra.mxu0 %v4421
        %4441 = vmatmul.bf16.gmra.mxu0 %v4428
        %v4442 = vpop.f32.mrf.mxu0
        %v4443 = vadd.f32 0.0, %v4442
        %v4444 = vpop.f32.mrf.mxu0
        %v4445 = vadd.f32 0.0, %v4444
        %4446 = vmatmul.bf16.gmra.mxu0 %v4431
        %v4447 = vpop.f32.mrf.mxu0
        %v4448 = vadd.f32 0.0, %v4447
        %v4449 = vpop.f32.mrf.mxu0
        %v4450 = vadd.f32 0.0, %v4449
        %4451 = vdwg.mxu0
        %v4452 = vpack.c.bf16 %v4267, %v4265
        %v4453 = vpack.c.bf16 %v4445, %v4443
        %v4454 = vpack.c.bf16 %v4272, %v4270
        %v4455 = vpack.c.bf16 %v4450, %v4448
        %v4457 = vperm.slane %v4062, 0
        %v4458 = vperm.slane %v4062, 1
        %v4493 = vunpack.c.l.b16 %v4030
        %v4494 = vunpack.c.h.b16 %v4030
        %v4495 = vunpack.c.l.b16 %v4031
        %v4496 = vunpack.c.h.b16 %v4031
        %v4497 = vunpack.c.l.b16 %v4032
        %v4498 = vunpack.c.h.b16 %v4032
        %v4499 = vunpack.c.l.b16 %v4033
        %v4500 = vunpack.c.h.b16 %v4033
        %v4501 = vunpack.c.l.b16 %v4034
        %v4502 = vunpack.c.h.b16 %v4034
        %v4503 = vunpack.c.l.b16 %v4035
        %v4504 = vunpack.c.h.b16 %v4035
        %v4505 = vunpack.c.l.b16 %v4036
        %v4506 = vunpack.c.h.b16 %v4036
        %v4507 = vunpack.c.l.b16 %v4037
        %v4508 = vunpack.c.h.b16 %v4037
        %v4509 = vunpack.c.l.b16 %v4038
        %v4510 = vunpack.c.h.b16 %v4038
        %v4511 = vunpack.c.l.b16 %v4039
        %v4512 = vunpack.c.h.b16 %v4039
        %v4513 = vunpack.c.l.b16 %v4040
        %v4514 = vunpack.c.h.b16 %v4040
        %v4515 = vunpack.c.l.b16 %v4041
        %v4516 = vunpack.c.h.b16 %v4041
        %v4517 = vunpack.c.l.b16 %v4042
        %v4518 = vunpack.c.h.b16 %v4042
        %v4519 = vunpack.c.l.b16 %v4043
        %v4520 = vunpack.c.h.b16 %v4043
        %v4521 = vunpack.c.l.b16 %v4044
        %v4522 = vunpack.c.h.b16 %v4044
        %v4523 = vunpack.c.l.b16 %v4045
        %v4524 = vunpack.c.h.b16 %v4045
        %v4525 = vunpack.c.l.b16 %v4046
        %v4526 = vunpack.c.h.b16 %v4046
        %v4527 = vunpack.c.l.b16 %v4047
        %v4528 = vunpack.c.h.b16 %v4047
        %v4529 = vunpack.c.l.b16 %v4048
        %v4530 = vunpack.c.h.b16 %v4048
        %v4531 = vunpack.c.l.b16 %v4049
        %v4532 = vunpack.c.h.b16 %v4049
        %v4533 = vunpack.c.l.b16 %v4050
        %v4534 = vunpack.c.h.b16 %v4050
        %v4535 = vunpack.c.l.b16 %v4051
        %v4536 = vunpack.c.h.b16 %v4051
        %v4537 = vunpack.c.l.b16 %v4052
        %v4538 = vunpack.c.h.b16 %v4052
        %v4539 = vunpack.c.l.b16 %v4053
        %v4540 = vunpack.c.h.b16 %v4053
        %v4541 = vunpack.c.l.b16 %v4054
        %v4542 = vunpack.c.h.b16 %v4054
        %v4543 = vunpack.c.l.b16 %v4055
        %v4544 = vunpack.c.h.b16 %v4055
        %v4545 = vunpack.c.l.b16 %v4056
        %v4546 = vunpack.c.h.b16 %v4056
        %v4547 = vunpack.c.l.b16 %v4057
        %v4548 = vunpack.c.h.b16 %v4057
        %v4549 = vunpack.c.l.b16 %v4058
        %v4550 = vunpack.c.h.b16 %v4058
        %v4551 = vunpack.c.l.b16 %v4059
        %v4552 = vunpack.c.h.b16 %v4059
        %v4553 = vunpack.c.l.b16 %v4060
        %v4554 = vunpack.c.h.b16 %v4060
        %v4555 = vunpack.c.l.b16 %v4061
        %v4556 = vunpack.c.h.b16 %v4061
        %v4557 = vpack.c.b16 %v4495, %v4493
        %v4558 = vpack.c.b16 %v4496, %v4494
        %v4559 = vpack.c.b16 %v4499, %v4497
        %v4560 = vpack.c.b16 %v4500, %v4498
        %v4561 = vpack.c.b16 %v4503, %v4501
        %v4562 = vpack.c.b16 %v4504, %v4502
        %v4563 = vpack.c.b16 %v4507, %v4505
        %v4564 = vpack.c.b16 %v4508, %v4506
        %v4565 = vpack.c.b16 %v4511, %v4509
        %v4566 = vpack.c.b16 %v4512, %v4510
        %v4567 = vpack.c.b16 %v4515, %v4513
        %v4568 = vpack.c.b16 %v4516, %v4514
        %v4569 = vpack.c.b16 %v4519, %v4517
        %v4570 = vpack.c.b16 %v4520, %v4518
        %v4571 = vpack.c.b16 %v4523, %v4521
        %v4572 = vpack.c.b16 %v4524, %v4522
        %v4573 = vpack.c.b16 %v4527, %v4525
        %v4574 = vpack.c.b16 %v4528, %v4526
        %v4575 = vpack.c.b16 %v4531, %v4529
        %v4576 = vpack.c.b16 %v4532, %v4530
        %v4577 = vpack.c.b16 %v4535, %v4533
        %v4578 = vpack.c.b16 %v4536, %v4534
        %v4579 = vpack.c.b16 %v4539, %v4537
        %v4580 = vpack.c.b16 %v4540, %v4538
        %v4581 = vpack.c.b16 %v4543, %v4541
        %v4582 = vpack.c.b16 %v4544, %v4542
        %v4583 = vpack.c.b16 %v4547, %v4545
        %v4584 = vpack.c.b16 %v4548, %v4546
        %v4585 = vpack.c.b16 %v4551, %v4549
        %v4586 = vpack.c.b16 %v4552, %v4550
        %v4587 = vpack.c.b16 %v4555, %v4553
        %v4588 = vpack.c.b16 %v4556, %v4554
        %4621 = vmatpush.bf16.msra.mxu0 %v4571
        %4622 = vmatpush.bf16.msra.mxu0 %v4569
        %4623 = vmatpush.bf16.msra.mxu0 %v4567
        %4624 = vmatpush.bf16.msra.mxu0 %v4565
        %4625 = vmatpush.bf16.msra.mxu0 %v4563
        %4626 = vmatpush.bf16.msra.mxu0 %v4561
        %4627 = vmatpush.bf16.msra.mxu0 %v4559
        %4628 = vmatpush.bf16.msra.mxu0 %v4557
        %4629 = vmatmul.bf16.gmra.mxu0 %v4452
        %v4630 = vpop.f32.mrf.mxu0
        %v4631 = vadd.f32 %v4457, %v4630
        %v4632 = vpop.f32.mrf.mxu0
        %v4633 = vadd.f32 %v4457, %v4632
        %4634 = vmatmul.bf16.gmra.mxu0 %v4454
        %v4635 = vpop.f32.mrf.mxu0
        %v4636 = vadd.f32 %v4457, %v4635
        %v4637 = vpop.f32.mrf.mxu0
        %v4638 = vadd.f32 %v4457, %v4637
        %4639 = vdwg.mxu0
        %4640 = vmatpush.bf16.msra.mxu0 %v4587
        %4641 = vmatpush.bf16.msra.mxu0 %v4585
        %4642 = vmatpush.bf16.msra.mxu0 %v4583
        %4643 = vmatpush.bf16.msra.mxu0 %v4581
        %4644 = vmatpush.bf16.msra.mxu0 %v4579
        %4645 = vmatpush.bf16.msra.mxu0 %v4577
        %4646 = vmatpush.bf16.msra.mxu0 %v4575
        %4647 = vmatpush.bf16.msra.mxu0 %v4573
        %4648 = vmatmul.bf16.gmra.mxu0 %v4453
        %v4649 = vpop.f32.mrf.mxu0
        %v4650 = vadd.f32 %v4631, %v4649
        %v4651 = vpop.f32.mrf.mxu0
        %v4652 = vadd.f32 %v4633, %v4651
        %4653 = vmatmul.bf16.gmra.mxu0 %v4455
        %v4654 = vpop.f32.mrf.mxu0
        %v4655 = vadd.f32 %v4636, %v4654
        %v4656 = vpop.f32.mrf.mxu0
        %v4657 = vadd.f32 %v4638, %v4656
        %4658 = vdwg.mxu0
        %4659 = vmatpush.bf16.msra.mxu0 %v4572
        %4660 = vmatpush.bf16.msra.mxu0 %v4570
        %4661 = vmatpush.bf16.msra.mxu0 %v4568
        %4662 = vmatpush.bf16.msra.mxu0 %v4566
        %4663 = vmatpush.bf16.msra.mxu0 %v4564
        %4664 = vmatpush.bf16.msra.mxu0 %v4562
        %4665 = vmatpush.bf16.msra.mxu0 %v4560
        %4666 = vmatpush.bf16.msra.mxu0 %v4558
        %4667 = vmatmul.bf16.gmra.mxu0 %v4452
        %v4668 = vpop.f32.mrf.mxu0
        %v4669 = vadd.f32 %v4458, %v4668
        %v4670 = vpop.f32.mrf.mxu0
        %v4671 = vadd.f32 %v4458, %v4670
        %4672 = vmatmul.bf16.gmra.mxu0 %v4454
        %v4673 = vpop.f32.mrf.mxu0
        %v4674 = vadd.f32 %v4458, %v4673
        %v4675 = vpop.f32.mrf.mxu0
        %v4676 = vadd.f32 %v4458, %v4675
        %4677 = vdwg.mxu0
        %4678 = vmatpush.bf16.msra.mxu0 %v4588
        %4679 = vmatpush.bf16.msra.mxu0 %v4586
        %4680 = vmatpush.bf16.msra.mxu0 %v4584
        %4681 = vmatpush.bf16.msra.mxu0 %v4582
        %4682 = vmatpush.bf16.msra.mxu0 %v4580
        %4683 = vmatpush.bf16.msra.mxu0 %v4578
        %4684 = vmatpush.bf16.msra.mxu0 %v4576
        %4685 = vmatpush.bf16.msra.mxu0 %v4574
        %4686 = vmatmul.bf16.gmra.mxu0 %v4453
        %v4687 = vpop.f32.mrf.mxu0
        %v4688 = vadd.f32 %v4669, %v4687
        %v4689 = vpop.f32.mrf.mxu0
        %v4690 = vadd.f32 %v4671, %v4689
        %4691 = vmatmul.bf16.gmra.mxu0 %v4455
        %v4692 = vpop.f32.mrf.mxu0
        %v4693 = vadd.f32 %v4674, %v4692
        %v4694 = vpop.f32.mrf.mxu0
        %v4695 = vadd.f32 %v4676, %v4694
        %4696 = vdwg.mxu0
        %v4697 = vadd.f32 %v3140, %v4650
        %v4698 = vadd.f32 %v3141, %v4688
        %v4699 = vadd.f32 %v3142, %v4652
        %v4700 = vadd.f32 %v3143, %v4690
        %v4701 = vadd.f32 %v3144, %v4655
        %v4702 = vadd.f32 %v3145, %v4693
        %v4703 = vadd.f32 %v3146, %v4657
        %v4704 = vadd.f32 %v3147, %v4695
        %v4705 = vld [vmem:[%s1487] sm:$0x3]
        %v4706 = vld [vmem:[%s1255] sm:$0x3]
        %v4707 = vadd.f32 %v4697, %v4698
        %4708 = vadd.xlane.f32.xlu0 %v4707
        %v4709 = vpop.xlane.xlu0 %4708
        %v4710 = vadd.f32 %v4699, %v4700
        %4711 = vadd.xlane.f32.xlu0 %v4710
        %v4712 = vpop.xlane.xlu0 %4711
        %v4713 = vadd.f32 %v4701, %v4702
        %4714 = vadd.xlane.f32.xlu0 %v4713
        %v4715 = vpop.xlane.xlu0 %4714
        %v4716 = vadd.f32 %v4703, %v4704
        %4717 = vadd.xlane.f32.xlu0 %v4716
        %v4718 = vpop.xlane.xlu0 %4717
        %v4719 = vmul.f32 %v4709, %v3033
        %v4720 = vmul.f32 %v4712, %v3033
        %v4721 = vmul.f32 %v4715, %v3033
        %v4722 = vmul.f32 %v4718, %v3033
        %v4723 = vsub.f32 %v4697, %v4719
        %v4724 = vsub.f32 %v4698, %v4719
        %v4725 = vsub.f32 %v4699, %v4720
        %v4726 = vsub.f32 %v4700, %v4720
        %v4727 = vsub.f32 %v4701, %v4721
        %v4728 = vsub.f32 %v4702, %v4721
        %v4729 = vsub.f32 %v4703, %v4722
        %v4730 = vsub.f32 %v4704, %v4722
        %v4731 = vmul.f32 %v4723, %v4723
        %v4732 = vmul.f32 %v4724, %v4724
        %v4733 = vmul.f32 %v4725, %v4725
        %v4734 = vmul.f32 %v4726, %v4726
        %v4735 = vmul.f32 %v4727, %v4727
        %v4736 = vmul.f32 %v4728, %v4728
        %v4737 = vmul.f32 %v4729, %v4729
        %v4738 = vmul.f32 %v4730, %v4730
        %v4739 = vadd.f32 %v4731, %v4732
        %4740 = vadd.xlane.f32.xlu0 %v4739
        %v4741 = vpop.xlane.xlu0 %4740
        %v4742 = vadd.f32 %v4733, %v4734
        %4743 = vadd.xlane.f32.xlu0 %v4742
        %v4744 = vpop.xlane.xlu0 %4743
        %v4745 = vadd.f32 %v4735, %v4736
        %4746 = vadd.xlane.f32.xlu0 %v4745
        %v4747 = vpop.xlane.xlu0 %4746
        %v4748 = vadd.f32 %v4737, %v4738
        %4749 = vadd.xlane.f32.xlu0 %v4748
        %v4750 = vpop.xlane.xlu0 %4749
        %v4751 = vmul.f32 %v4741, %v3033
        %v4752 = vmul.f32 %v4744, %v3033
        %v4753 = vmul.f32 %v4747, %v3033
        %v4754 = vmul.f32 %v4750, %v3033
        %v4755 = vadd.f32 %v4751, 1e-05
        %v4756 = vadd.f32 %v4752, 1e-05
        %v4757 = vadd.f32 %v4753, 1e-05
        %v4758 = vadd.f32 %v4754, 1e-05
        %v4759 = vrsqrt.pop %v4755
        %v4760 = vmul.f32 %v4759, %v4755
        %v4761 = vmul.f32 %v4760, %v4759
        %v4762 = vmul.f32 0.5, %v4761
        %v4763 = vsub.f32 1.5, %v4762
        %v4764 = vmul.f32 %v4759, %v4763
        %vm4765 = vweird.f32 %v4755
        %vm4766 = vweird.f32 %v4759
        %vm4767 = vmor %vm4765, %vm4766
        %v4768 = vsel %vm4767, %v4759, %v4764
        %v4769 = vrsqrt.pop %v4756
        %v4770 = vmul.f32 %v4769, %v4756
        %v4771 = vmul.f32 %v4770, %v4769
        %v4772 = vmul.f32 0.5, %v4771
        %v4773 = vsub.f32 1.5, %v4772
        %v4774 = vmul.f32 %v4769, %v4773
        %vm4775 = vweird.f32 %v4756
        %vm4776 = vweird.f32 %v4769
        %vm4777 = vmor %vm4775, %vm4776
        %v4778 = vsel %vm4777, %v4769, %v4774
        %v4779 = vrsqrt.pop %v4757
        %v4780 = vmul.f32 %v4779, %v4757
        %v4781 = vmul.f32 %v4780, %v4779
        %v4782 = vmul.f32 0.5, %v4781
        %v4783 = vsub.f32 1.5, %v4782
        %v4784 = vmul.f32 %v4779, %v4783
        %vm4785 = vweird.f32 %v4757
        %vm4786 = vweird.f32 %v4779
        %vm4787 = vmor %vm4785, %vm4786
        %v4788 = vsel %vm4787, %v4779, %v4784
        %v4789 = vrsqrt.pop %v4758
        %v4790 = vmul.f32 %v4789, %v4758
        %v4791 = vmul.f32 %v4790, %v4789
        %v4792 = vmul.f32 0.5, %v4791
        %v4793 = vsub.f32 1.5, %v4792
        %v4794 = vmul.f32 %v4789, %v4793
        %vm4795 = vweird.f32 %v4758
        %vm4796 = vweird.f32 %v4789
        %vm4797 = vmor %vm4795, %vm4796
        %v4798 = vsel %vm4797, %v4789, %v4794
        %v4799 = vmul.f32 %v4723, %v4768
        %v4800 = vmul.f32 %v4724, %v4768
        %v4801 = vmul.f32 %v4725, %v4778
        %v4802 = vmul.f32 %v4726, %v4778
        %v4803 = vmul.f32 %v4727, %v4788
        %v4804 = vmul.f32 %v4728, %v4788
        %v4805 = vmul.f32 %v4729, %v4798
        %v4806 = vmul.f32 %v4730, %v4798
        %v4808 = vperm.slane %v4705, 0
        %v4809 = vperm.slane %v4705, 1
        %v4812 = vmul.f32 %v4799, %v4808
        %v4813 = vmul.f32 %v4800, %v4809
        %v4814 = vmul.f32 %v4801, %v4808
        %v4815 = vmul.f32 %v4802, %v4809
        %v4816 = vmul.f32 %v4803, %v4808
        %v4817 = vmul.f32 %v4804, %v4809
        %v4818 = vmul.f32 %v4805, %v4808
        %v4819 = vmul.f32 %v4806, %v4809
        %v4821 = vperm.slane %v4706, 0
        %v4822 = vperm.slane %v4706, 1
        %v4825 = vadd.f32 %v4812, %v4821
        %v4826 = vadd.f32 %v4813, %v4822
        %v4827 = vadd.f32 %v4814, %v4821
        %v4828 = vadd.f32 %v4815, %v4822
        %v4829 = vadd.f32 %v4816, %v4821
        %v4830 = vadd.f32 %v4817, %v4822
        %v4831 = vadd.f32 %v4818, %v4821
        %v4832 = vadd.f32 %v4819, %v4822
        %v4833 = vpack.c.bf16 %v4827, %v4825
        %v4834 = vpack.c.bf16 %v4828, %v4826
        %v4835 = vpack.c.bf16 %v4831, %v4829
        %v4836 = vpack.c.bf16 %v4832, %v4830
        %v4837 = vld [vmem:[%s1265] sm:$0xff]
        %v4838 = vld [vmem:[%s1265 + $0x8] sm:$0xff]
        %v4839 = vld [vmem:[%s1265 + $0x10] sm:$0xff]
        %v4840 = vld [vmem:[%s1265 + $0x18] sm:$0xff]
        %v4841 = vld [vmem:[%s1265 + $0x20] sm:$0xff]
        %v4842 = vld [vmem:[%s1265 + $0x28] sm:$0xff]
        %v4843 = vld [vmem:[%s1265 + $0x30] sm:$0xff]
        %v4844 = vld [vmem:[%s1265 + $0x38] sm:$0xff]
        %v4845 = vld [vmem:[%s1265 + $0x40] sm:$0xff]
        %v4846 = vld [vmem:[%s1265 + $0x48] sm:$0xff]
        %v4847 = vld [vmem:[%s1265 + $0x50] sm:$0xff]
        %v4848 = vld [vmem:[%s1265 + $0x58] sm:$0xff]
        %v4849 = vld [vmem:[%s1265 + $0x60] sm:$0xff]
        %v4850 = vld [vmem:[%s1265 + $0x68] sm:$0xff]
        %v4851 = vld [vmem:[%s1265 + $0x70] sm:$0xff]
        %v4852 = vld [vmem:[%s1265 + $0x78] sm:$0xff]
        %v4853 = vld [vmem:[%s1265 + $0x80] sm:$0xff]
        %v4854 = vld [vmem:[%s1265 + $0x88] sm:$0xff]
        %v4855 = vld [vmem:[%s1265 + $0x90] sm:$0xff]
        %v4856 = vld [vmem:[%s1265 + $0x98] sm:$0xff]
        %v4857 = vld [vmem:[%s1265 + $0xa0] sm:$0xff]
        %v4858 = vld [vmem:[%s1265 + $0xa8] sm:$0xff]
        %v4859 = vld [vmem:[%s1265 + $0xb0] sm:$0xff]
        %v4860 = vld [vmem:[%s1265 + $0xb8] sm:$0xff]
        %v4861 = vld [vmem:[%s1265 + $0xc0] sm:$0xff]
        %v4862 = vld [vmem:[%s1265 + $0xc8] sm:$0xff]
        %v4863 = vld [vmem:[%s1265 + $0xd0] sm:$0xff]
        %v4864 = vld [vmem:[%s1265 + $0xd8] sm:$0xff]
        %v4865 = vld [vmem:[%s1265 + $0xe0] sm:$0xff]
        %v4866 = vld [vmem:[%s1265 + $0xe8] sm:$0xff]
        %v4867 = vld [vmem:[%s1265 + $0xf0] sm:$0xff]
        %v4868 = vld [vmem:[%s1265 + $0xf8] sm:$0xff]
        %v4869 = vld [vmem:[%s1265 + $0x100] sm:$0xff]
        %v4870 = vld [vmem:[%s1265 + $0x108] sm:$0xff]
        %v4871 = vld [vmem:[%s1265 + $0x110] sm:$0xff]
        %v4872 = vld [vmem:[%s1265 + $0x118] sm:$0xff]
        %v4873 = vld [vmem:[%s1265 + $0x120] sm:$0xff]
        %v4874 = vld [vmem:[%s1265 + $0x128] sm:$0xff]
        %v4875 = vld [vmem:[%s1265 + $0x130] sm:$0xff]
        %v4876 = vld [vmem:[%s1265 + $0x138] sm:$0xff]
        %v4877 = vld [vmem:[%s1265 + $0x140] sm:$0xff]
        %v4878 = vld [vmem:[%s1265 + $0x148] sm:$0xff]
        %v4879 = vld [vmem:[%s1265 + $0x150] sm:$0xff]
        %v4880 = vld [vmem:[%s1265 + $0x158] sm:$0xff]
        %v4881 = vld [vmem:[%s1265 + $0x160] sm:$0xff]
        %v4882 = vld [vmem:[%s1265 + $0x168] sm:$0xff]
        %v4883 = vld [vmem:[%s1265 + $0x170] sm:$0xff]
        %v4884 = vld [vmem:[%s1265 + $0x178] sm:$0xff]
        %v4885 = vld [vmem:[%s1265 + $0x180] sm:$0xff]
        %v4886 = vld [vmem:[%s1265 + $0x188] sm:$0xff]
        %v4887 = vld [vmem:[%s1265 + $0x190] sm:$0xff]
        %v4888 = vld [vmem:[%s1265 + $0x198] sm:$0xff]
        %v4889 = vld [vmem:[%s1265 + $0x1a0] sm:$0xff]
        %v4890 = vld [vmem:[%s1265 + $0x1a8] sm:$0xff]
        %v4891 = vld [vmem:[%s1265 + $0x1b0] sm:$0xff]
        %v4892 = vld [vmem:[%s1265 + $0x1b8] sm:$0xff]
        %v4893 = vld [vmem:[%s1265 + $0x1c0] sm:$0xff]
        %v4894 = vld [vmem:[%s1265 + $0x1c8] sm:$0xff]
        %v4895 = vld [vmem:[%s1265 + $0x1d0] sm:$0xff]
        %v4896 = vld [vmem:[%s1265 + $0x1d8] sm:$0xff]
        %v4897 = vld [vmem:[%s1265 + $0x1e0] sm:$0xff]
        %v4898 = vld [vmem:[%s1265 + $0x1e8] sm:$0xff]
        %v4899 = vld [vmem:[%s1265 + $0x1f0] sm:$0xff]
        %v4900 = vld [vmem:[%s1265 + $0x1f8] sm:$0xff]
        %v4901 = vld [vmem:[%s1275] sm:$0xf]
        %v4903 = vperm.slane %v4901, 0
        %v4904 = vperm.slane %v4901, 1
        %v4905 = vperm.slane %v4901, 2
        %v4906 = vperm.slane %v4901, 3
        %v4975 = vunpack.c.l.b16 %v4837
        %v4976 = vunpack.c.h.b16 %v4837
        %v4977 = vunpack.c.l.b16 %v4838
        %v4978 = vunpack.c.h.b16 %v4838
        %v4979 = vunpack.c.l.b16 %v4839
        %v4980 = vunpack.c.h.b16 %v4839
        %v4981 = vunpack.c.l.b16 %v4840
        %v4982 = vunpack.c.h.b16 %v4840
        %v4983 = vunpack.c.l.b16 %v4841
        %v4984 = vunpack.c.h.b16 %v4841
        %v4985 = vunpack.c.l.b16 %v4842
        %v4986 = vunpack.c.h.b16 %v4842
        %v4987 = vunpack.c.l.b16 %v4843
        %v4988 = vunpack.c.h.b16 %v4843
        %v4989 = vunpack.c.l.b16 %v4844
        %v4990 = vunpack.c.h.b16 %v4844
        %v4991 = vunpack.c.l.b16 %v4845
        %v4992 = vunpack.c.h.b16 %v4845
        %v4993 = vunpack.c.l.b16 %v4846
        %v4994 = vunpack.c.h.b16 %v4846
        %v4995 = vunpack.c.l.b16 %v4847
        %v4996 = vunpack.c.h.b16 %v4847
        %v4997 = vunpack.c.l.b16 %v4848
        %v4998 = vunpack.c.h.b16 %v4848
        %v4999 = vunpack.c.l.b16 %v4849
        %v5000 = vunpack.c.h.b16 %v4849
        %v5001 = vunpack.c.l.b16 %v4850
        %v5002 = vunpack.c.h.b16 %v4850
        %v5003 = vunpack.c.l.b16 %v4851
        %v5004 = vunpack.c.h.b16 %v4851
        %v5005 = vunpack.c.l.b16 %v4852
        %v5006 = vunpack.c.h.b16 %v4852
        %v5007 = vunpack.c.l.b16 %v4853
        %v5008 = vunpack.c.h.b16 %v4853
        %v5009 = vunpack.c.l.b16 %v4854
        %v5010 = vunpack.c.h.b16 %v4854
        %v5011 = vunpack.c.l.b16 %v4855
        %v5012 = vunpack.c.h.b16 %v4855
        %v5013 = vunpack.c.l.b16 %v4856
        %v5014 = vunpack.c.h.b16 %v4856
        %v5015 = vunpack.c.l.b16 %v4857
        %v5016 = vunpack.c.h.b16 %v4857
        %v5017 = vunpack.c.l.b16 %v4858
        %v5018 = vunpack.c.h.b16 %v4858
        %v5019 = vunpack.c.l.b16 %v4859
        %v5020 = vunpack.c.h.b16 %v4859
        %v5021 = vunpack.c.l.b16 %v4860
        %v5022 = vunpack.c.h.b16 %v4860
        %v5023 = vunpack.c.l.b16 %v4861
        %v5024 = vunpack.c.h.b16 %v4861
        %v5025 = vunpack.c.l.b16 %v4862
        %v5026 = vunpack.c.h.b16 %v4862
        %v5027 = vunpack.c.l.b16 %v4863
        %v5028 = vunpack.c.h.b16 %v4863
        %v5029 = vunpack.c.l.b16 %v4864
        %v5030 = vunpack.c.h.b16 %v4864
        %v5031 = vunpack.c.l.b16 %v4865
        %v5032 = vunpack.c.h.b16 %v4865
        %v5033 = vunpack.c.l.b16 %v4866
        %v5034 = vunpack.c.h.b16 %v4866
        %v5035 = vunpack.c.l.b16 %v4867
        %v5036 = vunpack.c.h.b16 %v4867
        %v5037 = vunpack.c.l.b16 %v4868
        %v5038 = vunpack.c.h.b16 %v4868
        %v5039 = vunpack.c.l.b16 %v4869
        %v5040 = vunpack.c.h.b16 %v4869
        %v5041 = vunpack.c.l.b16 %v4870
        %v5042 = vunpack.c.h.b16 %v4870
        %v5043 = vunpack.c.l.b16 %v4871
        %v5044 = vunpack.c.h.b16 %v4871
        %v5045 = vunpack.c.l.b16 %v4872
        %v5046 = vunpack.c.h.b16 %v4872
        %v5047 = vunpack.c.l.b16 %v4873
        %v5048 = vunpack.c.h.b16 %v4873
        %v5049 = vunpack.c.l.b16 %v4874
        %v5050 = vunpack.c.h.b16 %v4874
        %v5051 = vunpack.c.l.b16 %v4875
        %v5052 = vunpack.c.h.b16 %v4875
        %v5053 = vunpack.c.l.b16 %v4876
        %v5054 = vunpack.c.h.b16 %v4876
        %v5055 = vunpack.c.l.b16 %v4877
        %v5056 = vunpack.c.h.b16 %v4877
        %v5057 = vunpack.c.l.b16 %v4878
        %v5058 = vunpack.c.h.b16 %v4878
        %v5059 = vunpack.c.l.b16 %v4879
        %v5060 = vunpack.c.h.b16 %v4879
        %v5061 = vunpack.c.l.b16 %v4880
        %v5062 = vunpack.c.h.b16 %v4880
        %v5063 = vunpack.c.l.b16 %v4881
        %v5064 = vunpack.c.h.b16 %v4881
        %v5065 = vunpack.c.l.b16 %v4882
        %v5066 = vunpack.c.h.b16 %v4882
        %v5067 = vunpack.c.l.b16 %v4883
        %v5068 = vunpack.c.h.b16 %v4883
        %v5069 = vunpack.c.l.b16 %v4884
        %v5070 = vunpack.c.h.b16 %v4884
        %v5071 = vunpack.c.l.b16 %v4885
        %v5072 = vunpack.c.h.b16 %v4885
        %v5073 = vunpack.c.l.b16 %v4886
        %v5074 = vunpack.c.h.b16 %v4886
        %v5075 = vunpack.c.l.b16 %v4887
        %v5076 = vunpack.c.h.b16 %v4887
        %v5077 = vunpack.c.l.b16 %v4888
        %v5078 = vunpack.c.h.b16 %v4888
        %v5079 = vunpack.c.l.b16 %v4889
        %v5080 = vunpack.c.h.b16 %v4889
        %v5081 = vunpack.c.l.b16 %v4890
        %v5082 = vunpack.c.h.b16 %v4890
        %v5083 = vunpack.c.l.b16 %v4891
        %v5084 = vunpack.c.h.b16 %v4891
        %v5085 = vunpack.c.l.b16 %v4892
        %v5086 = vunpack.c.h.b16 %v4892
        %v5087 = vunpack.c.l.b16 %v4893
        %v5088 = vunpack.c.h.b16 %v4893
        %v5089 = vunpack.c.l.b16 %v4894
        %v5090 = vunpack.c.h.b16 %v4894
        %v5091 = vunpack.c.l.b16 %v4895
        %v5092 = vunpack.c.h.b16 %v4895
        %v5093 = vunpack.c.l.b16 %v4896
        %v5094 = vunpack.c.h.b16 %v4896
        %v5095 = vunpack.c.l.b16 %v4897
        %v5096 = vunpack.c.h.b16 %v4897
        %v5097 = vunpack.c.l.b16 %v4898
        %v5098 = vunpack.c.h.b16 %v4898
        %v5099 = vunpack.c.l.b16 %v4899
        %v5100 = vunpack.c.h.b16 %v4899
        %v5101 = vunpack.c.l.b16 %v4900
        %v5102 = vunpack.c.h.b16 %v4900
        %v5103 = vpack.c.b16 %v4979, %v4975
        %v5104 = vpack.c.b16 %v4980, %v4976
        %v5105 = vpack.c.b16 %v4981, %v4977
        %v5106 = vpack.c.b16 %v4982, %v4978
        %v5107 = vpack.c.b16 %v4987, %v4983
        %v5108 = vpack.c.b16 %v4988, %v4984
        %v5109 = vpack.c.b16 %v4989, %v4985
        %v5110 = vpack.c.b16 %v4990, %v4986
        %v5111 = vpack.c.b16 %v4995, %v4991
        %v5112 = vpack.c.b16 %v4996, %v4992
        %v5113 = vpack.c.b16 %v4997, %v4993
        %v5114 = vpack.c.b16 %v4998, %v4994
        %v5115 = vpack.c.b16 %v5003, %v4999
        %v5116 = vpack.c.b16 %v5004, %v5000
        %v5117 = vpack.c.b16 %v5005, %v5001
        %v5118 = vpack.c.b16 %v5006, %v5002
        %v5119 = vpack.c.b16 %v5011, %v5007
        %v5120 = vpack.c.b16 %v5012, %v5008
        %v5121 = vpack.c.b16 %v5013, %v5009
        %v5122 = vpack.c.b16 %v5014, %v5010
        %v5123 = vpack.c.b16 %v5019, %v5015
        %v5124 = vpack.c.b16 %v5020, %v5016
        %v5125 = vpack.c.b16 %v5021, %v5017
        %v5126 = vpack.c.b16 %v5022, %v5018
        %v5127 = vpack.c.b16 %v5027, %v5023
        %v5128 = vpack.c.b16 %v5028, %v5024
        %v5129 = vpack.c.b16 %v5029, %v5025
        %v5130 = vpack.c.b16 %v5030, %v5026
        %v5131 = vpack.c.b16 %v5035, %v5031
        %v5132 = vpack.c.b16 %v5036, %v5032
        %v5133 = vpack.c.b16 %v5037, %v5033
        %v5134 = vpack.c.b16 %v5038, %v5034
        %v5135 = vpack.c.b16 %v5043, %v5039
        %v5136 = vpack.c.b16 %v5044, %v5040
        %v5137 = vpack.c.b16 %v5045, %v5041
        %v5138 = vpack.c.b16 %v5046, %v5042
        %v5139 = vpack.c.b16 %v5051, %v5047
        %v5140 = vpack.c.b16 %v5052, %v5048
        %v5141 = vpack.c.b16 %v5053, %v5049
        %v5142 = vpack.c.b16 %v5054, %v5050
        %v5143 = vpack.c.b16 %v5059, %v5055
        %v5144 = vpack.c.b16 %v5060, %v5056
        %v5145 = vpack.c.b16 %v5061, %v5057
        %v5146 = vpack.c.b16 %v5062, %v5058
        %v5147 = vpack.c.b16 %v5067, %v5063
        %v5148 = vpack.c.b16 %v5068, %v5064
        %v5149 = vpack.c.b16 %v5069, %v5065
        %v5150 = vpack.c.b16 %v5070, %v5066
        %v5151 = vpack.c.b16 %v5075, %v5071
        %v5152 = vpack.c.b16 %v5076, %v5072
        %v5153 = vpack.c.b16 %v5077, %v5073
        %v5154 = vpack.c.b16 %v5078, %v5074
        %v5155 = vpack.c.b16 %v5083, %v5079
        %v5156 = vpack.c.b16 %v5084, %v5080
        %v5157 = vpack.c.b16 %v5085, %v5081
        %v5158 = vpack.c.b16 %v5086, %v5082
        %v5159 = vpack.c.b16 %v5091, %v5087
        %v5160 = vpack.c.b16 %v5092, %v5088
        %v5161 = vpack.c.b16 %v5093, %v5089
        %v5162 = vpack.c.b16 %v5094, %v5090
        %v5163 = vpack.c.b16 %v5099, %v5095
        %v5164 = vpack.c.b16 %v5100, %v5096
        %v5165 = vpack.c.b16 %v5101, %v5097
        %v5166 = vpack.c.b16 %v5102, %v5098
        %5231 = vmatpush.bf16.msra.mxu0 %v5131
        %5232 = vmatpush.bf16.msra.mxu0 %v5127
        %5233 = vmatpush.bf16.msra.mxu0 %v5123
        %5234 = vmatpush.bf16.msra.mxu0 %v5119
        %5235 = vmatpush.bf16.msra.mxu0 %v5115
        %5236 = vmatpush.bf16.msra.mxu0 %v5111
        %5237 = vmatpush.bf16.msra.mxu0 %v5107
        %5238 = vmatpush.bf16.msra.mxu0 %v5103
        %5239 = vmatmul.bf16.gmra.mxu0 %v4833
        %v5240 = vpop.f32.mrf.mxu0
        %v5241 = vadd.f32 %v4903, %v5240
        %v5242 = vpop.f32.mrf.mxu0
        %v5243 = vadd.f32 %v4903, %v5242
        %5244 = vmatmul.bf16.gmra.mxu0 %v4835
        %v5245 = vpop.f32.mrf.mxu0
        %v5246 = vadd.f32 %v4903, %v5245
        %v5247 = vpop.f32.mrf.mxu0
        %v5248 = vadd.f32 %v4903, %v5247
        %5249 = vdwg.mxu0
        %5250 = vmatpush.bf16.msra.mxu0 %v5163
        %5251 = vmatpush.bf16.msra.mxu0 %v5159
        %5252 = vmatpush.bf16.msra.mxu0 %v5155
        %5253 = vmatpush.bf16.msra.mxu0 %v5151
        %5254 = vmatpush.bf16.msra.mxu0 %v5147
        %5255 = vmatpush.bf16.msra.mxu0 %v5143
        %5256 = vmatpush.bf16.msra.mxu0 %v5139
        %5257 = vmatpush.bf16.msra.mxu0 %v5135
        %5258 = vmatmul.bf16.gmra.mxu0 %v4834
        %v5259 = vpop.f32.mrf.mxu0
        %v5260 = vadd.f32 %v5241, %v5259
        %v5261 = vpop.f32.mrf.mxu0
        %v5262 = vadd.f32 %v5243, %v5261
        %5263 = vmatmul.bf16.gmra.mxu0 %v4836
        %v5264 = vpop.f32.mrf.mxu0
        %v5265 = vadd.f32 %v5246, %v5264
        %v5266 = vpop.f32.mrf.mxu0
        %v5267 = vadd.f32 %v5248, %v5266
        %5268 = vdwg.mxu0
        %5269 = vmatpush.bf16.msra.mxu0 %v5132
        %5270 = vmatpush.bf16.msra.mxu0 %v5128
        %5271 = vmatpush.bf16.msra.mxu0 %v5124
        %5272 = vmatpush.bf16.msra.mxu0 %v5120
        %5273 = vmatpush.bf16.msra.mxu0 %v5116
        %5274 = vmatpush.bf16.msra.mxu0 %v5112
        %5275 = vmatpush.bf16.msra.mxu0 %v5108
        %5276 = vmatpush.bf16.msra.mxu0 %v5104
        %5277 = vmatmul.bf16.gmra.mxu0 %v4833
        %v5278 = vpop.f32.mrf.mxu0
        %v5279 = vadd.f32 %v4904, %v5278
        %v5280 = vpop.f32.mrf.mxu0
        %v5281 = vadd.f32 %v4904, %v5280
        %5282 = vmatmul.bf16.gmra.mxu0 %v4835
        %v5283 = vpop.f32.mrf.mxu0
        %v5284 = vadd.f32 %v4904, %v5283
        %v5285 = vpop.f32.mrf.mxu0
        %v5286 = vadd.f32 %v4904, %v5285
        %5287 = vdwg.mxu0
        %5288 = vmatpush.bf16.msra.mxu0 %v5164
        %5289 = vmatpush.bf16.msra.mxu0 %v5160
        %5290 = vmatpush.bf16.msra.mxu0 %v5156
        %5291 = vmatpush.bf16.msra.mxu0 %v5152
        %5292 = vmatpush.bf16.msra.mxu0 %v5148
        %5293 = vmatpush.bf16.msra.mxu0 %v5144
        %5294 = vmatpush.bf16.msra.mxu0 %v5140
        %5295 = vmatpush.bf16.msra.mxu0 %v5136
        %5296 = vmatmul.bf16.gmra.mxu0 %v4834
        %v5297 = vpop.f32.mrf.mxu0
        %v5298 = vadd.f32 %v5279, %v5297
        %v5299 = vpop.f32.mrf.mxu0
        %v5300 = vadd.f32 %v5281, %v5299
        %5301 = vmatmul.bf16.gmra.mxu0 %v4836
        %v5302 = vpop.f32.mrf.mxu0
        %v5303 = vadd.f32 %v5284, %v5302
        %v5304 = vpop.f32.mrf.mxu0
        %v5305 = vadd.f32 %v5286, %v5304
        %5306 = vdwg.mxu0
        %5307 = vmatpush.bf16.msra.mxu0 %v5133
        %5308 = vmatpush.bf16.msra.mxu0 %v5129
        %5309 = vmatpush.bf16.msra.mxu0 %v5125
        %5310 = vmatpush.bf16.msra.mxu0 %v5121
        %5311 = vmatpush.bf16.msra.mxu0 %v5117
        %5312 = vmatpush.bf16.msra.mxu0 %v5113
        %5313 = vmatpush.bf16.msra.mxu0 %v5109
        %5314 = vmatpush.bf16.msra.mxu0 %v5105
        %5315 = vmatmul.bf16.gmra.mxu0 %v4833
        %v5316 = vpop.f32.mrf.mxu0
        %v5317 = vadd.f32 %v4905, %v5316
        %v5318 = vpop.f32.mrf.mxu0
        %v5319 = vadd.f32 %v4905, %v5318
        %5320 = vmatmul.bf16.gmra.mxu0 %v4835
        %v5321 = vpop.f32.mrf.mxu0
        %v5322 = vadd.f32 %v4905, %v5321
        %v5323 = vpop.f32.mrf.mxu0
        %v5324 = vadd.f32 %v4905, %v5323
        %5325 = vdwg.mxu0
        %5326 = vmatpush.bf16.msra.mxu0 %v5165
        %5327 = vmatpush.bf16.msra.mxu0 %v5161
        %5328 = vmatpush.bf16.msra.mxu0 %v5157
        %5329 = vmatpush.bf16.msra.mxu0 %v5153
        %5330 = vmatpush.bf16.msra.mxu0 %v5149
        %5331 = vmatpush.bf16.msra.mxu0 %v5145
        %5332 = vmatpush.bf16.msra.mxu0 %v5141
        %5333 = vmatpush.bf16.msra.mxu0 %v5137
        %5334 = vmatmul.bf16.gmra.mxu0 %v4834
        %v5335 = vpop.f32.mrf.mxu0
        %v5336 = vadd.f32 %v5317, %v5335
        %v5337 = vpop.f32.mrf.mxu0
        %v5338 = vadd.f32 %v5319, %v5337
        %5339 = vmatmul.bf16.gmra.mxu0 %v4836
        %v5340 = vpop.f32.mrf.mxu0
        %v5341 = vadd.f32 %v5322, %v5340
        %v5342 = vpop.f32.mrf.mxu0
        %v5343 = vadd.f32 %v5324, %v5342
        %5344 = vdwg.mxu0
        %5345 = vmatpush.bf16.msra.mxu0 %v5134
        %5346 = vmatpush.bf16.msra.mxu0 %v5130
        %5347 = vmatpush.bf16.msra.mxu0 %v5126
        %5348 = vmatpush.bf16.msra.mxu0 %v5122
        %5349 = vmatpush.bf16.msra.mxu0 %v5118
        %5350 = vmatpush.bf16.msra.mxu0 %v5114
        %5351 = vmatpush.bf16.msra.mxu0 %v5110
        %5352 = vmatpush.bf16.msra.mxu0 %v5106
        %5353 = vmatmul.bf16.gmra.mxu0 %v4833
        %v5354 = vpop.f32.mrf.mxu0
        %v5355 = vadd.f32 %v4906, %v5354
        %v5356 = vpop.f32.mrf.mxu0
        %v5357 = vadd.f32 %v4906, %v5356
        %5358 = vmatmul.bf16.gmra.mxu0 %v4835
        %v5359 = vpop.f32.mrf.mxu0
        %v5360 = vadd.f32 %v4906, %v5359
        %v5361 = vpop.f32.mrf.mxu0
        %v5362 = vadd.f32 %v4906, %v5361
        %5363 = vdwg.mxu0
        %5364 = vmatpush.bf16.msra.mxu0 %v5166
        %5365 = vmatpush.bf16.msra.mxu0 %v5162
        %5366 = vmatpush.bf16.msra.mxu0 %v5158
        %5367 = vmatpush.bf16.msra.mxu0 %v5154
        %5368 = vmatpush.bf16.msra.mxu0 %v5150
        %5369 = vmatpush.bf16.msra.mxu0 %v5146
        %5370 = vmatpush.bf16.msra.mxu0 %v5142
        %5371 = vmatpush.bf16.msra.mxu0 %v5138
        %5372 = vmatmul.bf16.gmra.mxu0 %v4834
        %v5373 = vpop.f32.mrf.mxu0
        %v5374 = vadd.f32 %v5355, %v5373
        %v5375 = vpop.f32.mrf.mxu0
        %v5376 = vadd.f32 %v5357, %v5375
        %5377 = vmatmul.bf16.gmra.mxu0 %v4836
        %v5378 = vpop.f32.mrf.mxu0
        %v5379 = vadd.f32 %v5360, %v5378
        %v5380 = vpop.f32.mrf.mxu0
        %v5381 = vadd.f32 %v5362, %v5380
        %5382 = vdwg.mxu0
        %v5383 = vmax.f32 %v5260, 0.0
        %v5384 = vmax.f32 %v5298, 0.0
        %v5385 = vmax.f32 %v5336, 0.0
        %v5386 = vmax.f32 %v5374, 0.0
        %v5387 = vmax.f32 %v5262, 0.0
        %v5388 = vmax.f32 %v5300, 0.0
        %v5389 = vmax.f32 %v5338, 0.0
        %v5390 = vmax.f32 %v5376, 0.0
        %v5391 = vmax.f32 %v5265, 0.0
        %v5392 = vmax.f32 %v5303, 0.0
        %v5393 = vmax.f32 %v5341, 0.0
        %v5394 = vmax.f32 %v5379, 0.0
        %v5395 = vmax.f32 %v5267, 0.0
        %v5396 = vmax.f32 %v5305, 0.0
        %v5397 = vmax.f32 %v5343, 0.0
        %v5398 = vmax.f32 %v5381, 0.0
        %v5399 = vpack.c.bf16 %v5387, %v5383
        %v5400 = vpack.c.bf16 %v5388, %v5384
        %v5401 = vpack.c.bf16 %v5389, %v5385
        %v5402 = vpack.c.bf16 %v5390, %v5386
        %v5403 = vpack.c.bf16 %v5395, %v5391
        %v5404 = vpack.c.bf16 %v5396, %v5392
        %v5405 = vpack.c.bf16 %v5397, %v5393
        %v5406 = vpack.c.bf16 %v5398, %v5394
        %v5407 = vld [vmem:[%s1285] sm:$0xff]
        %v5408 = vld [vmem:[%s1285 + $0x8] sm:$0xff]
        %v5409 = vld [vmem:[%s1285 + $0x10] sm:$0xff]
        %v5410 = vld [vmem:[%s1285 + $0x18] sm:$0xff]
        %v5411 = vld [vmem:[%s1285 + $0x20] sm:$0xff]
        %v5412 = vld [vmem:[%s1285 + $0x28] sm:$0xff]
        %v5413 = vld [vmem:[%s1285 + $0x30] sm:$0xff]
        %v5414 = vld [vmem:[%s1285 + $0x38] sm:$0xff]
        %v5415 = vld [vmem:[%s1285 + $0x40] sm:$0xff]
        %v5416 = vld [vmem:[%s1285 + $0x48] sm:$0xff]
        %v5417 = vld [vmem:[%s1285 + $0x50] sm:$0xff]
        %v5418 = vld [vmem:[%s1285 + $0x58] sm:$0xff]
        %v5419 = vld [vmem:[%s1285 + $0x60] sm:$0xff]
        %v5420 = vld [vmem:[%s1285 + $0x68] sm:$0xff]
        %v5421 = vld [vmem:[%s1285 + $0x70] sm:$0xff]
        %v5422 = vld [vmem:[%s1285 + $0x78] sm:$0xff]
        %v5423 = vld [vmem:[%s1285 + $0x80] sm:$0xff]
        %v5424 = vld [vmem:[%s1285 + $0x88] sm:$0xff]
        %v5425 = vld [vmem:[%s1285 + $0x90] sm:$0xff]
        %v5426 = vld [vmem:[%s1285 + $0x98] sm:$0xff]
        %v5427 = vld [vmem:[%s1285 + $0xa0] sm:$0xff]
        %v5428 = vld [vmem:[%s1285 + $0xa8] sm:$0xff]
        %v5429 = vld [vmem:[%s1285 + $0xb0] sm:$0xff]
        %v5430 = vld [vmem:[%s1285 + $0xb8] sm:$0xff]
        %v5431 = vld [vmem:[%s1285 + $0xc0] sm:$0xff]
        %v5432 = vld [vmem:[%s1285 + $0xc8] sm:$0xff]
        %v5433 = vld [vmem:[%s1285 + $0xd0] sm:$0xff]
        %v5434 = vld [vmem:[%s1285 + $0xd8] sm:$0xff]
        %v5435 = vld [vmem:[%s1285 + $0xe0] sm:$0xff]
        %v5436 = vld [vmem:[%s1285 + $0xe8] sm:$0xff]
        %v5437 = vld [vmem:[%s1285 + $0xf0] sm:$0xff]
        %v5438 = vld [vmem:[%s1285 + $0xf8] sm:$0xff]
        %v5439 = vld [vmem:[%s1285 + $0x100] sm:$0xff]
        %v5440 = vld [vmem:[%s1285 + $0x108] sm:$0xff]
        %v5441 = vld [vmem:[%s1285 + $0x110] sm:$0xff]
        %v5442 = vld [vmem:[%s1285 + $0x118] sm:$0xff]
        %v5443 = vld [vmem:[%s1285 + $0x120] sm:$0xff]
        %v5444 = vld [vmem:[%s1285 + $0x128] sm:$0xff]
        %v5445 = vld [vmem:[%s1285 + $0x130] sm:$0xff]
        %v5446 = vld [vmem:[%s1285 + $0x138] sm:$0xff]
        %v5447 = vld [vmem:[%s1285 + $0x140] sm:$0xff]
        %v5448 = vld [vmem:[%s1285 + $0x148] sm:$0xff]
        %v5449 = vld [vmem:[%s1285 + $0x150] sm:$0xff]
        %v5450 = vld [vmem:[%s1285 + $0x158] sm:$0xff]
        %v5451 = vld [vmem:[%s1285 + $0x160] sm:$0xff]
        %v5452 = vld [vmem:[%s1285 + $0x168] sm:$0xff]
        %v5453 = vld [vmem:[%s1285 + $0x170] sm:$0xff]
        %v5454 = vld [vmem:[%s1285 + $0x178] sm:$0xff]
        %v5455 = vld [vmem:[%s1285 + $0x180] sm:$0xff]
        %v5456 = vld [vmem:[%s1285 + $0x188] sm:$0xff]
        %v5457 = vld [vmem:[%s1285 + $0x190] sm:$0xff]
        %v5458 = vld [vmem:[%s1285 + $0x198] sm:$0xff]
        %v5459 = vld [vmem:[%s1285 + $0x1a0] sm:$0xff]
        %v5460 = vld [vmem:[%s1285 + $0x1a8] sm:$0xff]
        %v5461 = vld [vmem:[%s1285 + $0x1b0] sm:$0xff]
        %v5462 = vld [vmem:[%s1285 + $0x1b8] sm:$0xff]
        %v5463 = vld [vmem:[%s1285 + $0x1c0] sm:$0xff]
        %v5464 = vld [vmem:[%s1285 + $0x1c8] sm:$0xff]
        %v5465 = vld [vmem:[%s1285 + $0x1d0] sm:$0xff]
        %v5466 = vld [vmem:[%s1285 + $0x1d8] sm:$0xff]
        %v5467 = vld [vmem:[%s1285 + $0x1e0] sm:$0xff]
        %v5468 = vld [vmem:[%s1285 + $0x1e8] sm:$0xff]
        %v5469 = vld [vmem:[%s1285 + $0x1f0] sm:$0xff]
        %v5470 = vld [vmem:[%s1285 + $0x1f8] sm:$0xff]
        %v5471 = vld [vmem:[%s1295] sm:$0x3]
        %v5473 = vperm.slane %v5471, 0
        %v5474 = vperm.slane %v5471, 1
        %v5541 = vunpack.c.l.b16 %v5407
        %v5542 = vunpack.c.h.b16 %v5407
        %v5543 = vunpack.c.l.b16 %v5408
        %v5544 = vunpack.c.h.b16 %v5408
        %v5545 = vunpack.c.l.b16 %v5409
        %v5546 = vunpack.c.h.b16 %v5409
        %v5547 = vunpack.c.l.b16 %v5410
        %v5548 = vunpack.c.h.b16 %v5410
        %v5549 = vunpack.c.l.b16 %v5411
        %v5550 = vunpack.c.h.b16 %v5411
        %v5551 = vunpack.c.l.b16 %v5412
        %v5552 = vunpack.c.h.b16 %v5412
        %v5553 = vunpack.c.l.b16 %v5413
        %v5554 = vunpack.c.h.b16 %v5413
        %v5555 = vunpack.c.l.b16 %v5414
        %v5556 = vunpack.c.h.b16 %v5414
        %v5557 = vunpack.c.l.b16 %v5415
        %v5558 = vunpack.c.h.b16 %v5415
        %v5559 = vunpack.c.l.b16 %v5416
        %v5560 = vunpack.c.h.b16 %v5416
        %v5561 = vunpack.c.l.b16 %v5417
        %v5562 = vunpack.c.h.b16 %v5417
        %v5563 = vunpack.c.l.b16 %v5418
        %v5564 = vunpack.c.h.b16 %v5418
        %v5565 = vunpack.c.l.b16 %v5419
        %v5566 = vunpack.c.h.b16 %v5419
        %v5567 = vunpack.c.l.b16 %v5420
        %v5568 = vunpack.c.h.b16 %v5420
        %v5569 = vunpack.c.l.b16 %v5421
        %v5570 = vunpack.c.h.b16 %v5421
        %v5571 = vunpack.c.l.b16 %v5422
        %v5572 = vunpack.c.h.b16 %v5422
        %v5573 = vunpack.c.l.b16 %v5423
        %v5574 = vunpack.c.h.b16 %v5423
        %v5575 = vunpack.c.l.b16 %v5424
        %v5576 = vunpack.c.h.b16 %v5424
        %v5577 = vunpack.c.l.b16 %v5425
        %v5578 = vunpack.c.h.b16 %v5425
        %v5579 = vunpack.c.l.b16 %v5426
        %v5580 = vunpack.c.h.b16 %v5426
        %v5581 = vunpack.c.l.b16 %v5427
        %v5582 = vunpack.c.h.b16 %v5427
        %v5583 = vunpack.c.l.b16 %v5428
        %v5584 = vunpack.c.h.b16 %v5428
        %v5585 = vunpack.c.l.b16 %v5429
        %v5586 = vunpack.c.h.b16 %v5429
        %v5587 = vunpack.c.l.b16 %v5430
        %v5588 = vunpack.c.h.b16 %v5430
        %v5589 = vunpack.c.l.b16 %v5431
        %v5590 = vunpack.c.h.b16 %v5431
        %v5591 = vunpack.c.l.b16 %v5432
        %v5592 = vunpack.c.h.b16 %v5432
        %v5593 = vunpack.c.l.b16 %v5433
        %v5594 = vunpack.c.h.b16 %v5433
        %v5595 = vunpack.c.l.b16 %v5434
        %v5596 = vunpack.c.h.b16 %v5434
        %v5597 = vunpack.c.l.b16 %v5435
        %v5598 = vunpack.c.h.b16 %v5435
        %v5599 = vunpack.c.l.b16 %v5436
        %v5600 = vunpack.c.h.b16 %v5436
        %v5601 = vunpack.c.l.b16 %v5437
        %v5602 = vunpack.c.h.b16 %v5437
        %v5603 = vunpack.c.l.b16 %v5438
        %v5604 = vunpack.c.h.b16 %v5438
        %v5605 = vunpack.c.l.b16 %v5439
        %v5606 = vunpack.c.h.b16 %v5439
        %v5607 = vunpack.c.l.b16 %v5440
        %v5608 = vunpack.c.h.b16 %v5440
        %v5609 = vunpack.c.l.b16 %v5441
        %v5610 = vunpack.c.h.b16 %v5441
        %v5611 = vunpack.c.l.b16 %v5442
        %v5612 = vunpack.c.h.b16 %v5442
        %v5613 = vunpack.c.l.b16 %v5443
        %v5614 = vunpack.c.h.b16 %v5443
        %v5615 = vunpack.c.l.b16 %v5444
        %v5616 = vunpack.c.h.b16 %v5444
        %v5617 = vunpack.c.l.b16 %v5445
        %v5618 = vunpack.c.h.b16 %v5445
        %v5619 = vunpack.c.l.b16 %v5446
        %v5620 = vunpack.c.h.b16 %v5446
        %v5621 = vunpack.c.l.b16 %v5447
        %v5622 = vunpack.c.h.b16 %v5447
        %v5623 = vunpack.c.l.b16 %v5448
        %v5624 = vunpack.c.h.b16 %v5448
        %v5625 = vunpack.c.l.b16 %v5449
        %v5626 = vunpack.c.h.b16 %v5449
        %v5627 = vunpack.c.l.b16 %v5450
        %v5628 = vunpack.c.h.b16 %v5450
        %v5629 = vunpack.c.l.b16 %v5451
        %v5630 = vunpack.c.h.b16 %v5451
        %v5631 = vunpack.c.l.b16 %v5452
        %v5632 = vunpack.c.h.b16 %v5452
        %v5633 = vunpack.c.l.b16 %v5453
        %v5634 = vunpack.c.h.b16 %v5453
        %v5635 = vunpack.c.l.b16 %v5454
        %v5636 = vunpack.c.h.b16 %v5454
        %v5637 = vunpack.c.l.b16 %v5455
        %v5638 = vunpack.c.h.b16 %v5455
        %v5639 = vunpack.c.l.b16 %v5456
        %v5640 = vunpack.c.h.b16 %v5456
        %v5641 = vunpack.c.l.b16 %v5457
        %v5642 = vunpack.c.h.b16 %v5457
        %v5643 = vunpack.c.l.b16 %v5458
        %v5644 = vunpack.c.h.b16 %v5458
        %v5645 = vunpack.c.l.b16 %v5459
        %v5646 = vunpack.c.h.b16 %v5459
        %v5647 = vunpack.c.l.b16 %v5460
        %v5648 = vunpack.c.h.b16 %v5460
        %v5649 = vunpack.c.l.b16 %v5461
        %v5650 = vunpack.c.h.b16 %v5461
        %v5651 = vunpack.c.l.b16 %v5462
        %v5652 = vunpack.c.h.b16 %v5462
        %v5653 = vunpack.c.l.b16 %v5463
        %v5654 = vunpack.c.h.b16 %v5463
        %v5655 = vunpack.c.l.b16 %v5464
        %v5656 = vunpack.c.h.b16 %v5464
        %v5657 = vunpack.c.l.b16 %v5465
        %v5658 = vunpack.c.h.b16 %v5465
        %v5659 = vunpack.c.l.b16 %v5466
        %v5660 = vunpack.c.h.b16 %v5466
        %v5661 = vunpack.c.l.b16 %v5467
        %v5662 = vunpack.c.h.b16 %v5467
        %v5663 = vunpack.c.l.b16 %v5468
        %v5664 = vunpack.c.h.b16 %v5468
        %v5665 = vunpack.c.l.b16 %v5469
        %v5666 = vunpack.c.h.b16 %v5469
        %v5667 = vunpack.c.l.b16 %v5470
        %v5668 = vunpack.c.h.b16 %v5470
        %v5669 = vpack.c.b16 %v5543, %v5541
        %v5670 = vpack.c.b16 %v5544, %v5542
        %v5671 = vpack.c.b16 %v5547, %v5545
        %v5672 = vpack.c.b16 %v5548, %v5546
        %v5673 = vpack.c.b16 %v5551, %v5549
        %v5674 = vpack.c.b16 %v5552, %v5550
        %v5675 = vpack.c.b16 %v5555, %v5553
        %v5676 = vpack.c.b16 %v5556, %v5554
        %v5677 = vpack.c.b16 %v5559, %v5557
        %v5678 = vpack.c.b16 %v5560, %v5558
        %v5679 = vpack.c.b16 %v5563, %v5561
        %v5680 = vpack.c.b16 %v5564, %v5562
        %v5681 = vpack.c.b16 %v5567, %v5565
        %v5682 = vpack.c.b16 %v5568, %v5566
        %v5683 = vpack.c.b16 %v5571, %v5569
        %v5684 = vpack.c.b16 %v5572, %v5570
        %v5685 = vpack.c.b16 %v5575, %v5573
        %v5686 = vpack.c.b16 %v5576, %v5574
        %v5687 = vpack.c.b16 %v5579, %v5577
        %v5688 = vpack.c.b16 %v5580, %v5578
        %v5689 = vpack.c.b16 %v5583, %v5581
        %v5690 = vpack.c.b16 %v5584, %v5582
        %v5691 = vpack.c.b16 %v5587, %v5585
        %v5692 = vpack.c.b16 %v5588, %v5586
        %v5693 = vpack.c.b16 %v5591, %v5589
        %v5694 = vpack.c.b16 %v5592, %v5590
        %v5695 = vpack.c.b16 %v5595, %v5593
        %v5696 = vpack.c.b16 %v5596, %v5594
        %v5697 = vpack.c.b16 %v5599, %v5597
        %v5698 = vpack.c.b16 %v5600, %v5598
        %v5699 = vpack.c.b16 %v5603, %v5601
        %v5700 = vpack.c.b16 %v5604, %v5602
        %v5701 = vpack.c.b16 %v5607, %v5605
        %v5702 = vpack.c.b16 %v5608, %v5606
        %v5703 = vpack.c.b16 %v5611, %v5609
        %v5704 = vpack.c.b16 %v5612, %v5610
        %v5705 = vpack.c.b16 %v5615, %v5613
        %v5706 = vpack.c.b16 %v5616, %v5614
        %v5707 = vpack.c.b16 %v5619, %v5617
        %v5708 = vpack.c.b16 %v5620, %v5618
        %v5709 = vpack.c.b16 %v5623, %v5621
        %v5710 = vpack.c.b16 %v5624, %v5622
        %v5711 = vpack.c.b16 %v5627, %v5625
        %v5712 = vpack.c.b16 %v5628, %v5626
        %v5713 = vpack.c.b16 %v5631, %v5629
        %v5714 = vpack.c.b16 %v5632, %v5630
        %v5715 = vpack.c.b16 %v5635, %v5633
        %v5716 = vpack.c.b16 %v5636, %v5634
        %v5717 = vpack.c.b16 %v5639, %v5637
        %v5718 = vpack.c.b16 %v5640, %v5638
        %v5719 = vpack.c.b16 %v5643, %v5641
        %v5720 = vpack.c.b16 %v5644, %v5642
        %v5721 = vpack.c.b16 %v5647, %v5645
        %v5722 = vpack.c.b16 %v5648, %v5646
        %v5723 = vpack.c.b16 %v5651, %v5649
        %v5724 = vpack.c.b16 %v5652, %v5650
        %v5725 = vpack.c.b16 %v5655, %v5653
        %v5726 = vpack.c.b16 %v5656, %v5654
        %v5727 = vpack.c.b16 %v5659, %v5657
        %v5728 = vpack.c.b16 %v5660, %v5658
        %v5729 = vpack.c.b16 %v5663, %v5661
        %v5730 = vpack.c.b16 %v5664, %v5662
        %v5731 = vpack.c.b16 %v5667, %v5665
        %v5732 = vpack.c.b16 %v5668, %v5666
        %5797 = vmatpush.bf16.msra.mxu0 %v5683
        %5798 = vmatpush.bf16.msra.mxu0 %v5681
        %5799 = vmatpush.bf16.msra.mxu0 %v5679
        %5800 = vmatpush.bf16.msra.mxu0 %v5677
        %5801 = vmatpush.bf16.msra.mxu0 %v5675
        %5802 = vmatpush.bf16.msra.mxu0 %v5673
        %5803 = vmatpush.bf16.msra.mxu0 %v5671
        %5804 = vmatpush.bf16.msra.mxu0 %v5669
        %5805 = vmatmul.bf16.gmra.mxu0 %v5399
        %v5806 = vpop.f32.mrf.mxu0
        %v5807 = vadd.f32 %v5473, %v5806
        %v5808 = vpop.f32.mrf.mxu0
        %v5809 = vadd.f32 %v5473, %v5808
        %5810 = vmatmul.bf16.gmra.mxu0 %v5403
        %v5811 = vpop.f32.mrf.mxu0
        %v5812 = vadd.f32 %v5473, %v5811
        %v5813 = vpop.f32.mrf.mxu0
        %v5814 = vadd.f32 %v5473, %v5813
        %5815 = vdwg.mxu0
        %5816 = vmatpush.bf16.msra.mxu0 %v5699
        %5817 = vmatpush.bf16.msra.mxu0 %v5697
        %5818 = vmatpush.bf16.msra.mxu0 %v5695
        %5819 = vmatpush.bf16.msra.mxu0 %v5693
        %5820 = vmatpush.bf16.msra.mxu0 %v5691
        %5821 = vmatpush.bf16.msra.mxu0 %v5689
        %5822 = vmatpush.bf16.msra.mxu0 %v5687
        %5823 = vmatpush.bf16.msra.mxu0 %v5685
        %5824 = vmatmul.bf16.gmra.mxu0 %v5400
        %v5825 = vpop.f32.mrf.mxu0
        %v5826 = vadd.f32 %v5807, %v5825
        %v5827 = vpop.f32.mrf.mxu0
        %v5828 = vadd.f32 %v5809, %v5827
        %5829 = vmatmul.bf16.gmra.mxu0 %v5404
        %v5830 = vpop.f32.mrf.mxu0
        %v5831 = vadd.f32 %v5812, %v5830
        %v5832 = vpop.f32.mrf.mxu0
        %v5833 = vadd.f32 %v5814, %v5832
        %5834 = vdwg.mxu0
        %5835 = vmatpush.bf16.msra.mxu0 %v5715
        %5836 = vmatpush.bf16.msra.mxu0 %v5713
        %5837 = vmatpush.bf16.msra.mxu0 %v5711
        %5838 = vmatpush.bf16.msra.mxu0 %v5709
        %5839 = vmatpush.bf16.msra.mxu0 %v5707
        %5840 = vmatpush.bf16.msra.mxu0 %v5705
        %5841 = vmatpush.bf16.msra.mxu0 %v5703
        %5842 = vmatpush.bf16.msra.mxu0 %v5701
        %5843 = vmatmul.bf16.gmra.mxu0 %v5401
        %v5844 = vpop.f32.mrf.mxu0
        %v5845 = vadd.f32 %v5826, %v5844
        %v5846 = vpop.f32.mrf.mxu0
        %v5847 = vadd.f32 %v5828, %v5846
        %5848 = vmatmul.bf16.gmra.mxu0 %v5405
        %v5849 = vpop.f32.mrf.mxu0
        %v5850 = vadd.f32 %v5831, %v5849
        %v5851 = vpop.f32.mrf.mxu0
        %v5852 = vadd.f32 %v5833, %v5851
        %5853 = vdwg.mxu0
        %5854 = vmatpush.bf16.msra.mxu0 %v5731
        %5855 = vmatpush.bf16.msra.mxu0 %v5729
        %5856 = vmatpush.bf16.msra.mxu0 %v5727
        %5857 = vmatpush.bf16.msra.mxu0 %v5725
        %5858 = vmatpush.bf16.msra.mxu0 %v5723
        %5859 = vmatpush.bf16.msra.mxu0 %v5721
        %5860 = vmatpush.bf16.msra.mxu0 %v5719
        %5861 = vmatpush.bf16.msra.mxu0 %v5717
        %5862 = vmatmul.bf16.gmra.mxu0 %v5402
        %v5863 = vpop.f32.mrf.mxu0
        %v5864 = vadd.f32 %v5845, %v5863
        %v5865 = vpop.f32.mrf.mxu0
        %v5866 = vadd.f32 %v5847, %v5865
        %5867 = vmatmul.bf16.gmra.mxu0 %v5406
        %v5868 = vpop.f32.mrf.mxu0
        %v5869 = vadd.f32 %v5850, %v5868
        %v5870 = vpop.f32.mrf.mxu0
        %v5871 = vadd.f32 %v5852, %v5870
        %5872 = vdwg.mxu0
        %5873 = vmatpush.bf16.msra.mxu0 %v5684
        %5874 = vmatpush.bf16.msra.mxu0 %v5682
        %5875 = vmatpush.bf16.msra.mxu0 %v5680
        %5876 = vmatpush.bf16.msra.mxu0 %v5678
        %5877 = vmatpush.bf16.msra.mxu0 %v5676
        %5878 = vmatpush.bf16.msra.mxu0 %v5674
        %5879 = vmatpush.bf16.msra.mxu0 %v5672
        %5880 = vmatpush.bf16.msra.mxu0 %v5670
        %5881 = vmatmul.bf16.gmra.mxu0 %v5399
        %v5882 = vpop.f32.mrf.mxu0
        %v5883 = vadd.f32 %v5474, %v5882
        %v5884 = vpop.f32.mrf.mxu0
        %v5885 = vadd.f32 %v5474, %v5884
        %5886 = vmatmul.bf16.gmra.mxu0 %v5403
        %v5887 = vpop.f32.mrf.mxu0
        %v5888 = vadd.f32 %v5474, %v5887
        %v5889 = vpop.f32.mrf.mxu0
        %v5890 = vadd.f32 %v5474, %v5889
        %5891 = vdwg.mxu0
        %5892 = vmatpush.bf16.msra.mxu0 %v5700
        %5893 = vmatpush.bf16.msra.mxu0 %v5698
        %5894 = vmatpush.bf16.msra.mxu0 %v5696
        %5895 = vmatpush.bf16.msra.mxu0 %v5694
        %5896 = vmatpush.bf16.msra.mxu0 %v5692
        %5897 = vmatpush.bf16.msra.mxu0 %v5690
        %5898 = vmatpush.bf16.msra.mxu0 %v5688
        %5899 = vmatpush.bf16.msra.mxu0 %v5686
        %5900 = vmatmul.bf16.gmra.mxu0 %v5400
        %v5901 = vpop.f32.mrf.mxu0
        %v5902 = vadd.f32 %v5883, %v5901
        %v5903 = vpop.f32.mrf.mxu0
        %v5904 = vadd.f32 %v5885, %v5903
        %5905 = vmatmul.bf16.gmra.mxu0 %v5404
        %v5906 = vpop.f32.mrf.mxu0
        %v5907 = vadd.f32 %v5888, %v5906
        %v5908 = vpop.f32.mrf.mxu0
        %v5909 = vadd.f32 %v5890, %v5908
        %5910 = vdwg.mxu0
        %5911 = vmatpush.bf16.msra.mxu0 %v5716
        %5912 = vmatpush.bf16.msra.mxu0 %v5714
        %5913 = vmatpush.bf16.msra.mxu0 %v5712
        %5914 = vmatpush.bf16.msra.mxu0 %v5710
        %5915 = vmatpush.bf16.msra.mxu0 %v5708
        %5916 = vmatpush.bf16.msra.mxu0 %v5706
        %5917 = vmatpush.bf16.msra.mxu0 %v5704
        %5918 = vmatpush.bf16.msra.mxu0 %v5702
        %5919 = vmatmul.bf16.gmra.mxu0 %v5401
        %v5920 = vpop.f32.mrf.mxu0
        %v5921 = vadd.f32 %v5902, %v5920
        %v5922 = vpop.f32.mrf.mxu0
        %v5923 = vadd.f32 %v5904, %v5922
        %5924 = vmatmul.bf16.gmra.mxu0 %v5405
        %v5925 = vpop.f32.mrf.mxu0
        %v5926 = vadd.f32 %v5907, %v5925
        %v5927 = vpop.f32.mrf.mxu0
        %v5928 = vadd.f32 %v5909, %v5927
        %5929 = vdwg.mxu0
        %5930 = vmatpush.bf16.msra.mxu0 %v5732
        %5931 = vmatpush.bf16.msra.mxu0 %v5730
        %5932 = vmatpush.bf16.msra.mxu0 %v5728
        %5933 = vmatpush.bf16.msra.mxu0 %v5726
        %5934 = vmatpush.bf16.msra.mxu0 %v5724
        %5935 = vmatpush.bf16.msra.mxu0 %v5722
        %5936 = vmatpush.bf16.msra.mxu0 %v5720
        %5937 = vmatpush.bf16.msra.mxu0 %v5718
        %5938 = vmatmul.bf16.gmra.mxu0 %v5402
        %v5939 = vpop.f32.mrf.mxu0
        %v5940 = vadd.f32 %v5921, %v5939
        %v5941 = vpop.f32.mrf.mxu0
        %v5942 = vadd.f32 %v5923, %v5941
        %5943 = vmatmul.bf16.gmra.mxu0 %v5406
        %v5944 = vpop.f32.mrf.mxu0
        %v5945 = vadd.f32 %v5926, %v5944
        %v5946 = vpop.f32.mrf.mxu0
        %v5947 = vadd.f32 %v5928, %v5946
        %5948 = vdwg.mxu0
        %v5949 = vadd.f32 %v4825, %v5864
        %v5950 = vadd.f32 %v4826, %v5940
        %v5951 = vadd.f32 %v4827, %v5866
        %v5952 = vadd.f32 %v4828, %v5942
        %v5953 = vadd.f32 %v4829, %v5869
        %v5954 = vadd.f32 %v4830, %v5945
        %v5955 = vadd.f32 %v4831, %v5871
        %v5956 = vadd.f32 %v4832, %v5947
        %v5957 = vld [vmem:[%s1305] sm:$0x3]
        %v5958 = vld [vmem:[%s1315] sm:$0x3]
        %v5959 = vadd.f32 %v5949, %v5950
        %5960 = vadd.xlane.f32.xlu0 %v5959
        %v5961 = vpop.xlane.xlu0 %5960
        %v5962 = vadd.f32 %v5951, %v5952
        %5963 = vadd.xlane.f32.xlu0 %v5962
        %v5964 = vpop.xlane.xlu0 %5963
        %v5965 = vadd.f32 %v5953, %v5954
        %5966 = vadd.xlane.f32.xlu0 %v5965
        %v5967 = vpop.xlane.xlu0 %5966
        %v5968 = vadd.f32 %v5955, %v5956
        %5969 = vadd.xlane.f32.xlu0 %v5968
        %v5970 = vpop.xlane.xlu0 %5969
        %v5971 = vmul.f32 %v5961, %v3033
        %v5972 = vmul.f32 %v5964, %v3033
        %v5973 = vmul.f32 %v5967, %v3033
        %v5974 = vmul.f32 %v5970, %v3033
        %v5975 = vsub.f32 %v5949, %v5971
        %v5976 = vsub.f32 %v5950, %v5971
        %v5977 = vsub.f32 %v5951, %v5972
        %v5978 = vsub.f32 %v5952, %v5972
        %v5979 = vsub.f32 %v5953, %v5973
        %v5980 = vsub.f32 %v5954, %v5973
        %v5981 = vsub.f32 %v5955, %v5974
        %v5982 = vsub.f32 %v5956, %v5974
        %v5983 = vmul.f32 %v5975, %v5975
        %v5984 = vmul.f32 %v5976, %v5976
        %v5985 = vmul.f32 %v5977, %v5977
        %v5986 = vmul.f32 %v5978, %v5978
        %v5987 = vmul.f32 %v5979, %v5979
        %v5988 = vmul.f32 %v5980, %v5980
        %v5989 = vmul.f32 %v5981, %v5981
        %v5990 = vmul.f32 %v5982, %v5982
        %v5991 = vadd.f32 %v5983, %v5984
        %5992 = vadd.xlane.f32.xlu0 %v5991
        %v5993 = vpop.xlane.xlu0 %5992
        %v5994 = vadd.f32 %v5985, %v5986
        %5995 = vadd.xlane.f32.xlu0 %v5994
        %v5996 = vpop.xlane.xlu0 %5995
        %v5997 = vadd.f32 %v5987, %v5988
        %5998 = vadd.xlane.f32.xlu0 %v5997
        %v5999 = vpop.xlane.xlu0 %5998
        %v6000 = vadd.f32 %v5989, %v5990
        %6001 = vadd.xlane.f32.xlu0 %v6000
        %v6002 = vpop.xlane.xlu0 %6001
        %v6003 = vmul.f32 %v5993, %v3033
        %v6004 = vmul.f32 %v5996, %v3033
        %v6005 = vmul.f32 %v5999, %v3033
        %v6006 = vmul.f32 %v6002, %v3033
        %v6007 = vadd.f32 %v6003, 1e-05
        %v6008 = vadd.f32 %v6004, 1e-05
        %v6009 = vadd.f32 %v6005, 1e-05
        %v6010 = vadd.f32 %v6006, 1e-05
        %v6011 = vrsqrt.pop %v6007
        %v6012 = vmul.f32 %v6011, %v6007
        %v6013 = vmul.f32 %v6012, %v6011
        %v6014 = vmul.f32 0.5, %v6013
        %v6015 = vsub.f32 1.5, %v6014
        %v6016 = vmul.f32 %v6011, %v6015
        %vm6017 = vweird.f32 %v6007
        %vm6018 = vweird.f32 %v6011
        %vm6019 = vmor %vm6017, %vm6018
        %v6020 = vsel %vm6019, %v6011, %v6016
        %v6021 = vrsqrt.pop %v6008
        %v6022 = vmul.f32 %v6021, %v6008
        %v6023 = vmul.f32 %v6022, %v6021
        %v6024 = vmul.f32 0.5, %v6023
        %v6025 = vsub.f32 1.5, %v6024
        %v6026 = vmul.f32 %v6021, %v6025
        %vm6027 = vweird.f32 %v6008
        %vm6028 = vweird.f32 %v6021
        %vm6029 = vmor %vm6027, %vm6028
        %v6030 = vsel %vm6029, %v6021, %v6026
        %v6031 = vrsqrt.pop %v6009
        %v6032 = vmul.f32 %v6031, %v6009
        %v6033 = vmul.f32 %v6032, %v6031
        %v6034 = vmul.f32 0.5, %v6033
        %v6035 = vsub.f32 1.5, %v6034
        %v6036 = vmul.f32 %v6031, %v6035
        %vm6037 = vweird.f32 %v6009
        %vm6038 = vweird.f32 %v6031
        %vm6039 = vmor %vm6037, %vm6038
        %v6040 = vsel %vm6039, %v6031, %v6036
        %v6041 = vrsqrt.pop %v6010
        %v6042 = vmul.f32 %v6041, %v6010
        %v6043 = vmul.f32 %v6042, %v6041
        %v6044 = vmul.f32 0.5, %v6043
        %v6045 = vsub.f32 1.5, %v6044
        %v6046 = vmul.f32 %v6041, %v6045
        %vm6047 = vweird.f32 %v6010
        %vm6048 = vweird.f32 %v6041
        %vm6049 = vmor %vm6047, %vm6048
        %v6050 = vsel %vm6049, %v6041, %v6046
        %v6051 = vmul.f32 %v5975, %v6020
        %v6052 = vmul.f32 %v5976, %v6020
        %v6053 = vmul.f32 %v5977, %v6030
        %v6054 = vmul.f32 %v5978, %v6030
        %v6055 = vmul.f32 %v5979, %v6040
        %v6056 = vmul.f32 %v5980, %v6040
        %v6057 = vmul.f32 %v5981, %v6050
        %v6058 = vmul.f32 %v5982, %v6050
        %v6060 = vperm.slane %v5957, 0
        %v6061 = vperm.slane %v5957, 1
        %v6064 = vmul.f32 %v6051, %v6060
        %v6065 = vmul.f32 %v6052, %v6061
        %v6066 = vmul.f32 %v6053, %v6060
        %v6067 = vmul.f32 %v6054, %v6061
        %v6068 = vmul.f32 %v6055, %v6060
        %v6069 = vmul.f32 %v6056, %v6061
        %v6070 = vmul.f32 %v6057, %v6060
        %v6071 = vmul.f32 %v6058, %v6061
        %v6073 = vperm.slane %v5958, 0
        %v6074 = vperm.slane %v5958, 1
        %v6077 = vadd.f32 %v6064, %v6073
        %v6078 = vadd.f32 %v6065, %v6074
        %v6079 = vadd.f32 %v6066, %v6073
        %v6080 = vadd.f32 %v6067, %v6074
        %v6081 = vadd.f32 %v6068, %v6073
        %v6082 = vadd.f32 %v6069, %v6074
        %v6083 = vadd.f32 %v6070, %v6073
        %v6084 = vadd.f32 %v6071, %v6074
        %6085 = vst [vmem:[#allocation2] sm:$0xff] %v6077
        %6086 = vst [vmem:[#allocation2 + $0x8] sm:$0xff] %v6078
        %6087 = vst [vmem:[#allocation2 + $0x10] sm:$0xff] %v6079
        %6088 = vst [vmem:[#allocation2 + $0x18] sm:$0xff] %v6080
        %6089 = vst [vmem:[#allocation2 + $0x20] sm:$0xff] %v6081
        %6090 = vst [vmem:[#allocation2 + $0x28] sm:$0xff] %v6082
        %6091 = vst [vmem:[#allocation2 + $0x30] sm:$0xff] %v6083
        %6092 = vst [vmem:[#allocation2 + $0x38] sm:$0xff] %v6084
        %6093 = vst [vmem:[%s1479] sm:$0xff] %v6077
        %6094 = vst [vmem:[%s1479 + $0x8] sm:$0xff] %v6078
        %6095 = vst [vmem:[%s1479 + $0x10] sm:$0xff] %v6079
        %6096 = vst [vmem:[%s1479 + $0x18] sm:$0xff] %v6080
        %6097 = vst [vmem:[%s1479 + $0x20] sm:$0xff] %v6081
        %6098 = vst [vmem:[%s1479 + $0x28] sm:$0xff] %v6082
        %6099 = vst [vmem:[%s1479 + $0x30] sm:$0xff] %v6083
        %6100 = vst [vmem:[%s1479 + $0x38] sm:$0xff] %v6084
        %s6101 = sand.u32 %s661, 1
        %s6102 = scalar_lea.sflag [#allocation5], %s6101
        %s6103 = sand.u32 %s661, 1
        %s6104 = smul.addr %s6103, 64
        %s6105 = scalar_lea.vmem [#allocation35], %s6104
        // Predicated region
        $region193: #{encoder_forward.1} parent=107 // pred_check
          %p6106 = pneg %p671
        $region194: #{encoder_forward.1} parent=107 // pred_check_branch
          %6108 = sbr.rel (%p6106) target = $region196
        $region195: #{encoder_forward.1} parent=107 // pred_region
          %6110 = vsyncadd %s6102, 0
          %s6111 = smul.addr %s73, 8
          %s6112 = smul.addr %s6111, 8
          %s6113 = scalar_lea.hbm %s22, %s6112
          %s6114 = sshll.u32 %s6105, 4
          %s6115 = int_to_ptr.vmem [resolvable:$true] %s6114
          %s6116 = sshll.u32 %s6113, 4
          %s6117 = int_to_ptr.hbm [resolvable:$true] %s6116
          %6122 = dma.vmem_to_hbm [thread:$0]  %s6115, 1024, %s6117, %s6102, 256, 256, 16
        $region196: #{encoder_forward.1} parent=107 // pred_fallthru
          _
      $region108: #{encoder_forward.1} parent=5 // pred_fallthru
        _
      %p6123 = scmp.le.s32.totalorder 2, %s64
      // Predicated region
      $region197: #{encoder_forward.1} parent=5 // pred_check
        %p6124 = pneg %p6123
      $region198: #{encoder_forward.1} parent=5 // pred_check_branch
        %6126 = sbr.rel (%p6124) target = $region200
      $region199: #{encoder_forward.1} parent=5 // pred_region
        %s6127 = ssub.s32 %s64, 2
        // Predicated region
        $region201: #{encoder_forward.1} parent=199 // pred_check
          %p6128 = pneg %p677
        $region202: #{encoder_forward.1} parent=199 // pred_check_branch
          %6130 = sbr.rel (%p6128) target = $region204
        $region203: #{encoder_forward.1} parent=199 // pred_region
          %s6131 = sand.u32 %s662, 1
          %s6132 = scalar_lea.sflag [#allocation5], %s6131
          %s6133 = sand.u32 %s662, 1
          %s6134 = smul.addr %s6133, 64
          %s6135 = scalar_lea.vmem [#allocation35], %s6134
          %6137 = dma.done %s6132, 1024
        $region204: #{encoder_forward.1} parent=199 // pred_fallthru
          _
      $region200: #{encoder_forward.1} parent=5 // pred_fallthru
        _
    $region6: #{encoder_forward.1} parent=1 // loop_footer
      %s68 = sadd.s32 1, %s64
    $region7: #{encoder_forward.1} parent=1 // loop_footer_branch
      %63 = sbr.rel target = $region3
    $region8: #{encoder_forward.1} parent=1 // loop_exit
      _
    %6138 = vsyncpa [#allocation4], 1
    %s6139 = scalar_lea.sflag [#allocation4], 1
    %6140 = vsyncpa %s6139, 1
    %6141 = vsyncpa [#allocation7], 1
    %s6142 = scalar_lea.sflag [#allocation7], 1
    %6143 = vsyncpa %s6142, 1
    %6144 = vsyncpa [#allocation10], 1
    %s6145 = scalar_lea.sflag [#allocation10], 1
    %6146 = vsyncpa %s6145, 1
    %6147 = vsyncpa [#allocation13], 1
    %s6148 = scalar_lea.sflag [#allocation13], 1
    %6149 = vsyncpa %s6148, 1
    %6150 = vsyncpa [#allocation16], 1
    %s6151 = scalar_lea.sflag [#allocation16], 1
    %6152 = vsyncpa %s6151, 1
    %6153 = vsyncpa [#allocation19], 1
    %s6154 = scalar_lea.sflag [#allocation19], 1
    %6155 = vsyncpa %s6154, 1
    %6156 = vsyncpa [#allocation22], 1
    %s6157 = scalar_lea.sflag [#allocation22], 1
    %6158 = vsyncpa %s6157, 1
    %6159 = vsyncpa [#allocation25], 1
    %s6160 = scalar_lea.sflag [#allocation25], 1
    %6161 = vsyncpa %s6160, 1
    %6162 = vsyncpa [#allocation28], 1
    %s6163 = scalar_lea.sflag [#allocation28], 1
    %6164 = vsyncpa %s6163, 1
    %6165 = vsyncpa [#allocation31], 1
    %s6166 = scalar_lea.sflag [#allocation31], 1
    %6167 = vsyncpa %s6166, 1
    %6168 = vsyncpa [#allocation34], 1
    %s6169 = scalar_lea.sflag [#allocation34], 1
    %6170 = vsyncpa %s6169, 1
    %6171 = vsyncpa [#allocation5], 1
    %s6172 = scalar_lea.sflag [#allocation5], 1
    %6173 = vsyncpa %s6172, 1

</llo_original>
